<compile_context>
chip_gen: v7x
topology: tpu7x:2x2x1
jax: 0.10.0
libtpu: 0.0.40
codegen_flags: <defaults>
</compile_context>

<pallas_src>
import functools

import jax
import jax.numpy as jnp
from jax.experimental import pallas as pl
from jax.experimental.pallas import tpu as pltpu

# ----------------------------- configuration --------------------------------
NUM_LAYERS = 2      # Decoder(num_layers=N); small N for the demo, semantics identical
NUM_HEADS  = 4
D_MODEL    = 32
D_FF       = 64
B          = 2
S_TGT      = 8
S_MEM      = 8

VEC_W      = 128    # lane-padded width of packed bias / LayerNorm rows
N_VEC_ROWS = 13     # rows per layer in the packed vector table (see prepare_params)


# ----------------------- shared math (traced inside kernel) -----------------
def _layer_norm(x, g, b, eps=1e-5):
    mu = jnp.mean(x, axis=-1, keepdims=True)
    var = jnp.mean(jnp.square(x - mu), axis=-1, keepdims=True)
    return (x - mu) * jax.lax.rsqrt(var + eps) * g + b


def _mha(q2, k2, v2, w_o, b_o, mask_bias, *, batch, num_heads, recip):
    """Multi-head attention on batch-folded, lane-dense activations.

    q2:(B*Sq, H*dh) f32, k2/v2:(B*Sk, H*dh) f32, w_o:(H*dh, D) bf16, b_o:(1, D) f32,
    mask_bias: None or (1, Sq, Sk) additive f32 bias (-1e9 where masked).
    Head split/merge are relayouts (lane slices + leading-axis stacking); all
    matmuls are lane-dense or batched only over the leading (B*H) axis.
    """
    f32, bf16 = jnp.float32, jnp.bfloat16
    Bsz, H = batch, num_heads
    HD = q2.shape[-1]
    dh = HD // H
    Sq = q2.shape[0] // Bsz
    Sk = k2.shape[0] // Bsz

    def split_heads(x2, S):
        # (B*S, H*dh) f32 -> (B*H, S, dh) bf16; exactly one bf16 cast per tensor.
        parts = [x2[:, h * dh:(h + 1) * dh].reshape(Bsz, 1, S, dh) for h in range(H)]
        return jnp.concatenate(parts, axis=1).reshape(Bsz * H, S, dh).astype(bf16)

    qh, kh, vh = split_heads(q2, Sq), split_heads(k2, Sk), split_heads(v2, Sk)

    # scores (1/sqrt(dh) already folded into the Q projection) + optional mask bias
    s = jnp.einsum("nqd,nkd->nqk", qh, kh, preferred_element_type=f32)
    if mask_bias is not None:
        s = s + mask_bias                                # (1,Sq,Sk) broadcasts over B*H
    m = jnp.max(s, axis=-1, keepdims=True)
    p = jnp.exp(s - m)
    p = p * recip(jnp.sum(p, axis=-1, keepdims=True))    # EUP reciprocal
    ctx = jnp.einsum("nqk,nkd->nqd", p.astype(bf16), vh, preferred_element_type=f32)

    # merge heads: (B*H,Sq,dh) -> (B*Sq, H*dh)  == torch concat-heads layout
    ctx4 = ctx.reshape(Bsz, H, Sq, dh)
    merged = jnp.concatenate([ctx4[:, h] for h in range(H)], axis=-1)   # (B,Sq,H*dh)
    merged = merged.reshape(Bsz * Sq, HD).astype(bf16)

    # single lane-dense output projection (== concat(heads) @ W_o)
    return jnp.dot(merged, w_o, preferred_element_type=f32) + b_o


def _decoder_math(x, mem, tmask_bias, mmask_bias, layer_params, *,
                  num_layers, num_heads, batch, recip):
    """Shared forward math for the Pallas kernel and the pure-JAX reference.

    x:(B*S_t, D) f32, mem:(B*S_m, D) f32, tmask_bias:(S_t,S_t) f32 additive,
    mmask_bias:(S_t,S_m) f32 additive or None (memory fully visible).
    layer_params(l) -> (W, Wf2, V) packed per-layer parameters.
    """
    f32, bf16 = jnp.float32, jnp.bfloat16
    D = x.shape[-1]
    H = num_heads

    # layer-invariant values hoisted out of the unrolled layer loop
    mem_bf = mem.astype(bf16)
    tmb = tmask_bias[None]                                    # (1, S_t, S_t)
    mmb = None if mmask_bias is None else mmask_bias[None]    # (1, S_t, S_m)

    for l in range(num_layers):
        W, Wf2, V = layer_params(l)
        F = Wf2.shape[0]
        # ---- unpack the packed per-layer parameters (static slices) ----
        w_qkv = W[:, 0:3 * D]               # self-attn fused QKV (scale folded into Q)
        w_cq  = W[:, 3 * D:4 * D]           # cross-attn Q (scale folded)
        w_ckv = W[:, 4 * D:6 * D]           # cross-attn fused KV
        w_sao = W[:, 6 * D:7 * D]           # self-attn out proj (rows = concat heads)
        w_cao = W[:, 7 * D:8 * D]           # cross-attn out proj
        w_ff1 = W[:, 8 * D:8 * D + F]       # FFN first matmul
        b_qkv, b_sao = V[0:1, :3 * D], V[1:2, :D]
        b_cq,  b_ckv = V[2:3, :D],     V[3:4, :2 * D]
        b_cao        = V[4:5, :D]
        b_ff1, b_ff2 = V[5:6, :F],     V[6:7, :D]
        g1, be1 = V[7:8, :D],   V[8:9, :D]
        g2, be2 = V[9:10, :D],  V[10:11, :D]
        g3, be3 = V[11:12, :D], V[12:13, :D]

        # ---- self-attention: ONE lane-dense (N,D)@(D,3D) fused QKV matmul ----
        qkv = jnp.dot(x.astype(bf16), w_qkv, preferred_element_type=f32) + b_qkv
        sa = _mha(qkv[:, :D], qkv[:, D:2 * D], qkv[:, 2 * D:], w_sao, b_sao, tmb,
                  batch=batch, num_heads=H, recip=recip)
        x = _layer_norm(x + sa, g1, be1)

        # ---- cross-attention: Q from x, fused lane-dense K/V from memory ----
        q  = jnp.dot(x.astype(bf16), w_cq, preferred_element_type=f32) + b_cq
        kv = jnp.dot(mem_bf, w_ckv, preferred_element_type=f32) + b_ckv
        ca = _mha(q, kv[:, :D], kv[:, D:], w_cao, b_cao, mmb,
                  batch=batch, num_heads=H, recip=recip)
        x = _layer_norm(x + ca, g2, be2)

        # ---- feed-forward (lane-dense 2-D matmuls, bf16 in / f32 accumulate) ----
        h = jnp.dot(x.astype(bf16), w_ff1, preferred_element_type=f32) + b_ff1
        h = jnp.maximum(h, 0.0)
        y = jnp.dot(h.astype(bf16), Wf2, preferred_element_type=f32) + b_ff2
        x = _layer_norm(x + y, g3, be3)
    return x


# ------------------------------- Pallas kernel -------------------------------
def _decoder_kernel(*refs, num_layers, num_heads, batch, use_mem_mask):
    if use_mem_mask:
        tgt_ref, mem_ref, tmb_ref, mmb_ref, wd_ref, wf2_ref, vec_ref, out_ref = refs
        mmb = mmb_ref[...]
    else:
        tgt_ref, mem_ref, tmb_ref, wd_ref, wf2_ref, vec_ref, out_ref = refs
        mmb = None

    x = _decoder_math(
        tgt_ref[...], mem_ref[...], tmb_ref[...], mmb,
        lambda l: (wd_ref[l], wf2_ref[l], vec_ref[l]),   # per-layer slabs from VMEM
        num_layers=num_layers, num_heads=num_heads, batch=batch,
        recip=lambda d: pl.reciprocal(d, approx=True))
    out_ref[...] = x.astype(out_ref.dtype)


def decoder_forward(tgt, memory, tgt_mask, memory_mask, packed, *,
                    num_layers, num_heads):
    Bsz, S_t, D = tgt.shape
    S_m = memory.shape[1]

    # Fold batch into rows: fuller sublanes, no per-batch grid steps (single-TC
    # v5e/v6e), and one DMA per input with no double-buffering of weights.
    tgt2 = tgt.reshape(Bsz * S_t, D)
    mem2 = memory.reshape(Bsz * S_m, D)

    tmask_bias = (1.0 - tgt_mask).astype(jnp.float32) * jnp.float32(-1e9)
    # Skip all cross-attention mask work when nothing is masked (static check).
    use_mem_mask = not (memory_mask is None or bool(jnp.all(memory_mask == 1.0)))
    data = [tgt2, mem2, tmask_bias]
    if use_mem_mask:
        data.append((1.0 - memory_mask).astype(jnp.float32) * jnp.float32(-1e9))

    kernel = functools.partial(
        _decoder_kernel, num_layers=num_layers, num_heads=num_heads, batch=Bsz,
        use_mem_mask=use_mem_mask)

    out = pl.pallas_call(
        kernel,
        out_shape=jax.ShapeDtypeStruct((Bsz * S_t, D), jnp.float32),
        # grid-less single invocation: whole arrays resident in VMEM exactly once
        compiler_params=pltpu.CompilerParams(vmem_limit_bytes=32 * 1024 * 1024),
    )(*data, packed["w_d"], packed["w_ff2"], packed["vecs"])
    return out.reshape(Bsz, S_t, D)


# ------------------------ pure-JAX reference (for checking) ------------------
def decoder_reference(tgt, memory, tgt_mask, memory_mask, packed, *,
                      num_layers, num_heads):
    Bsz, S_t, D = tgt.shape
    S_m = memory.shape[1]
    tmask_bias = (1.0 - tgt_mask).astype(jnp.float32) * jnp.float32(-1e9)
    use_mem_mask = not (memory_mask is None or bool(jnp.all(memory_mask == 1.0)))
    mmask_bias = ((1.0 - memory_mask).astype(jnp.float32) * jnp.float32(-1e9)
                  if use_mem_mask else None)
    x = _decoder_math(
        tgt.reshape(Bsz * S_t, D), memory.reshape(Bsz * S_m, D),
        tmask_bias, mmask_bias,
        lambda l: (packed["w_d"][l], packed["w_ff2"][l], packed["vecs"][l]),
        num_layers=num_layers, num_heads=num_heads, batch=Bsz,
        recip=lambda d: 1.0 / d)
    return x.reshape(Bsz, S_t, D)


# ------------------------------ parameter init -------------------------------
def init_params(key, num_layers, d_model, d_ff):
    """'Natural' torch-style layout: in_proj (D,3D) with columns [q|k|v], etc."""
    ks = jax.random.split(key, 12)
    std = 0.05
    L, D, F = num_layers, d_model, d_ff
    n = lambda k, shape: jax.random.normal(k, shape, dtype=jnp.float32) * std
    return {
        "w_sa":   n(ks[0], (L, D, 3 * D)), "b_sa":   n(ks[1], (L, 3 * D)),
        "w_sa_o": n(ks[2], (L, D, D)),     "b_sa_o": n(ks[3], (L, D)),
        "w_ca":   n(ks[4], (L, D, 3 * D)), "b_ca":   n(ks[5], (L, 3 * D)),
        "w_ca_o": n(ks[6], (L, D, D)),     "b_ca_o": n(ks[7], (L, D)),
        "w_ff1":  n(ks[8], (L, D, F)),     "b_ff1":  n(ks[9], (L, F)),
        "w_ff2":  n(ks[10], (L, F, D)),    "b_ff2":  n(ks[11], (L, D)),
        "ln1_g": jnp.ones((L, D), jnp.float32), "ln1_b": jnp.zeros((L, D), jnp.float32),
        "ln2_g": jnp.ones((L, D), jnp.float32), "ln2_b": jnp.zeros((L, D), jnp.float32),
        "ln3_g": jnp.ones((L, D), jnp.float32), "ln3_b": jnp.zeros((L, D), jnp.float32),
    }


def prepare_params(raw, num_heads):
    """Pack per-layer parameters into 3 kernel inputs (fewer, bigger DMAs):
       w_d  (L, D, 8D+F) bf16 : [sa_qkv | ca_q | ca_kv | sa_o | ca_o | ff1]
       w_ff2(L, F, D)    bf16
       vecs (L, 13, 128) f32  : all biases + LayerNorm gamma/beta (lane-padded)
    The 1/sqrt(dh) attention scale is folded into the Q projections."""
    L, D, threeD = raw["w_sa"].shape
    F = raw["w_ff1"].shape[-1]
    H = num_heads
    dh = D // H
    scale = dh ** -0.5
    assert threeD == 3 * D and D % H == 0
    assert 3 * D <= VEC_W and F <= VEC_W, "packed vector rows are 128 lanes wide"

    w_sa = raw["w_sa"].at[:, :, :D].multiply(scale)   # fold scale into self-attn Q
    b_sa = raw["b_sa"].at[:, :D].multiply(scale)
    w_ca = raw["w_ca"]

    w_d = jnp.concatenate(
        [w_sa,                     # [0, 3D)    fused self-attn QKV
         w_ca[:, :, :D] * scale,   # [3D, 4D)   cross-attn Q (scale folded)
         w_ca[:, :, D:],           # [4D, 6D)   cross-attn fused KV
         raw["w_sa_o"],            # [6D, 7D)   rows indexed by concat-head channel
         raw["w_ca_o"],            # [7D, 8D)
         raw["w_ff1"]],            # [8D, 8D+F) FFN first matmul
        axis=-1).astype(jnp.bfloat16)

    vecs = jnp.zeros((L, N_VEC_ROWS, VEC_W), jnp.float32)
    rows = [
        (0, b_sa), (1, raw["b_sa_o"]),
        (2, raw["b_ca"][:, :D] * scale), (3, raw["b_ca"][:, D:]),
        (4, raw["b_ca_o"]), (5, raw["b_ff1"]), (6, raw["b_ff2"]),
        (7, raw["ln1_g"]), (8, raw["ln1_b"]),
        (9, raw["ln2_g"]), (10, raw["ln2_b"]),
        (11, raw["ln3_g"]), (12, raw["ln3_b"]),
    ]
    for r, v in rows:
        vecs = vecs.at[:, r, :v.shape[-1]].set(v)

    return {"w_d": w_d, "w_ff2": raw["w_ff2"].astype(jnp.bfloat16), "vecs": vecs}


# ------------------------------------ main -----------------------------------
if __name__ == "__main__":
    key = jax.random.PRNGKey(0)
    k_tgt, k_mem, k_params = jax.random.split(key, 3)

    tgt = jax.random.normal(k_tgt, (B, S_TGT, D_MODEL), dtype=jnp.float32)
    memory = jax.random.normal(k_mem, (B, S_MEM, D_MODEL), dtype=jnp.float32)
    # causal mask for the target, full visibility of the memory
    tgt_mask = jnp.tril(jnp.ones((S_TGT, S_TGT), dtype=jnp.float32))
    memory_mask = jnp.ones((S_TGT, S_MEM), dtype=jnp.float32)

    raw_params = init_params(k_params, NUM_LAYERS, D_MODEL, D_FF)
    packed = prepare_params(raw_params, NUM_HEADS)

    out = decoder_forward(tgt, memory, tgt_mask, memory_mask, packed,
                          num_layers=NUM_LAYERS, num_heads=NUM_HEADS)
    out = jax.block_until_ready(out)

    ref = decoder_reference(tgt, memory, tgt_mask, memory_mask, packed,
                            num_layers=NUM_LAYERS, num_heads=NUM_HEADS)
    ref = jax.block_until_ready(ref)

    assert out.shape == (B, S_TGT, D_MODEL)
    # bf16 matmuls + approx reciprocal => slightly looser tolerance than pure f32
    assert jnp.allclose(out, ref, rtol=2e-2, atol=2e-2), "mismatch vs JAX reference"
    print("KERNEL_OK")
</pallas_src>

<mosaic_0001>
module attributes {stable_mosaic.version = 11 : i64} {
  func.func @_decoder_kernel(%arg0: memref<16x32xf32, #tpu.memory_space<vmem>>, %arg1: memref<16x32xf32, #tpu.memory_space<vmem>>, %arg2: memref<8x8xf32, #tpu.memory_space<vmem>>, %arg3: memref<2x32x320xbf16, #tpu.memory_space<vmem>>, %arg4: memref<2x64x32xbf16, #tpu.memory_space<vmem>>, %arg5: memref<2x13x128xf32, #tpu.memory_space<vmem>>, %arg6: memref<16x32xf32, #tpu.memory_space<vmem>>) attributes {dimension_semantics = [], scalar_prefetch = 0 : i64, scratch_operands = 0 : i64, tpu.core_type = #tpu.core_type<tc>} {
    %c0 = arith.constant 0 : index
    %c0_0 = arith.constant 0 : index
    %0 = vector.load %arg0[%c0, %c0_0] : memref<16x32xf32, #tpu.memory_space<vmem>>, vector<16x32xf32>
    %c0_1 = arith.constant 0 : index
    %c0_2 = arith.constant 0 : index
    %1 = vector.load %arg1[%c0_1, %c0_2] : memref<16x32xf32, #tpu.memory_space<vmem>>, vector<16x32xf32>
    %c0_3 = arith.constant 0 : index
    %c0_4 = arith.constant 0 : index
    %2 = vector.load %arg2[%c0_3, %c0_4] : memref<8x8xf32, #tpu.memory_space<vmem>>, vector<8x8xf32>
    %3 = arith.truncf %1 : vector<16x32xf32> to vector<16x32xbf16>
    %4 = vector.shape_cast %2 : vector<8x8xf32> to vector<1x8x8xf32>
    %c0_5 = arith.constant 0 : index
    %c0_6 = arith.constant 0 : index
    %c0_7 = arith.constant 0 : index
    %5 = vector.load %arg3[%c0_5, %c0_6, %c0_7] : memref<2x32x320xbf16, #tpu.memory_space<vmem>>, vector<1x32x320xbf16>
    %6 = vector.shape_cast %5 : vector<1x32x320xbf16> to vector<32x320xbf16>
    %c0_8 = arith.constant 0 : index
    %c0_9 = arith.constant 0 : index
    %c0_10 = arith.constant 0 : index
    %7 = vector.load %arg4[%c0_8, %c0_9, %c0_10] : memref<2x64x32xbf16, #tpu.memory_space<vmem>>, vector<1x64x32xbf16>
    %8 = vector.shape_cast %7 : vector<1x64x32xbf16> to vector<64x32xbf16>
    %c0_11 = arith.constant 0 : index
    %c0_12 = arith.constant 0 : index
    %c0_13 = arith.constant 0 : index
    %9 = vector.load %arg5[%c0_11, %c0_12, %c0_13] : memref<2x13x128xf32, #tpu.memory_space<vmem>>, vector<1x13x128xf32>
    %10 = vector.shape_cast %9 : vector<1x13x128xf32> to vector<13x128xf32>
    %11 = vector.extract_strided_slice %6 {offsets = [0, 0], sizes = [32, 96], strides = [1, 1]} : vector<32x320xbf16> to vector<32x96xbf16>
    %12 = vector.extract_strided_slice %6 {offsets = [0, 96], sizes = [32, 32], strides = [1, 1]} : vector<32x320xbf16> to vector<32x32xbf16>
    %13 = vector.extract_strided_slice %6 {offsets = [0, 128], sizes = [32, 64], strides = [1, 1]} : vector<32x320xbf16> to vector<32x64xbf16>
    %14 = vector.extract_strided_slice %6 {offsets = [0, 192], sizes = [32, 32], strides = [1, 1]} : vector<32x320xbf16> to vector<32x32xbf16>
    %15 = vector.extract_strided_slice %6 {offsets = [0, 224], sizes = [32, 32], strides = [1, 1]} : vector<32x320xbf16> to vector<32x32xbf16>
    %16 = vector.extract_strided_slice %6 {offsets = [0, 256], sizes = [32, 64], strides = [1, 1]} : vector<32x320xbf16> to vector<32x64xbf16>
    %17 = vector.extract_strided_slice %10 {offsets = [0, 0], sizes = [1, 96], strides = [1, 1]} : vector<13x128xf32> to vector<1x96xf32>
    %18 = vector.extract_strided_slice %10 {offsets = [1, 0], sizes = [1, 32], strides = [1, 1]} : vector<13x128xf32> to vector<1x32xf32>
    %19 = vector.extract_strided_slice %10 {offsets = [2, 0], sizes = [1, 32], strides = [1, 1]} : vector<13x128xf32> to vector<1x32xf32>
    %20 = vector.extract_strided_slice %10 {offsets = [3, 0], sizes = [1, 64], strides = [1, 1]} : vector<13x128xf32> to vector<1x64xf32>
    %21 = vector.extract_strided_slice %10 {offsets = [4, 0], sizes = [1, 32], strides = [1, 1]} : vector<13x128xf32> to vector<1x32xf32>
    %22 = vector.extract_strided_slice %10 {offsets = [5, 0], sizes = [1, 64], strides = [1, 1]} : vector<13x128xf32> to vector<1x64xf32>
    %23 = vector.extract_strided_slice %10 {offsets = [6, 0], sizes = [1, 32], strides = [1, 1]} : vector<13x128xf32> to vector<1x32xf32>
    %24 = vector.extract_strided_slice %10 {offsets = [7, 0], sizes = [1, 32], strides = [1, 1]} : vector<13x128xf32> to vector<1x32xf32>
    %25 = vector.extract_strided_slice %10 {offsets = [8, 0], sizes = [1, 32], strides = [1, 1]} : vector<13x128xf32> to vector<1x32xf32>
    %26 = vector.extract_strided_slice %10 {offsets = [9, 0], sizes = [1, 32], strides = [1, 1]} : vector<13x128xf32> to vector<1x32xf32>
    %27 = vector.extract_strided_slice %10 {offsets = [10, 0], sizes = [1, 32], strides = [1, 1]} : vector<13x128xf32> to vector<1x32xf32>
    %28 = vector.extract_strided_slice %10 {offsets = [11, 0], sizes = [1, 32], strides = [1, 1]} : vector<13x128xf32> to vector<1x32xf32>
    %29 = vector.extract_strided_slice %10 {offsets = [12, 0], sizes = [1, 32], strides = [1, 1]} : vector<13x128xf32> to vector<1x32xf32>
    %30 = arith.truncf %0 : vector<16x32xf32> to vector<16x32xbf16>
    %cst = arith.constant dense<0.000000e+00> : vector<16x96xf32>
    %31 = tpu.matmul %30, %11, %cst {dimension_numbers = #tpu.dot_dimension_numbers<[1], [0], [0], [1], [0, 0, 1, 1], [], []>} : vector<16x32xbf16>, vector<32x96xbf16>, vector<16x96xf32> -> vector<16x96xf32>
    %32 = vector.broadcast %17 : vector<1x96xf32> to vector<16x96xf32>
    %33 = arith.addf %31, %32 : vector<16x96xf32>
    %34 = vector.extract_strided_slice %33 {offsets = [0, 0], sizes = [16, 32], strides = [1, 1]} : vector<16x96xf32> to vector<16x32xf32>
    %35 = vector.extract_strided_slice %33 {offsets = [0, 32], sizes = [16, 32], strides = [1, 1]} : vector<16x96xf32> to vector<16x32xf32>
    %36 = vector.extract_strided_slice %33 {offsets = [0, 64], sizes = [16, 32], strides = [1, 1]} : vector<16x96xf32> to vector<16x32xf32>
    %37 = vector.extract_strided_slice %34 {offsets = [0, 0], sizes = [16, 8], strides = [1, 1]} : vector<16x32xf32> to vector<16x8xf32>
    %38 = vector.shape_cast %37 : vector<16x8xf32> to vector<2x1x8x8xf32>
    %39 = vector.extract_strided_slice %34 {offsets = [0, 8], sizes = [16, 8], strides = [1, 1]} : vector<16x32xf32> to vector<16x8xf32>
    %40 = vector.shape_cast %39 : vector<16x8xf32> to vector<2x1x8x8xf32>
    %41 = vector.extract_strided_slice %34 {offsets = [0, 16], sizes = [16, 8], strides = [1, 1]} : vector<16x32xf32> to vector<16x8xf32>
    %42 = vector.shape_cast %41 : vector<16x8xf32> to vector<2x1x8x8xf32>
    %43 = vector.extract_strided_slice %34 {offsets = [0, 24], sizes = [16, 8], strides = [1, 1]} : vector<16x32xf32> to vector<16x8xf32>
    %44 = vector.shape_cast %43 : vector<16x8xf32> to vector<2x1x8x8xf32>
    %45 = tpu.concatenate %38, %40, %42, %44 in 1 : vector<2x1x8x8xf32>, vector<2x1x8x8xf32>, vector<2x1x8x8xf32>, vector<2x1x8x8xf32> -> vector<2x4x8x8xf32>
    %46 = vector.shape_cast %45 : vector<2x4x8x8xf32> to vector<8x8x8xf32>
    %47 = arith.truncf %46 : vector<8x8x8xf32> to vector<8x8x8xbf16>
    %48 = vector.extract_strided_slice %35 {offsets = [0, 0], sizes = [16, 8], strides = [1, 1]} : vector<16x32xf32> to vector<16x8xf32>
    %49 = vector.shape_cast %48 : vector<16x8xf32> to vector<2x1x8x8xf32>
    %50 = vector.extract_strided_slice %35 {offsets = [0, 8], sizes = [16, 8], strides = [1, 1]} : vector<16x32xf32> to vector<16x8xf32>
    %51 = vector.shape_cast %50 : vector<16x8xf32> to vector<2x1x8x8xf32>
    %52 = vector.extract_strided_slice %35 {offsets = [0, 16], sizes = [16, 8], strides = [1, 1]} : vector<16x32xf32> to vector<16x8xf32>
    %53 = vector.shape_cast %52 : vector<16x8xf32> to vector<2x1x8x8xf32>
    %54 = vector.extract_strided_slice %35 {offsets = [0, 24], sizes = [16, 8], strides = [1, 1]} : vector<16x32xf32> to vector<16x8xf32>
    %55 = vector.shape_cast %54 : vector<16x8xf32> to vector<2x1x8x8xf32>
    %56 = tpu.concatenate %49, %51, %53, %55 in 1 : vector<2x1x8x8xf32>, vector<2x1x8x8xf32>, vector<2x1x8x8xf32>, vector<2x1x8x8xf32> -> vector<2x4x8x8xf32>
    %57 = vector.shape_cast %56 : vector<2x4x8x8xf32> to vector<8x8x8xf32>
    %58 = arith.truncf %57 : vector<8x8x8xf32> to vector<8x8x8xbf16>
    %59 = vector.extract_strided_slice %36 {offsets = [0, 0], sizes = [16, 8], strides = [1, 1]} : vector<16x32xf32> to vector<16x8xf32>
    %60 = vector.shape_cast %59 : vector<16x8xf32> to vector<2x1x8x8xf32>
    %61 = vector.extract_strided_slice %36 {offsets = [0, 8], sizes = [16, 8], strides = [1, 1]} : vector<16x32xf32> to vector<16x8xf32>
    %62 = vector.shape_cast %61 : vector<16x8xf32> to vector<2x1x8x8xf32>
    %63 = vector.extract_strided_slice %36 {offsets = [0, 16], sizes = [16, 8], strides = [1, 1]} : vector<16x32xf32> to vector<16x8xf32>
    %64 = vector.shape_cast %63 : vector<16x8xf32> to vector<2x1x8x8xf32>
    %65 = vector.extract_strided_slice %36 {offsets = [0, 24], sizes = [16, 8], strides = [1, 1]} : vector<16x32xf32> to vector<16x8xf32>
    %66 = vector.shape_cast %65 : vector<16x8xf32> to vector<2x1x8x8xf32>
    %67 = tpu.concatenate %60, %62, %64, %66 in 1 : vector<2x1x8x8xf32>, vector<2x1x8x8xf32>, vector<2x1x8x8xf32>, vector<2x1x8x8xf32> -> vector<2x4x8x8xf32>
    %68 = vector.shape_cast %67 : vector<2x4x8x8xf32> to vector<8x8x8xf32>
    %69 = arith.truncf %68 : vector<8x8x8xf32> to vector<8x8x8xbf16>
    "tpu.trace_start"() <{level = 10 : i32, message = "nqd,nkd->nqk"}> : () -> ()
    %cst_14 = arith.constant dense<0.000000e+00> : vector<8x8x8xf32>
    %70 = tpu.matmul %47, %58, %cst_14 {dimension_numbers = #tpu.dot_dimension_numbers<[2], [2], [1], [1], [0, 0, 0, 1, 1, 1], [0], [0]>} : vector<8x8x8xbf16>, vector<8x8x8xbf16>, vector<8x8x8xf32> -> vector<8x8x8xf32>
    "tpu.trace_stop"() : () -> ()
    %71 = vector.broadcast %4 : vector<1x8x8xf32> to vector<8x8x8xf32>
    %72 = arith.addf %70, %71 : vector<8x8x8xf32>
    %cst_15 = arith.constant dense<0xFF800000> : vector<8x8xf32>
    %73 = vector.multi_reduction <maximumf>, %72, %cst_15 [2] : vector<8x8x8xf32> to vector<8x8xf32>
    %74 = vector.shape_cast %73 : vector<8x8xf32> to vector<8x8x1xf32>
    %75 = vector.broadcast %74 : vector<8x8x1xf32> to vector<8x8x8xf32>
    %76 = arith.subf %72, %75 : vector<8x8x8xf32>
    %77 = math.exp %76 : vector<8x8x8xf32>
    %cst_16 = arith.constant dense<0.000000e+00> : vector<8x8xf32>
    %78 = vector.multi_reduction <add>, %77, %cst_16 [2] : vector<8x8x8xf32> to vector<8x8xf32>
    %79 = vector.shape_cast %78 : vector<8x8xf32> to vector<8x8x1xf32>
    %80 = tpu.reciprocal %79 {approx = true} : vector<8x8x1xf32> -> vector<8x8x1xf32>
    %81 = vector.broadcast %80 : vector<8x8x1xf32> to vector<8x8x8xf32>
    %82 = arith.mulf %77, %81 : vector<8x8x8xf32>
    %83 = arith.truncf %82 : vector<8x8x8xf32> to vector<8x8x8xbf16>
    "tpu.trace_start"() <{level = 10 : i32, message = "nqk,nkd->nqd"}> : () -> ()
    %cst_17 = arith.constant dense<0.000000e+00> : vector<8x8x8xf32>
    %84 = tpu.matmul %83, %69, %cst_17 {dimension_numbers = #tpu.dot_dimension_numbers<[2], [1], [1], [2], [0, 0, 0, 1, 1, 2], [0], [0]>} : vector<8x8x8xbf16>, vector<8x8x8xbf16>, vector<8x8x8xf32> -> vector<8x8x8xf32>
    "tpu.trace_stop"() : () -> ()
    %85 = vector.shape_cast %84 : vector<8x8x8xf32> to vector<2x4x8x8xf32>
    %86 = vector.extract_strided_slice %85 {offsets = [0, 0, 0, 0], sizes = [2, 1, 8, 8], strides = [1, 1, 1, 1]} : vector<2x4x8x8xf32> to vector<2x1x8x8xf32>
    %87 = vector.shape_cast %86 : vector<2x1x8x8xf32> to vector<2x8x8xf32>
    %88 = vector.extract_strided_slice %85 {offsets = [0, 1, 0, 0], sizes = [2, 1, 8, 8], strides = [1, 1, 1, 1]} : vector<2x4x8x8xf32> to vector<2x1x8x8xf32>
    %89 = vector.shape_cast %88 : vector<2x1x8x8xf32> to vector<2x8x8xf32>
    %90 = vector.extract_strided_slice %85 {offsets = [0, 2, 0, 0], sizes = [2, 1, 8, 8], strides = [1, 1, 1, 1]} : vector<2x4x8x8xf32> to vector<2x1x8x8xf32>
    %91 = vector.shape_cast %90 : vector<2x1x8x8xf32> to vector<2x8x8xf32>
    %92 = vector.extract_strided_slice %85 {offsets = [0, 3, 0, 0], sizes = [2, 1, 8, 8], strides = [1, 1, 1, 1]} : vector<2x4x8x8xf32> to vector<2x1x8x8xf32>
    %93 = vector.shape_cast %92 : vector<2x1x8x8xf32> to vector<2x8x8xf32>
    %94 = tpu.concatenate %87, %89, %91, %93 in 2 : vector<2x8x8xf32>, vector<2x8x8xf32>, vector<2x8x8xf32>, vector<2x8x8xf32> -> vector<2x8x32xf32>
    %95 = vector.shape_cast %94 : vector<2x8x32xf32> to vector<16x32xf32>
    %96 = arith.truncf %95 : vector<16x32xf32> to vector<16x32xbf16>
    %cst_18 = arith.constant dense<0.000000e+00> : vector<16x32xf32>
    %97 = tpu.matmul %96, %14, %cst_18 {dimension_numbers = #tpu.dot_dimension_numbers<[1], [0], [0], [1], [0, 0, 1, 1], [], []>} : vector<16x32xbf16>, vector<32x32xbf16>, vector<16x32xf32> -> vector<16x32xf32>
    %98 = vector.broadcast %18 : vector<1x32xf32> to vector<16x32xf32>
    %99 = arith.addf %97, %98 : vector<16x32xf32>
    %100 = arith.addf %0, %99 : vector<16x32xf32>
    %cst_19 = arith.constant dense<0.000000e+00> : vector<16xf32>
    %101 = vector.multi_reduction <add>, %100, %cst_19 [1] : vector<16x32xf32> to vector<16xf32>
    %102 = vector.shape_cast %101 : vector<16xf32> to vector<16x1xf32>
    %cst_20 = arith.constant 3.200000e+01 : f32
    %103 = vector.broadcast %cst_20 : f32 to vector<16x1xf32>
    %104 = arith.divf %102, %103 : vector<16x1xf32>
    %105 = vector.broadcast %104 : vector<16x1xf32> to vector<16x32xf32>
    %106 = arith.subf %100, %105 : vector<16x32xf32>
    %107 = arith.mulf %106, %106 : vector<16x32xf32>
    %cst_21 = arith.constant dense<0.000000e+00> : vector<16xf32>
    %108 = vector.multi_reduction <add>, %107, %cst_21 [1] : vector<16x32xf32> to vector<16xf32>
    %109 = vector.shape_cast %108 : vector<16xf32> to vector<16x1xf32>
    %cst_22 = arith.constant 3.200000e+01 : f32
    %110 = vector.broadcast %cst_22 : f32 to vector<16x1xf32>
    %111 = arith.divf %109, %110 : vector<16x1xf32>
    %112 = vector.broadcast %104 : vector<16x1xf32> to vector<16x32xf32>
    %113 = arith.subf %100, %112 : vector<16x32xf32>
    %cst_23 = arith.constant 9.99999974E-6 : f32
    %114 = vector.broadcast %cst_23 : f32 to vector<16x1xf32>
    %115 = arith.addf %111, %114 : vector<16x1xf32>
    %116 = math.rsqrt %115 : vector<16x1xf32>
    %117 = vector.broadcast %116 : vector<16x1xf32> to vector<16x32xf32>
    %118 = arith.mulf %113, %117 : vector<16x32xf32>
    %119 = vector.broadcast %24 : vector<1x32xf32> to vector<16x32xf32>
    %120 = arith.mulf %118, %119 : vector<16x32xf32>
    %121 = vector.broadcast %25 : vector<1x32xf32> to vector<16x32xf32>
    %122 = arith.addf %120, %121 : vector<16x32xf32>
    %123 = arith.truncf %122 : vector<16x32xf32> to vector<16x32xbf16>
    %cst_24 = arith.constant dense<0.000000e+00> : vector<16x32xf32>
    %124 = tpu.matmul %123, %12, %cst_24 {dimension_numbers = #tpu.dot_dimension_numbers<[1], [0], [0], [1], [0, 0, 1, 1], [], []>} : vector<16x32xbf16>, vector<32x32xbf16>, vector<16x32xf32> -> vector<16x32xf32>
    %125 = vector.broadcast %19 : vector<1x32xf32> to vector<16x32xf32>
    %126 = arith.addf %124, %125 : vector<16x32xf32>
    %cst_25 = arith.constant dense<0.000000e+00> : vector<16x64xf32>
    %127 = tpu.matmul %3, %13, %cst_25 {dimension_numbers = #tpu.dot_dimension_numbers<[1], [0], [0], [1], [0, 0, 1, 1], [], []>} : vector<16x32xbf16>, vector<32x64xbf16>, vector<16x64xf32> -> vector<16x64xf32>
    %128 = vector.broadcast %20 : vector<1x64xf32> to vector<16x64xf32>
    %129 = arith.addf %127, %128 : vector<16x64xf32>
    %130 = vector.extract_strided_slice %129 {offsets = [0, 0], sizes = [16, 32], strides = [1, 1]} : vector<16x64xf32> to vector<16x32xf32>
    %131 = vector.extract_strided_slice %129 {offsets = [0, 32], sizes = [16, 32], strides = [1, 1]} : vector<16x64xf32> to vector<16x32xf32>
    %132 = vector.extract_strided_slice %126 {offsets = [0, 0], sizes = [16, 8], strides = [1, 1]} : vector<16x32xf32> to vector<16x8xf32>
    %133 = vector.shape_cast %132 : vector<16x8xf32> to vector<2x1x8x8xf32>
    %134 = vector.extract_strided_slice %126 {offsets = [0, 8], sizes = [16, 8], strides = [1, 1]} : vector<16x32xf32> to vector<16x8xf32>
    %135 = vector.shape_cast %134 : vector<16x8xf32> to vector<2x1x8x8xf32>
    %136 = vector.extract_strided_slice %126 {offsets = [0, 16], sizes = [16, 8], strides = [1, 1]} : vector<16x32xf32> to vector<16x8xf32>
    %137 = vector.shape_cast %136 : vector<16x8xf32> to vector<2x1x8x8xf32>
    %138 = vector.extract_strided_slice %126 {offsets = [0, 24], sizes = [16, 8], strides = [1, 1]} : vector<16x32xf32> to vector<16x8xf32>
    %139 = vector.shape_cast %138 : vector<16x8xf32> to vector<2x1x8x8xf32>
    %140 = tpu.concatenate %133, %135, %137, %139 in 1 : vector<2x1x8x8xf32>, vector<2x1x8x8xf32>, vector<2x1x8x8xf32>, vector<2x1x8x8xf32> -> vector<2x4x8x8xf32>
    %141 = vector.shape_cast %140 : vector<2x4x8x8xf32> to vector<8x8x8xf32>
    %142 = arith.truncf %141 : vector<8x8x8xf32> to vector<8x8x8xbf16>
    %143 = vector.extract_strided_slice %130 {offsets = [0, 0], sizes = [16, 8], strides = [1, 1]} : vector<16x32xf32> to vector<16x8xf32>
    %144 = vector.shape_cast %143 : vector<16x8xf32> to vector<2x1x8x8xf32>
    %145 = vector.extract_strided_slice %130 {offsets = [0, 8], sizes = [16, 8], strides = [1, 1]} : vector<16x32xf32> to vector<16x8xf32>
    %146 = vector.shape_cast %145 : vector<16x8xf32> to vector<2x1x8x8xf32>
    %147 = vector.extract_strided_slice %130 {offsets = [0, 16], sizes = [16, 8], strides = [1, 1]} : vector<16x32xf32> to vector<16x8xf32>
    %148 = vector.shape_cast %147 : vector<16x8xf32> to vector<2x1x8x8xf32>
    %149 = vector.extract_strided_slice %130 {offsets = [0, 24], sizes = [16, 8], strides = [1, 1]} : vector<16x32xf32> to vector<16x8xf32>
    %150 = vector.shape_cast %149 : vector<16x8xf32> to vector<2x1x8x8xf32>
    %151 = tpu.concatenate %144, %146, %148, %150 in 1 : vector<2x1x8x8xf32>, vector<2x1x8x8xf32>, vector<2x1x8x8xf32>, vector<2x1x8x8xf32> -> vector<2x4x8x8xf32>
    %152 = vector.shape_cast %151 : vector<2x4x8x8xf32> to vector<8x8x8xf32>
    %153 = arith.truncf %152 : vector<8x8x8xf32> to vector<8x8x8xbf16>
    %154 = vector.extract_strided_slice %131 {offsets = [0, 0], sizes = [16, 8], strides = [1, 1]} : vector<16x32xf32> to vector<16x8xf32>
    %155 = vector.shape_cast %154 : vector<16x8xf32> to vector<2x1x8x8xf32>
    %156 = vector.extract_strided_slice %131 {offsets = [0, 8], sizes = [16, 8], strides = [1, 1]} : vector<16x32xf32> to vector<16x8xf32>
    %157 = vector.shape_cast %156 : vector<16x8xf32> to vector<2x1x8x8xf32>
    %158 = vector.extract_strided_slice %131 {offsets = [0, 16], sizes = [16, 8], strides = [1, 1]} : vector<16x32xf32> to vector<16x8xf32>
    %159 = vector.shape_cast %158 : vector<16x8xf32> to vector<2x1x8x8xf32>
    %160 = vector.extract_strided_slice %131 {offsets = [0, 24], sizes = [16, 8], strides = [1, 1]} : vector<16x32xf32> to vector<16x8xf32>
    %161 = vector.shape_cast %160 : vector<16x8xf32> to vector<2x1x8x8xf32>
    %162 = tpu.concatenate %155, %157, %159, %161 in 1 : vector<2x1x8x8xf32>, vector<2x1x8x8xf32>, vector<2x1x8x8xf32>, vector<2x1x8x8xf32> -> vector<2x4x8x8xf32>
    %163 = vector.shape_cast %162 : vector<2x4x8x8xf32> to vector<8x8x8xf32>
    %164 = arith.truncf %163 : vector<8x8x8xf32> to vector<8x8x8xbf16>
    "tpu.trace_start"() <{level = 10 : i32, message = "nqd,nkd->nqk"}> : () -> ()
    %cst_26 = arith.constant dense<0.000000e+00> : vector<8x8x8xf32>
    %165 = tpu.matmul %142, %153, %cst_26 {dimension_numbers = #tpu.dot_dimension_numbers<[2], [2], [1], [1], [0, 0, 0, 1, 1, 1], [0], [0]>} : vector<8x8x8xbf16>, vector<8x8x8xbf16>, vector<8x8x8xf32> -> vector<8x8x8xf32>
    "tpu.trace_stop"() : () -> ()
    %cst_27 = arith.constant dense<0xFF800000> : vector<8x8xf32>
    %166 = vector.multi_reduction <maximumf>, %165, %cst_27 [2] : vector<8x8x8xf32> to vector<8x8xf32>
    %167 = vector.shape_cast %166 : vector<8x8xf32> to vector<8x8x1xf32>
    %168 = vector.broadcast %167 : vector<8x8x1xf32> to vector<8x8x8xf32>
    %169 = arith.subf %165, %168 : vector<8x8x8xf32>
    %170 = math.exp %169 : vector<8x8x8xf32>
    %cst_28 = arith.constant dense<0.000000e+00> : vector<8x8xf32>
    %171 = vector.multi_reduction <add>, %170, %cst_28 [2] : vector<8x8x8xf32> to vector<8x8xf32>
    %172 = vector.shape_cast %171 : vector<8x8xf32> to vector<8x8x1xf32>
    %173 = tpu.reciprocal %172 {approx = true} : vector<8x8x1xf32> -> vector<8x8x1xf32>
    %174 = vector.broadcast %173 : vector<8x8x1xf32> to vector<8x8x8xf32>
    %175 = arith.mulf %170, %174 : vector<8x8x8xf32>
    %176 = arith.truncf %175 : vector<8x8x8xf32> to vector<8x8x8xbf16>
    "tpu.trace_start"() <{level = 10 : i32, message = "nqk,nkd->nqd"}> : () -> ()
    %cst_29 = arith.constant dense<0.000000e+00> : vector<8x8x8xf32>
    %177 = tpu.matmul %176, %164, %cst_29 {dimension_numbers = #tpu.dot_dimension_numbers<[2], [1], [1], [2], [0, 0, 0, 1, 1, 2], [0], [0]>} : vector<8x8x8xbf16>, vector<8x8x8xbf16>, vector<8x8x8xf32> -> vector<8x8x8xf32>
    "tpu.trace_stop"() : () -> ()
    %178 = vector.shape_cast %177 : vector<8x8x8xf32> to vector<2x4x8x8xf32>
    %179 = vector.extract_strided_slice %178 {offsets = [0, 0, 0, 0], sizes = [2, 1, 8, 8], strides = [1, 1, 1, 1]} : vector<2x4x8x8xf32> to vector<2x1x8x8xf32>
    %180 = vector.shape_cast %179 : vector<2x1x8x8xf32> to vector<2x8x8xf32>
    %181 = vector.extract_strided_slice %178 {offsets = [0, 1, 0, 0], sizes = [2, 1, 8, 8], strides = [1, 1, 1, 1]} : vector<2x4x8x8xf32> to vector<2x1x8x8xf32>
    %182 = vector.shape_cast %181 : vector<2x1x8x8xf32> to vector<2x8x8xf32>
    %183 = vector.extract_strided_slice %178 {offsets = [0, 2, 0, 0], sizes = [2, 1, 8, 8], strides = [1, 1, 1, 1]} : vector<2x4x8x8xf32> to vector<2x1x8x8xf32>
    %184 = vector.shape_cast %183 : vector<2x1x8x8xf32> to vector<2x8x8xf32>
    %185 = vector.extract_strided_slice %178 {offsets = [0, 3, 0, 0], sizes = [2, 1, 8, 8], strides = [1, 1, 1, 1]} : vector<2x4x8x8xf32> to vector<2x1x8x8xf32>
    %186 = vector.shape_cast %185 : vector<2x1x8x8xf32> to vector<2x8x8xf32>
    %187 = tpu.concatenate %180, %182, %184, %186 in 2 : vector<2x8x8xf32>, vector<2x8x8xf32>, vector<2x8x8xf32>, vector<2x8x8xf32> -> vector<2x8x32xf32>
    %188 = vector.shape_cast %187 : vector<2x8x32xf32> to vector<16x32xf32>
    %189 = arith.truncf %188 : vector<16x32xf32> to vector<16x32xbf16>
    %cst_30 = arith.constant dense<0.000000e+00> : vector<16x32xf32>
    %190 = tpu.matmul %189, %15, %cst_30 {dimension_numbers = #tpu.dot_dimension_numbers<[1], [0], [0], [1], [0, 0, 1, 1], [], []>} : vector<16x32xbf16>, vector<32x32xbf16>, vector<16x32xf32> -> vector<16x32xf32>
    %191 = vector.broadcast %21 : vector<1x32xf32> to vector<16x32xf32>
    %192 = arith.addf %190, %191 : vector<16x32xf32>
    %193 = arith.addf %122, %192 : vector<16x32xf32>
    %cst_31 = arith.constant dense<0.000000e+00> : vector<16xf32>
    %194 = vector.multi_reduction <add>, %193, %cst_31 [1] : vector<16x32xf32> to vector<16xf32>
    %195 = vector.shape_cast %194 : vector<16xf32> to vector<16x1xf32>
    %cst_32 = arith.constant 3.200000e+01 : f32
    %196 = vector.broadcast %cst_32 : f32 to vector<16x1xf32>
    %197 = arith.divf %195, %196 : vector<16x1xf32>
    %198 = vector.broadcast %197 : vector<16x1xf32> to vector<16x32xf32>
    %199 = arith.subf %193, %198 : vector<16x32xf32>
    %200 = arith.mulf %199, %199 : vector<16x32xf32>
    %cst_33 = arith.constant dense<0.000000e+00> : vector<16xf32>
    %201 = vector.multi_reduction <add>, %200, %cst_33 [1] : vector<16x32xf32> to vector<16xf32>
    %202 = vector.shape_cast %201 : vector<16xf32> to vector<16x1xf32>
    %cst_34 = arith.constant 3.200000e+01 : f32
    %203 = vector.broadcast %cst_34 : f32 to vector<16x1xf32>
    %204 = arith.divf %202, %203 : vector<16x1xf32>
    %205 = vector.broadcast %197 : vector<16x1xf32> to vector<16x32xf32>
    %206 = arith.subf %193, %205 : vector<16x32xf32>
    %cst_35 = arith.constant 9.99999974E-6 : f32
    %207 = vector.broadcast %cst_35 : f32 to vector<16x1xf32>
    %208 = arith.addf %204, %207 : vector<16x1xf32>
    %209 = math.rsqrt %208 : vector<16x1xf32>
    %210 = vector.broadcast %209 : vector<16x1xf32> to vector<16x32xf32>
    %211 = arith.mulf %206, %210 : vector<16x32xf32>
    %212 = vector.broadcast %26 : vector<1x32xf32> to vector<16x32xf32>
    %213 = arith.mulf %211, %212 : vector<16x32xf32>
    %214 = vector.broadcast %27 : vector<1x32xf32> to vector<16x32xf32>
    %215 = arith.addf %213, %214 : vector<16x32xf32>
    %216 = arith.truncf %215 : vector<16x32xf32> to vector<16x32xbf16>
    %cst_36 = arith.constant dense<0.000000e+00> : vector<16x64xf32>
    %217 = tpu.matmul %216, %16, %cst_36 {dimension_numbers = #tpu.dot_dimension_numbers<[1], [0], [0], [1], [0, 0, 1, 1], [], []>} : vector<16x32xbf16>, vector<32x64xbf16>, vector<16x64xf32> -> vector<16x64xf32>
    %218 = vector.broadcast %22 : vector<1x64xf32> to vector<16x64xf32>
    %219 = arith.addf %217, %218 : vector<16x64xf32>
    %cst_37 = arith.constant 0.000000e+00 : f32
    %220 = vector.broadcast %cst_37 : f32 to vector<16x64xf32>
    %221 = arith.maximumf %219, %220 : vector<16x64xf32>
    %222 = arith.truncf %221 : vector<16x64xf32> to vector<16x64xbf16>
    %cst_38 = arith.constant dense<0.000000e+00> : vector<16x32xf32>
    %223 = tpu.matmul %222, %8, %cst_38 {dimension_numbers = #tpu.dot_dimension_numbers<[1], [0], [0], [1], [0, 0, 1, 1], [], []>} : vector<16x64xbf16>, vector<64x32xbf16>, vector<16x32xf32> -> vector<16x32xf32>
    %224 = vector.broadcast %23 : vector<1x32xf32> to vector<16x32xf32>
    %225 = arith.addf %223, %224 : vector<16x32xf32>
    %226 = arith.addf %215, %225 : vector<16x32xf32>
    %cst_39 = arith.constant dense<0.000000e+00> : vector<16xf32>
    %227 = vector.multi_reduction <add>, %226, %cst_39 [1] : vector<16x32xf32> to vector<16xf32>
    %228 = vector.shape_cast %227 : vector<16xf32> to vector<16x1xf32>
    %cst_40 = arith.constant 3.200000e+01 : f32
    %229 = vector.broadcast %cst_40 : f32 to vector<16x1xf32>
    %230 = arith.divf %228, %229 : vector<16x1xf32>
    %231 = vector.broadcast %230 : vector<16x1xf32> to vector<16x32xf32>
    %232 = arith.subf %226, %231 : vector<16x32xf32>
    %233 = arith.mulf %232, %232 : vector<16x32xf32>
    %cst_41 = arith.constant dense<0.000000e+00> : vector<16xf32>
    %234 = vector.multi_reduction <add>, %233, %cst_41 [1] : vector<16x32xf32> to vector<16xf32>
    %235 = vector.shape_cast %234 : vector<16xf32> to vector<16x1xf32>
    %cst_42 = arith.constant 3.200000e+01 : f32
    %236 = vector.broadcast %cst_42 : f32 to vector<16x1xf32>
    %237 = arith.divf %235, %236 : vector<16x1xf32>
    %238 = vector.broadcast %230 : vector<16x1xf32> to vector<16x32xf32>
    %239 = arith.subf %226, %238 : vector<16x32xf32>
    %cst_43 = arith.constant 9.99999974E-6 : f32
    %240 = vector.broadcast %cst_43 : f32 to vector<16x1xf32>
    %241 = arith.addf %237, %240 : vector<16x1xf32>
    %242 = math.rsqrt %241 : vector<16x1xf32>
    %243 = vector.broadcast %242 : vector<16x1xf32> to vector<16x32xf32>
    %244 = arith.mulf %239, %243 : vector<16x32xf32>
    %245 = vector.broadcast %28 : vector<1x32xf32> to vector<16x32xf32>
    %246 = arith.mulf %244, %245 : vector<16x32xf32>
    %247 = vector.broadcast %29 : vector<1x32xf32> to vector<16x32xf32>
    %248 = arith.addf %246, %247 : vector<16x32xf32>
    %c1 = arith.constant 1 : index
    %c0_44 = arith.constant 0 : index
    %c0_45 = arith.constant 0 : index
    %249 = vector.load %arg3[%c1, %c0_44, %c0_45] : memref<2x32x320xbf16, #tpu.memory_space<vmem>>, vector<1x32x320xbf16>
    %250 = vector.shape_cast %249 : vector<1x32x320xbf16> to vector<32x320xbf16>
    %c1_46 = arith.constant 1 : index
    %c0_47 = arith.constant 0 : index
    %c0_48 = arith.constant 0 : index
    %251 = vector.load %arg4[%c1_46, %c0_47, %c0_48] : memref<2x64x32xbf16, #tpu.memory_space<vmem>>, vector<1x64x32xbf16>
    %252 = vector.shape_cast %251 : vector<1x64x32xbf16> to vector<64x32xbf16>
    %c1_49 = arith.constant 1 : index
    %c0_50 = arith.constant 0 : index
    %c0_51 = arith.constant 0 : index
    %253 = vector.load %arg5[%c1_49, %c0_50, %c0_51] : memref<2x13x128xf32, #tpu.memory_space<vmem>>, vector<1x13x128xf32>
    %254 = vector.shape_cast %253 : vector<1x13x128xf32> to vector<13x128xf32>
    %255 = vector.extract_strided_slice %250 {offsets = [0, 0], sizes = [32, 96], strides = [1, 1]} : vector<32x320xbf16> to vector<32x96xbf16>
    %256 = vector.extract_strided_slice %250 {offsets = [0, 96], sizes = [32, 32], strides = [1, 1]} : vector<32x320xbf16> to vector<32x32xbf16>
    %257 = vector.extract_strided_slice %250 {offsets = [0, 128], sizes = [32, 64], strides = [1, 1]} : vector<32x320xbf16> to vector<32x64xbf16>
    %258 = vector.extract_strided_slice %250 {offsets = [0, 192], sizes = [32, 32], strides = [1, 1]} : vector<32x320xbf16> to vector<32x32xbf16>
    %259 = vector.extract_strided_slice %250 {offsets = [0, 224], sizes = [32, 32], strides = [1, 1]} : vector<32x320xbf16> to vector<32x32xbf16>
    %260 = vector.extract_strided_slice %250 {offsets = [0, 256], sizes = [32, 64], strides = [1, 1]} : vector<32x320xbf16> to vector<32x64xbf16>
    %261 = vector.extract_strided_slice %254 {offsets = [0, 0], sizes = [1, 96], strides = [1, 1]} : vector<13x128xf32> to vector<1x96xf32>
    %262 = vector.extract_strided_slice %254 {offsets = [1, 0], sizes = [1, 32], strides = [1, 1]} : vector<13x128xf32> to vector<1x32xf32>
    %263 = vector.extract_strided_slice %254 {offsets = [2, 0], sizes = [1, 32], strides = [1, 1]} : vector<13x128xf32> to vector<1x32xf32>
    %264 = vector.extract_strided_slice %254 {offsets = [3, 0], sizes = [1, 64], strides = [1, 1]} : vector<13x128xf32> to vector<1x64xf32>
    %265 = vector.extract_strided_slice %254 {offsets = [4, 0], sizes = [1, 32], strides = [1, 1]} : vector<13x128xf32> to vector<1x32xf32>
    %266 = vector.extract_strided_slice %254 {offsets = [5, 0], sizes = [1, 64], strides = [1, 1]} : vector<13x128xf32> to vector<1x64xf32>
    %267 = vector.extract_strided_slice %254 {offsets = [6, 0], sizes = [1, 32], strides = [1, 1]} : vector<13x128xf32> to vector<1x32xf32>
    %268 = vector.extract_strided_slice %254 {offsets = [7, 0], sizes = [1, 32], strides = [1, 1]} : vector<13x128xf32> to vector<1x32xf32>
    %269 = vector.extract_strided_slice %254 {offsets = [8, 0], sizes = [1, 32], strides = [1, 1]} : vector<13x128xf32> to vector<1x32xf32>
    %270 = vector.extract_strided_slice %254 {offsets = [9, 0], sizes = [1, 32], strides = [1, 1]} : vector<13x128xf32> to vector<1x32xf32>
    %271 = vector.extract_strided_slice %254 {offsets = [10, 0], sizes = [1, 32], strides = [1, 1]} : vector<13x128xf32> to vector<1x32xf32>
    %272 = vector.extract_strided_slice %254 {offsets = [11, 0], sizes = [1, 32], strides = [1, 1]} : vector<13x128xf32> to vector<1x32xf32>
    %273 = vector.extract_strided_slice %254 {offsets = [12, 0], sizes = [1, 32], strides = [1, 1]} : vector<13x128xf32> to vector<1x32xf32>
    %274 = arith.truncf %248 : vector<16x32xf32> to vector<16x32xbf16>
    %cst_52 = arith.constant dense<0.000000e+00> : vector<16x96xf32>
    %275 = tpu.matmul %274, %255, %cst_52 {dimension_numbers = #tpu.dot_dimension_numbers<[1], [0], [0], [1], [0, 0, 1, 1], [], []>} : vector<16x32xbf16>, vector<32x96xbf16>, vector<16x96xf32> -> vector<16x96xf32>
    %276 = vector.broadcast %261 : vector<1x96xf32> to vector<16x96xf32>
    %277 = arith.addf %275, %276 : vector<16x96xf32>
    %278 = vector.extract_strided_slice %277 {offsets = [0, 0], sizes = [16, 32], strides = [1, 1]} : vector<16x96xf32> to vector<16x32xf32>
    %279 = vector.extract_strided_slice %277 {offsets = [0, 32], sizes = [16, 32], strides = [1, 1]} : vector<16x96xf32> to vector<16x32xf32>
    %280 = vector.extract_strided_slice %277 {offsets = [0, 64], sizes = [16, 32], strides = [1, 1]} : vector<16x96xf32> to vector<16x32xf32>
    %281 = vector.extract_strided_slice %278 {offsets = [0, 0], sizes = [16, 8], strides = [1, 1]} : vector<16x32xf32> to vector<16x8xf32>
    %282 = vector.shape_cast %281 : vector<16x8xf32> to vector<2x1x8x8xf32>
    %283 = vector.extract_strided_slice %278 {offsets = [0, 8], sizes = [16, 8], strides = [1, 1]} : vector<16x32xf32> to vector<16x8xf32>
    %284 = vector.shape_cast %283 : vector<16x8xf32> to vector<2x1x8x8xf32>
    %285 = vector.extract_strided_slice %278 {offsets = [0, 16], sizes = [16, 8], strides = [1, 1]} : vector<16x32xf32> to vector<16x8xf32>
    %286 = vector.shape_cast %285 : vector<16x8xf32> to vector<2x1x8x8xf32>
    %287 = vector.extract_strided_slice %278 {offsets = [0, 24], sizes = [16, 8], strides = [1, 1]} : vector<16x32xf32> to vector<16x8xf32>
    %288 = vector.shape_cast %287 : vector<16x8xf32> to vector<2x1x8x8xf32>
    %289 = tpu.concatenate %282, %284, %286, %288 in 1 : vector<2x1x8x8xf32>, vector<2x1x8x8xf32>, vector<2x1x8x8xf32>, vector<2x1x8x8xf32> -> vector<2x4x8x8xf32>
    %290 = vector.shape_cast %289 : vector<2x4x8x8xf32> to vector<8x8x8xf32>
    %291 = arith.truncf %290 : vector<8x8x8xf32> to vector<8x8x8xbf16>
    %292 = vector.extract_strided_slice %279 {offsets = [0, 0], sizes = [16, 8], strides = [1, 1]} : vector<16x32xf32> to vector<16x8xf32>
    %293 = vector.shape_cast %292 : vector<16x8xf32> to vector<2x1x8x8xf32>
    %294 = vector.extract_strided_slice %279 {offsets = [0, 8], sizes = [16, 8], strides = [1, 1]} : vector<16x32xf32> to vector<16x8xf32>
    %295 = vector.shape_cast %294 : vector<16x8xf32> to vector<2x1x8x8xf32>
    %296 = vector.extract_strided_slice %279 {offsets = [0, 16], sizes = [16, 8], strides = [1, 1]} : vector<16x32xf32> to vector<16x8xf32>
    %297 = vector.shape_cast %296 : vector<16x8xf32> to vector<2x1x8x8xf32>
    %298 = vector.extract_strided_slice %279 {offsets = [0, 24], sizes = [16, 8], strides = [1, 1]} : vector<16x32xf32> to vector<16x8xf32>
    %299 = vector.shape_cast %298 : vector<16x8xf32> to vector<2x1x8x8xf32>
    %300 = tpu.concatenate %293, %295, %297, %299 in 1 : vector<2x1x8x8xf32>, vector<2x1x8x8xf32>, vector<2x1x8x8xf32>, vector<2x1x8x8xf32> -> vector<2x4x8x8xf32>
    %301 = vector.shape_cast %300 : vector<2x4x8x8xf32> to vector<8x8x8xf32>
    %302 = arith.truncf %301 : vector<8x8x8xf32> to vector<8x8x8xbf16>
    %303 = vector.extract_strided_slice %280 {offsets = [0, 0], sizes = [16, 8], strides = [1, 1]} : vector<16x32xf32> to vector<16x8xf32>
    %304 = vector.shape_cast %303 : vector<16x8xf32> to vector<2x1x8x8xf32>
    %305 = vector.extract_strided_slice %280 {offsets = [0, 8], sizes = [16, 8], strides = [1, 1]} : vector<16x32xf32> to vector<16x8xf32>
    %306 = vector.shape_cast %305 : vector<16x8xf32> to vector<2x1x8x8xf32>
    %307 = vector.extract_strided_slice %280 {offsets = [0, 16], sizes = [16, 8], strides = [1, 1]} : vector<16x32xf32> to vector<16x8xf32>
    %308 = vector.shape_cast %307 : vector<16x8xf32> to vector<2x1x8x8xf32>
    %309 = vector.extract_strided_slice %280 {offsets = [0, 24], sizes = [16, 8], strides = [1, 1]} : vector<16x32xf32> to vector<16x8xf32>
    %310 = vector.shape_cast %309 : vector<16x8xf32> to vector<2x1x8x8xf32>
    %311 = tpu.concatenate %304, %306, %308, %310 in 1 : vector<2x1x8x8xf32>, vector<2x1x8x8xf32>, vector<2x1x8x8xf32>, vector<2x1x8x8xf32> -> vector<2x4x8x8xf32>
    %312 = vector.shape_cast %311 : vector<2x4x8x8xf32> to vector<8x8x8xf32>
    %313 = arith.truncf %312 : vector<8x8x8xf32> to vector<8x8x8xbf16>
    "tpu.trace_start"() <{level = 10 : i32, message = "nqd,nkd->nqk"}> : () -> ()
    %cst_53 = arith.constant dense<0.000000e+00> : vector<8x8x8xf32>
    %314 = tpu.matmul %291, %302, %cst_53 {dimension_numbers = #tpu.dot_dimension_numbers<[2], [2], [1], [1], [0, 0, 0, 1, 1, 1], [0], [0]>} : vector<8x8x8xbf16>, vector<8x8x8xbf16>, vector<8x8x8xf32> -> vector<8x8x8xf32>
    "tpu.trace_stop"() : () -> ()
    %315 = vector.broadcast %4 : vector<1x8x8xf32> to vector<8x8x8xf32>
    %316 = arith.addf %314, %315 : vector<8x8x8xf32>
    %cst_54 = arith.constant dense<0xFF800000> : vector<8x8xf32>
    %317 = vector.multi_reduction <maximumf>, %316, %cst_54 [2] : vector<8x8x8xf32> to vector<8x8xf32>
    %318 = vector.shape_cast %317 : vector<8x8xf32> to vector<8x8x1xf32>
    %319 = vector.broadcast %318 : vector<8x8x1xf32> to vector<8x8x8xf32>
    %320 = arith.subf %316, %319 : vector<8x8x8xf32>
    %321 = math.exp %320 : vector<8x8x8xf32>
    %cst_55 = arith.constant dense<0.000000e+00> : vector<8x8xf32>
    %322 = vector.multi_reduction <add>, %321, %cst_55 [2] : vector<8x8x8xf32> to vector<8x8xf32>
    %323 = vector.shape_cast %322 : vector<8x8xf32> to vector<8x8x1xf32>
    %324 = tpu.reciprocal %323 {approx = true} : vector<8x8x1xf32> -> vector<8x8x1xf32>
    %325 = vector.broadcast %324 : vector<8x8x1xf32> to vector<8x8x8xf32>
    %326 = arith.mulf %321, %325 : vector<8x8x8xf32>
    %327 = arith.truncf %326 : vector<8x8x8xf32> to vector<8x8x8xbf16>
    "tpu.trace_start"() <{level = 10 : i32, message = "nqk,nkd->nqd"}> : () -> ()
    %cst_56 = arith.constant dense<0.000000e+00> : vector<8x8x8xf32>
    %328 = tpu.matmul %327, %313, %cst_56 {dimension_numbers = #tpu.dot_dimension_numbers<[2], [1], [1], [2], [0, 0, 0, 1, 1, 2], [0], [0]>} : vector<8x8x8xbf16>, vector<8x8x8xbf16>, vector<8x8x8xf32> -> vector<8x8x8xf32>
    "tpu.trace_stop"() : () -> ()
    %329 = vector.shape_cast %328 : vector<8x8x8xf32> to vector<2x4x8x8xf32>
    %330 = vector.extract_strided_slice %329 {offsets = [0, 0, 0, 0], sizes = [2, 1, 8, 8], strides = [1, 1, 1, 1]} : vector<2x4x8x8xf32> to vector<2x1x8x8xf32>
    %331 = vector.shape_cast %330 : vector<2x1x8x8xf32> to vector<2x8x8xf32>
    %332 = vector.extract_strided_slice %329 {offsets = [0, 1, 0, 0], sizes = [2, 1, 8, 8], strides = [1, 1, 1, 1]} : vector<2x4x8x8xf32> to vector<2x1x8x8xf32>
    %333 = vector.shape_cast %332 : vector<2x1x8x8xf32> to vector<2x8x8xf32>
    %334 = vector.extract_strided_slice %329 {offsets = [0, 2, 0, 0], sizes = [2, 1, 8, 8], strides = [1, 1, 1, 1]} : vector<2x4x8x8xf32> to vector<2x1x8x8xf32>
    %335 = vector.shape_cast %334 : vector<2x1x8x8xf32> to vector<2x8x8xf32>
    %336 = vector.extract_strided_slice %329 {offsets = [0, 3, 0, 0], sizes = [2, 1, 8, 8], strides = [1, 1, 1, 1]} : vector<2x4x8x8xf32> to vector<2x1x8x8xf32>
    %337 = vector.shape_cast %336 : vector<2x1x8x8xf32> to vector<2x8x8xf32>
    %338 = tpu.concatenate %331, %333, %335, %337 in 2 : vector<2x8x8xf32>, vector<2x8x8xf32>, vector<2x8x8xf32>, vector<2x8x8xf32> -> vector<2x8x32xf32>
    %339 = vector.shape_cast %338 : vector<2x8x32xf32> to vector<16x32xf32>
    %340 = arith.truncf %339 : vector<16x32xf32> to vector<16x32xbf16>
    %cst_57 = arith.constant dense<0.000000e+00> : vector<16x32xf32>
    %341 = tpu.matmul %340, %258, %cst_57 {dimension_numbers = #tpu.dot_dimension_numbers<[1], [0], [0], [1], [0, 0, 1, 1], [], []>} : vector<16x32xbf16>, vector<32x32xbf16>, vector<16x32xf32> -> vector<16x32xf32>
    %342 = vector.broadcast %262 : vector<1x32xf32> to vector<16x32xf32>
    %343 = arith.addf %341, %342 : vector<16x32xf32>
    %344 = arith.addf %248, %343 : vector<16x32xf32>
    %cst_58 = arith.constant dense<0.000000e+00> : vector<16xf32>
    %345 = vector.multi_reduction <add>, %344, %cst_58 [1] : vector<16x32xf32> to vector<16xf32>
    %346 = vector.shape_cast %345 : vector<16xf32> to vector<16x1xf32>
    %cst_59 = arith.constant 3.200000e+01 : f32
    %347 = vector.broadcast %cst_59 : f32 to vector<16x1xf32>
    %348 = arith.divf %346, %347 : vector<16x1xf32>
    %349 = vector.broadcast %348 : vector<16x1xf32> to vector<16x32xf32>
    %350 = arith.subf %344, %349 : vector<16x32xf32>
    %351 = arith.mulf %350, %350 : vector<16x32xf32>
    %cst_60 = arith.constant dense<0.000000e+00> : vector<16xf32>
    %352 = vector.multi_reduction <add>, %351, %cst_60 [1] : vector<16x32xf32> to vector<16xf32>
    %353 = vector.shape_cast %352 : vector<16xf32> to vector<16x1xf32>
    %cst_61 = arith.constant 3.200000e+01 : f32
    %354 = vector.broadcast %cst_61 : f32 to vector<16x1xf32>
    %355 = arith.divf %353, %354 : vector<16x1xf32>
    %356 = vector.broadcast %348 : vector<16x1xf32> to vector<16x32xf32>
    %357 = arith.subf %344, %356 : vector<16x32xf32>
    %cst_62 = arith.constant 9.99999974E-6 : f32
    %358 = vector.broadcast %cst_62 : f32 to vector<16x1xf32>
    %359 = arith.addf %355, %358 : vector<16x1xf32>
    %360 = math.rsqrt %359 : vector<16x1xf32>
    %361 = vector.broadcast %360 : vector<16x1xf32> to vector<16x32xf32>
    %362 = arith.mulf %357, %361 : vector<16x32xf32>
    %363 = vector.broadcast %268 : vector<1x32xf32> to vector<16x32xf32>
    %364 = arith.mulf %362, %363 : vector<16x32xf32>
    %365 = vector.broadcast %269 : vector<1x32xf32> to vector<16x32xf32>
    %366 = arith.addf %364, %365 : vector<16x32xf32>
    %367 = arith.truncf %366 : vector<16x32xf32> to vector<16x32xbf16>
    %cst_63 = arith.constant dense<0.000000e+00> : vector<16x32xf32>
    %368 = tpu.matmul %367, %256, %cst_63 {dimension_numbers = #tpu.dot_dimension_numbers<[1], [0], [0], [1], [0, 0, 1, 1], [], []>} : vector<16x32xbf16>, vector<32x32xbf16>, vector<16x32xf32> -> vector<16x32xf32>
    %369 = vector.broadcast %263 : vector<1x32xf32> to vector<16x32xf32>
    %370 = arith.addf %368, %369 : vector<16x32xf32>
    %cst_64 = arith.constant dense<0.000000e+00> : vector<16x64xf32>
    %371 = tpu.matmul %3, %257, %cst_64 {dimension_numbers = #tpu.dot_dimension_numbers<[1], [0], [0], [1], [0, 0, 1, 1], [], []>} : vector<16x32xbf16>, vector<32x64xbf16>, vector<16x64xf32> -> vector<16x64xf32>
    %372 = vector.broadcast %264 : vector<1x64xf32> to vector<16x64xf32>
    %373 = arith.addf %371, %372 : vector<16x64xf32>
    %374 = vector.extract_strided_slice %373 {offsets = [0, 0], sizes = [16, 32], strides = [1, 1]} : vector<16x64xf32> to vector<16x32xf32>
    %375 = vector.extract_strided_slice %373 {offsets = [0, 32], sizes = [16, 32], strides = [1, 1]} : vector<16x64xf32> to vector<16x32xf32>
    %376 = vector.extract_strided_slice %370 {offsets = [0, 0], sizes = [16, 8], strides = [1, 1]} : vector<16x32xf32> to vector<16x8xf32>
    %377 = vector.shape_cast %376 : vector<16x8xf32> to vector<2x1x8x8xf32>
    %378 = vector.extract_strided_slice %370 {offsets = [0, 8], sizes = [16, 8], strides = [1, 1]} : vector<16x32xf32> to vector<16x8xf32>
    %379 = vector.shape_cast %378 : vector<16x8xf32> to vector<2x1x8x8xf32>
    %380 = vector.extract_strided_slice %370 {offsets = [0, 16], sizes = [16, 8], strides = [1, 1]} : vector<16x32xf32> to vector<16x8xf32>
    %381 = vector.shape_cast %380 : vector<16x8xf32> to vector<2x1x8x8xf32>
    %382 = vector.extract_strided_slice %370 {offsets = [0, 24], sizes = [16, 8], strides = [1, 1]} : vector<16x32xf32> to vector<16x8xf32>
    %383 = vector.shape_cast %382 : vector<16x8xf32> to vector<2x1x8x8xf32>
    %384 = tpu.concatenate %377, %379, %381, %383 in 1 : vector<2x1x8x8xf32>, vector<2x1x8x8xf32>, vector<2x1x8x8xf32>, vector<2x1x8x8xf32> -> vector<2x4x8x8xf32>
    %385 = vector.shape_cast %384 : vector<2x4x8x8xf32> to vector<8x8x8xf32>
    %386 = arith.truncf %385 : vector<8x8x8xf32> to vector<8x8x8xbf16>
    %387 = vector.extract_strided_slice %374 {offsets = [0, 0], sizes = [16, 8], strides = [1, 1]} : vector<16x32xf32> to vector<16x8xf32>
    %388 = vector.shape_cast %387 : vector<16x8xf32> to vector<2x1x8x8xf32>
    %389 = vector.extract_strided_slice %374 {offsets = [0, 8], sizes = [16, 8], strides = [1, 1]} : vector<16x32xf32> to vector<16x8xf32>
    %390 = vector.shape_cast %389 : vector<16x8xf32> to vector<2x1x8x8xf32>
    %391 = vector.extract_strided_slice %374 {offsets = [0, 16], sizes = [16, 8], strides = [1, 1]} : vector<16x32xf32> to vector<16x8xf32>
    %392 = vector.shape_cast %391 : vector<16x8xf32> to vector<2x1x8x8xf32>
    %393 = vector.extract_strided_slice %374 {offsets = [0, 24], sizes = [16, 8], strides = [1, 1]} : vector<16x32xf32> to vector<16x8xf32>
    %394 = vector.shape_cast %393 : vector<16x8xf32> to vector<2x1x8x8xf32>
    %395 = tpu.concatenate %388, %390, %392, %394 in 1 : vector<2x1x8x8xf32>, vector<2x1x8x8xf32>, vector<2x1x8x8xf32>, vector<2x1x8x8xf32> -> vector<2x4x8x8xf32>
    %396 = vector.shape_cast %395 : vector<2x4x8x8xf32> to vector<8x8x8xf32>
    %397 = arith.truncf %396 : vector<8x8x8xf32> to vector<8x8x8xbf16>
    %398 = vector.extract_strided_slice %375 {offsets = [0, 0], sizes = [16, 8], strides = [1, 1]} : vector<16x32xf32> to vector<16x8xf32>
    %399 = vector.shape_cast %398 : vector<16x8xf32> to vector<2x1x8x8xf32>
    %400 = vector.extract_strided_slice %375 {offsets = [0, 8], sizes = [16, 8], strides = [1, 1]} : vector<16x32xf32> to vector<16x8xf32>
    %401 = vector.shape_cast %400 : vector<16x8xf32> to vector<2x1x8x8xf32>
    %402 = vector.extract_strided_slice %375 {offsets = [0, 16], sizes = [16, 8], strides = [1, 1]} : vector<16x32xf32> to vector<16x8xf32>
    %403 = vector.shape_cast %402 : vector<16x8xf32> to vector<2x1x8x8xf32>
    %404 = vector.extract_strided_slice %375 {offsets = [0, 24], sizes = [16, 8], strides = [1, 1]} : vector<16x32xf32> to vector<16x8xf32>
    %405 = vector.shape_cast %404 : vector<16x8xf32> to vector<2x1x8x8xf32>
    %406 = tpu.concatenate %399, %401, %403, %405 in 1 : vector<2x1x8x8xf32>, vector<2x1x8x8xf32>, vector<2x1x8x8xf32>, vector<2x1x8x8xf32> -> vector<2x4x8x8xf32>
    %407 = vector.shape_cast %406 : vector<2x4x8x8xf32> to vector<8x8x8xf32>
    %408 = arith.truncf %407 : vector<8x8x8xf32> to vector<8x8x8xbf16>
    "tpu.trace_start"() <{level = 10 : i32, message = "nqd,nkd->nqk"}> : () -> ()
    %cst_65 = arith.constant dense<0.000000e+00> : vector<8x8x8xf32>
    %409 = tpu.matmul %386, %397, %cst_65 {dimension_numbers = #tpu.dot_dimension_numbers<[2], [2], [1], [1], [0, 0, 0, 1, 1, 1], [0], [0]>} : vector<8x8x8xbf16>, vector<8x8x8xbf16>, vector<8x8x8xf32> -> vector<8x8x8xf32>
    "tpu.trace_stop"() : () -> ()
    %cst_66 = arith.constant dense<0xFF800000> : vector<8x8xf32>
    %410 = vector.multi_reduction <maximumf>, %409, %cst_66 [2] : vector<8x8x8xf32> to vector<8x8xf32>
    %411 = vector.shape_cast %410 : vector<8x8xf32> to vector<8x8x1xf32>
    %412 = vector.broadcast %411 : vector<8x8x1xf32> to vector<8x8x8xf32>
    %413 = arith.subf %409, %412 : vector<8x8x8xf32>
    %414 = math.exp %413 : vector<8x8x8xf32>
    %cst_67 = arith.constant dense<0.000000e+00> : vector<8x8xf32>
    %415 = vector.multi_reduction <add>, %414, %cst_67 [2] : vector<8x8x8xf32> to vector<8x8xf32>
    %416 = vector.shape_cast %415 : vector<8x8xf32> to vector<8x8x1xf32>
    %417 = tpu.reciprocal %416 {approx = true} : vector<8x8x1xf32> -> vector<8x8x1xf32>
    %418 = vector.broadcast %417 : vector<8x8x1xf32> to vector<8x8x8xf32>
    %419 = arith.mulf %414, %418 : vector<8x8x8xf32>
    %420 = arith.truncf %419 : vector<8x8x8xf32> to vector<8x8x8xbf16>
    "tpu.trace_start"() <{level = 10 : i32, message = "nqk,nkd->nqd"}> : () -> ()
    %cst_68 = arith.constant dense<0.000000e+00> : vector<8x8x8xf32>
    %421 = tpu.matmul %420, %408, %cst_68 {dimension_numbers = #tpu.dot_dimension_numbers<[2], [1], [1], [2], [0, 0, 0, 1, 1, 2], [0], [0]>} : vector<8x8x8xbf16>, vector<8x8x8xbf16>, vector<8x8x8xf32> -> vector<8x8x8xf32>
    "tpu.trace_stop"() : () -> ()
    %422 = vector.shape_cast %421 : vector<8x8x8xf32> to vector<2x4x8x8xf32>
    %423 = vector.extract_strided_slice %422 {offsets = [0, 0, 0, 0], sizes = [2, 1, 8, 8], strides = [1, 1, 1, 1]} : vector<2x4x8x8xf32> to vector<2x1x8x8xf32>
    %424 = vector.shape_cast %423 : vector<2x1x8x8xf32> to vector<2x8x8xf32>
    %425 = vector.extract_strided_slice %422 {offsets = [0, 1, 0, 0], sizes = [2, 1, 8, 8], strides = [1, 1, 1, 1]} : vector<2x4x8x8xf32> to vector<2x1x8x8xf32>
    %426 = vector.shape_cast %425 : vector<2x1x8x8xf32> to vector<2x8x8xf32>
    %427 = vector.extract_strided_slice %422 {offsets = [0, 2, 0, 0], sizes = [2, 1, 8, 8], strides = [1, 1, 1, 1]} : vector<2x4x8x8xf32> to vector<2x1x8x8xf32>
    %428 = vector.shape_cast %427 : vector<2x1x8x8xf32> to vector<2x8x8xf32>
    %429 = vector.extract_strided_slice %422 {offsets = [0, 3, 0, 0], sizes = [2, 1, 8, 8], strides = [1, 1, 1, 1]} : vector<2x4x8x8xf32> to vector<2x1x8x8xf32>
    %430 = vector.shape_cast %429 : vector<2x1x8x8xf32> to vector<2x8x8xf32>
    %431 = tpu.concatenate %424, %426, %428, %430 in 2 : vector<2x8x8xf32>, vector<2x8x8xf32>, vector<2x8x8xf32>, vector<2x8x8xf32> -> vector<2x8x32xf32>
    %432 = vector.shape_cast %431 : vector<2x8x32xf32> to vector<16x32xf32>
    %433 = arith.truncf %432 : vector<16x32xf32> to vector<16x32xbf16>
    %cst_69 = arith.constant dense<0.000000e+00> : vector<16x32xf32>
    %434 = tpu.matmul %433, %259, %cst_69 {dimension_numbers = #tpu.dot_dimension_numbers<[1], [0], [0], [1], [0, 0, 1, 1], [], []>} : vector<16x32xbf16>, vector<32x32xbf16>, vector<16x32xf32> -> vector<16x32xf32>
    %435 = vector.broadcast %265 : vector<1x32xf32> to vector<16x32xf32>
    %436 = arith.addf %434, %435 : vector<16x32xf32>
    %437 = arith.addf %366, %436 : vector<16x32xf32>
    %cst_70 = arith.constant dense<0.000000e+00> : vector<16xf32>
    %438 = vector.multi_reduction <add>, %437, %cst_70 [1] : vector<16x32xf32> to vector<16xf32>
    %439 = vector.shape_cast %438 : vector<16xf32> to vector<16x1xf32>
    %cst_71 = arith.constant 3.200000e+01 : f32
    %440 = vector.broadcast %cst_71 : f32 to vector<16x1xf32>
    %441 = arith.divf %439, %440 : vector<16x1xf32>
    %442 = vector.broadcast %441 : vector<16x1xf32> to vector<16x32xf32>
    %443 = arith.subf %437, %442 : vector<16x32xf32>
    %444 = arith.mulf %443, %443 : vector<16x32xf32>
    %cst_72 = arith.constant dense<0.000000e+00> : vector<16xf32>
    %445 = vector.multi_reduction <add>, %444, %cst_72 [1] : vector<16x32xf32> to vector<16xf32>
    %446 = vector.shape_cast %445 : vector<16xf32> to vector<16x1xf32>
    %cst_73 = arith.constant 3.200000e+01 : f32
    %447 = vector.broadcast %cst_73 : f32 to vector<16x1xf32>
    %448 = arith.divf %446, %447 : vector<16x1xf32>
    %449 = vector.broadcast %441 : vector<16x1xf32> to vector<16x32xf32>
    %450 = arith.subf %437, %449 : vector<16x32xf32>
    %cst_74 = arith.constant 9.99999974E-6 : f32
    %451 = vector.broadcast %cst_74 : f32 to vector<16x1xf32>
    %452 = arith.addf %448, %451 : vector<16x1xf32>
    %453 = math.rsqrt %452 : vector<16x1xf32>
    %454 = vector.broadcast %453 : vector<16x1xf32> to vector<16x32xf32>
    %455 = arith.mulf %450, %454 : vector<16x32xf32>
    %456 = vector.broadcast %270 : vector<1x32xf32> to vector<16x32xf32>
    %457 = arith.mulf %455, %456 : vector<16x32xf32>
    %458 = vector.broadcast %271 : vector<1x32xf32> to vector<16x32xf32>
    %459 = arith.addf %457, %458 : vector<16x32xf32>
    %460 = arith.truncf %459 : vector<16x32xf32> to vector<16x32xbf16>
    %cst_75 = arith.constant dense<0.000000e+00> : vector<16x64xf32>
    %461 = tpu.matmul %460, %260, %cst_75 {dimension_numbers = #tpu.dot_dimension_numbers<[1], [0], [0], [1], [0, 0, 1, 1], [], []>} : vector<16x32xbf16>, vector<32x64xbf16>, vector<16x64xf32> -> vector<16x64xf32>
    %462 = vector.broadcast %266 : vector<1x64xf32> to vector<16x64xf32>
    %463 = arith.addf %461, %462 : vector<16x64xf32>
    %cst_76 = arith.constant 0.000000e+00 : f32
    %464 = vector.broadcast %cst_76 : f32 to vector<16x64xf32>
    %465 = arith.maximumf %463, %464 : vector<16x64xf32>
    %466 = arith.truncf %465 : vector<16x64xf32> to vector<16x64xbf16>
    %cst_77 = arith.constant dense<0.000000e+00> : vector<16x32xf32>
    %467 = tpu.matmul %466, %252, %cst_77 {dimension_numbers = #tpu.dot_dimension_numbers<[1], [0], [0], [1], [0, 0, 1, 1], [], []>} : vector<16x64xbf16>, vector<64x32xbf16>, vector<16x32xf32> -> vector<16x32xf32>
    %468 = vector.broadcast %267 : vector<1x32xf32> to vector<16x32xf32>
    %469 = arith.addf %467, %468 : vector<16x32xf32>
    %470 = arith.addf %459, %469 : vector<16x32xf32>
    %cst_78 = arith.constant dense<0.000000e+00> : vector<16xf32>
    %471 = vector.multi_reduction <add>, %470, %cst_78 [1] : vector<16x32xf32> to vector<16xf32>
    %472 = vector.shape_cast %471 : vector<16xf32> to vector<16x1xf32>
    %cst_79 = arith.constant 3.200000e+01 : f32
    %473 = vector.broadcast %cst_79 : f32 to vector<16x1xf32>
    %474 = arith.divf %472, %473 : vector<16x1xf32>
    %475 = vector.broadcast %474 : vector<16x1xf32> to vector<16x32xf32>
    %476 = arith.subf %470, %475 : vector<16x32xf32>
    %477 = arith.mulf %476, %476 : vector<16x32xf32>
    %cst_80 = arith.constant dense<0.000000e+00> : vector<16xf32>
    %478 = vector.multi_reduction <add>, %477, %cst_80 [1] : vector<16x32xf32> to vector<16xf32>
    %479 = vector.shape_cast %478 : vector<16xf32> to vector<16x1xf32>
    %cst_81 = arith.constant 3.200000e+01 : f32
    %480 = vector.broadcast %cst_81 : f32 to vector<16x1xf32>
    %481 = arith.divf %479, %480 : vector<16x1xf32>
    %482 = vector.broadcast %474 : vector<16x1xf32> to vector<16x32xf32>
    %483 = arith.subf %470, %482 : vector<16x32xf32>
    %cst_82 = arith.constant 9.99999974E-6 : f32
    %484 = vector.broadcast %cst_82 : f32 to vector<16x1xf32>
    %485 = arith.addf %481, %484 : vector<16x1xf32>
    %486 = math.rsqrt %485 : vector<16x1xf32>
    %487 = vector.broadcast %486 : vector<16x1xf32> to vector<16x32xf32>
    %488 = arith.mulf %483, %487 : vector<16x32xf32>
    %489 = vector.broadcast %272 : vector<1x32xf32> to vector<16x32xf32>
    %490 = arith.mulf %488, %489 : vector<16x32xf32>
    %491 = vector.broadcast %273 : vector<1x32xf32> to vector<16x32xf32>
    %492 = arith.addf %490, %491 : vector<16x32xf32>
    %c0_83 = arith.constant 0 : index
    %c0_84 = arith.constant 0 : index
    %493 = vector.load %arg6[%c0_83, %c0_84] : memref<16x32xf32, #tpu.memory_space<vmem>>, vector<16x32xf32>
    tpu.vector_store %arg6[%c0_83, %c0_84], %492 {strides = array<i32>} : memref<16x32xf32, #tpu.memory_space<vmem>>, vector<16x32xf32>,
    return
  }
}

</mosaic_0001>

<llo_original>
// kernel: tpu_custom_call.1
$region0: #{tpu_custom_call.1}
  #allocation0 [shape = 'u32[]', space=smem, size = 0x4, offset = 0x4, fixed_abs, tag = 'smem constant byte address 0x4 - core index']
  #allocation1 [shape = 'u32[144,128]{1,0:T(1,128)}', space=vmem, size = 0x12000, scoped, tag = 'internal scratch']
  %s0 = inlined_call_operand.vmem [shape: f32[16,32], index: 0, kind: input, shape index: {}]
  %s1 = inlined_call_operand.vmem [shape: f32[16,32], index: 1, kind: input, shape index: {}]
  %s2 = inlined_call_operand.vmem [shape: f32[8,8], index: 2, kind: input, shape index: {}]
  %s3 = inlined_call_operand.vmem [shape: bf16[2,32,320], index: 3, kind: input, shape index: {}]
  %s4 = inlined_call_operand.vmem [shape: bf16[2,64,32], index: 4, kind: input, shape index: {}]
  %s5 = inlined_call_operand.vmem [shape: f32[2,13,128], index: 5, kind: input, shape index: {}]
  %s6 = inlined_call_operand.hbm [shape: f32[16,32], index: 6, kind: output, shape index: {}]
  %s7 = sld [smem:[#allocation0]]
  $region34: #{tpu_custom_call.1} parent=0
    _
  %s9 = ssub.s32 1, %s7
  %s10 = scalar_select 0, %s9, %s7
  $region1: #{tpu_custom_call.1} parent=0
    #allocation2 [shape = 'u8[8192]{0}', space=vmem, size = 0x2000, scoped, tag = 'output window, operand 0, single buffered']
    #allocation3 [shape = 's32[1]{0}', space=sflag, size = 0x4, scoped, tag = 'scoped memory for tpu_custom_call.1']
    %11 = vsyncpa [#allocation3], 0
    // Predicated region
    $region2: #{tpu_custom_call.1} parent=1 // pred_check
      _
    $region3: #{tpu_custom_call.1} parent=1 // pred_check_branch
      %13 = sbr.rel (0) target = $region5
    $region4: #{tpu_custom_call.1} parent=1 // pred_region
      _
    $region5: #{tpu_custom_call.1} parent=1 // pred_fallthru
      _
    // Predicated region
    $region6: #{tpu_custom_call.1} parent=1 // pred_check
      _
    $region7: #{tpu_custom_call.1} parent=1 // pred_check_branch
      %15 = sbr.rel (0) target = $region9
    $region8: #{tpu_custom_call.1} parent=1 // pred_region
      _
    $region9: #{tpu_custom_call.1} parent=1 // pred_fallthru
      _
    // Predicated region
    $region10: #{tpu_custom_call.1} parent=1 // pred_check
      _
    $region11: #{tpu_custom_call.1} parent=1 // pred_check_branch
      %17 = sbr.rel (0) target = $region13
    $region12: #{tpu_custom_call.1} parent=1 // pred_region
      _
    $region13: #{tpu_custom_call.1} parent=1 // pred_fallthru
      _
    // Predicated region
    $region14: #{tpu_custom_call.1} parent=1 // pred_check
      _
    $region15: #{tpu_custom_call.1} parent=1 // pred_check_branch
      %19 = sbr.rel (0) target = $region17
    $region16: #{tpu_custom_call.1} parent=1 // pred_region
      _
    $region17: #{tpu_custom_call.1} parent=1 // pred_fallthru
      _
    // Predicated region
    $region18: #{tpu_custom_call.1} parent=1 // pred_check
      _
    $region19: #{tpu_custom_call.1} parent=1 // pred_check_branch
      %21 = sbr.rel (0) target = $region21
    $region20: #{tpu_custom_call.1} parent=1 // pred_region
      _
    $region21: #{tpu_custom_call.1} parent=1 // pred_fallthru
      _
    // Predicated region
    $region22: #{tpu_custom_call.1} parent=1 // pred_check
      _
    $region23: #{tpu_custom_call.1} parent=1 // pred_check_branch
      %23 = sbr.rel (0) target = $region25
    $region24: #{tpu_custom_call.1} parent=1 // pred_region
      _
    $region25: #{tpu_custom_call.1} parent=1 // pred_fallthru
      _
    %v25 = vld [vmem:[%s0] sm:$0xff]
    %v26 = vld [vmem:[%s0 + $0x8] sm:$0xff]
    %v27 = vld [vmem:[%s1] sm:$0xff]
    %v28 = vld [vmem:[%s1 + $0x8] sm:$0xff]
    %v29 = vld [vmem:[%s2] sm:$0xff]
    %v30 = vpack.c.bf16 %v28, %v27
    %v31 = vld [vmem:[%s3] sm:$0xff]
    %v32 = vld [vmem:[%s3 + $0x8] sm:$0xf]
    %v33 = vld [vmem:[%s3 + $0xc] sm:$0xff]
    %v34 = vld [vmem:[%s3 + $0x14] sm:$0xf]
    %v35 = vld [vmem:[%s3 + $0x18] sm:$0xff]
    %v36 = vld [vmem:[%s3 + $0x20] sm:$0xf]
    %v37 = vld [vmem:[%s3 + $0x24] sm:$0xff]
    %v38 = vld [vmem:[%s3 + $0x2c] sm:$0xf]
    %v39 = vld [vmem:[%s4] sm:$0xf]
    %v40 = vld [vmem:[%s4 + $0x4] sm:$0xf]
    %v41 = vld [vmem:[%s4 + $0x8] sm:$0xf]
    %v42 = vld [vmem:[%s4 + $0xc] sm:$0xf]
    %v43 = vld [vmem:[%s4 + $0x10] sm:$0xf]
    %v44 = vld [vmem:[%s4 + $0x14] sm:$0xf]
    %v45 = vld [vmem:[%s4 + $0x18] sm:$0xf]
    %v46 = vld [vmem:[%s4 + $0x1c] sm:$0xf]
    %v47 = vld [vmem:[%s5] sm:$0xff]
    %v48 = vld [vmem:[%s5 + $0x8] sm:$0x1f]
    %v49 = vpack.c.bf16 %v26, %v25
    %v50 = vlaneseq
    %v51 = vshrl.u32 %v50, 7
    %v52 = vsub.s32 0, %v51
    %v53 = vrot.slane %v47, %v52
    %v58 = vunpack.c.l.b16 %v31
    %v59 = vunpack.c.l.b16 %v33
    %v60 = vunpack.c.l.b16 %v35
    %v61 = vunpack.c.l.b16 %v37
    %v62 = vpack.c.b16 %v59, %v58
    %v63 = vpack.c.b16 %v61, %v60
    %vm66 = vcmask 261120
    %v68 = vsel %vm66, %v49, 0
    %70 = vmatprep.subr.bf16.mxu0 0
    %71 = vmatpush1.bf16.msra.mxu0 %v62
    %72 = vmatprep.subr.bf16.mxu0 0
    %73 = vmatpush1.bf16.msra.mxu0 %v63
    %74 = vmatprep.subr.bf16.mxu0 0
    %75 = vmatpush1.bf16.msra.mxu0 0
    %76 = vmatprep.subr.bf16.mxu0 0
    %77 = vmatpush1.bf16.msra.mxu0 0
    %78 = vmatprep.subr.bf16.mxu0 0
    %79 = vmatpush1.bf16.msra.mxu0 0
    %80 = vmatprep.subr.bf16.mxu0 0
    %81 = vmatpush1.bf16.msra.mxu0 0
    %82 = vmatprep.subr.bf16.mxu0 0
    %83 = vmatpush1.bf16.msra.mxu0 0
    %84 = vmatprep.subr.bf16.mxu0 0
    %85 = vmatpush1.bf16.msra.mxu0 0
    %86 = vmatprep.subr.bf16.mxu0 0
    %87 = vmatpush1.bf16.msra.mxu0 0
    %88 = vmatprep.subr.bf16.mxu0 0
    %89 = vmatpush1.bf16.msra.mxu0 0
    %90 = vmatprep.subr.bf16.mxu0 0
    %91 = vmatpush1.bf16.msra.mxu0 0
    %92 = vmatprep.subr.bf16.mxu0 0
    %93 = vmatpush1.bf16.msra.mxu0 0
    %94 = vmatprep.subr.bf16.mxu0 0
    %95 = vmatpush1.bf16.msra.mxu0 0
    %96 = vmatprep.subr.bf16.mxu0 0
    %97 = vmatpush1.bf16.msra.mxu0 0
    %98 = vmatprep.subr.bf16.mxu0 0
    %99 = vmatpush1.bf16.msra.mxu0 0
    %100 = vmatprep.subr.bf16.mxu0 0
    %101 = vmatpush1.bf16.msra.mxu0 0
    %102 = vmatprep.mubr.bf16.mxu0 0
    %103 = vmatmul.mubr.bf16.gmra.mrb[0].mxu0 %v68
    %v104 = vpop.f32.mrb[0].mxu0
    %v105 = vadd.f32 %v53, %v104
    %v106 = vpop.f32.mrb[0].mxu0
    %v107 = vpop.f32.mrb[0].mxu0
    %v108 = vadd.f32 %v53, %v107
    %v109 = vpop.f32.mrb[0].mxu0
    %110 = vdwg.mxu0
    %113 = vrot.lane.b32.xlu0 %v105, 120
    %v114 = vpop.permute.xlu0 %113
    %115 = vrot.lane.b32.xlu0 %v108, 120
    %v116 = vpop.permute.xlu0 %115
    %119 = vrot.lane.b32.xlu0 %v105, 112
    %v120 = vpop.permute.xlu0 %119
    %121 = vrot.lane.b32.xlu0 %v108, 112
    %v122 = vpop.permute.xlu0 %121
    %125 = vrot.lane.b32.xlu0 %v105, 104
    %v126 = vpop.permute.xlu0 %125
    %127 = vrot.lane.b32.xlu0 %v108, 104
    %v128 = vpop.permute.xlu0 %127
    %v131 = vpack.c.bf16 %v105, %v105
    %v132 = vpack.c.bf16 %v114, %v114
    %v133 = vpack.c.bf16 %v120, %v120
    %v134 = vpack.c.bf16 %v126, %v126
    %v135 = vpack.c.bf16 %v108, %v108
    %v136 = vpack.c.bf16 %v116, %v116
    %v137 = vpack.c.bf16 %v122, %v122
    %v138 = vpack.c.bf16 %v128, %v128
    %140 = vrot.lane.b32.xlu0 %v131, 96
    %v141 = vpop.permute.xlu0 %140
    %vm142 = vcmask 64512
    %v144 = vsel %vm142, %v131, 0
    %v147 = vsel %vm142, %v141, 0
    %149 = vmatprep.subr.bf16.mxu0 0
    %150 = vmatpush1.bf16.xpose.msra.mxu0 %v147
    %151 = vmatprep.subr.bf16.mxu0 0
    %152 = vmatpush1.bf16.xpose.msra.mxu0 0
    %153 = vmatprep.subr.bf16.mxu0 0
    %154 = vmatpush1.bf16.xpose.msra.mxu0 0
    %155 = vmatprep.subr.bf16.mxu0 0
    %156 = vmatpush1.bf16.xpose.msra.mxu0 0
    %157 = vmatprep.subr.bf16.mxu0 0
    %158 = vmatpush1.bf16.xpose.msra.mxu0 0
    %159 = vmatprep.subr.bf16.mxu0 0
    %160 = vmatpush1.bf16.xpose.msra.mxu0 0
    %161 = vmatprep.subr.bf16.mxu0 0
    %162 = vmatpush1.bf16.xpose.msra.mxu0 0
    %163 = vmatprep.subr.bf16.mxu0 0
    %164 = vmatpush1.bf16.xpose.msra.mxu0 0
    %165 = vmatprep.subr.bf16.mxu0 0
    %166 = vmatpush1.bf16.xpose.msra.mxu0 0
    %167 = vmatprep.subr.bf16.mxu0 0
    %168 = vmatpush1.bf16.xpose.msra.mxu0 0
    %169 = vmatprep.subr.bf16.mxu0 0
    %170 = vmatpush1.bf16.xpose.msra.mxu0 0
    %171 = vmatprep.subr.bf16.mxu0 0
    %172 = vmatpush1.bf16.xpose.msra.mxu0 0
    %173 = vmatprep.subr.bf16.mxu0 0
    %174 = vmatpush1.bf16.xpose.msra.mxu0 0
    %175 = vmatprep.subr.bf16.mxu0 0
    %176 = vmatpush1.bf16.xpose.msra.mxu0 0
    %177 = vmatprep.subr.bf16.mxu0 0
    %178 = vmatpush1.bf16.xpose.msra.mxu0 0
    %179 = vmatprep.subr.bf16.mxu0 0
    %180 = vmatpush1.bf16.xpose.msra.mxu0 0
    %181 = vmatprep.mubr.bf16.mxu0 0
    %182 = vmatmul.mubr.bf16.gmra.mrb[0].mxu0 %v144
    %v183 = vpop.f32.mrb[0].mxu0
    %v184 = vadd.f32 %v29, %v183
    %v185 = vpop.f32.mrb[0].mxu0
    %v186 = vpop.f32.mrb[0].mxu0
    %v187 = vpop.f32.mrb[0].mxu0
    %188 = vdwg.mxu0
    %190 = vrot.lane.b32.xlu0 %v132, 96
    %v191 = vpop.permute.xlu0 %190
    %v193 = vsel %vm142, %v132, 0
    %v196 = vsel %vm142, %v191, 0
    %198 = vmatprep.subr.bf16.mxu0 0
    %199 = vmatpush1.bf16.xpose.msra.mxu0 %v196
    %200 = vmatprep.subr.bf16.mxu0 0
    %201 = vmatpush1.bf16.xpose.msra.mxu0 0
    %202 = vmatprep.subr.bf16.mxu0 0
    %203 = vmatpush1.bf16.xpose.msra.mxu0 0
    %204 = vmatprep.subr.bf16.mxu0 0
    %205 = vmatpush1.bf16.xpose.msra.mxu0 0
    %206 = vmatprep.subr.bf16.mxu0 0
    %207 = vmatpush1.bf16.xpose.msra.mxu0 0
    %208 = vmatprep.subr.bf16.mxu0 0
    %209 = vmatpush1.bf16.xpose.msra.mxu0 0
    %210 = vmatprep.subr.bf16.mxu0 0
    %211 = vmatpush1.bf16.xpose.msra.mxu0 0
    %212 = vmatprep.subr.bf16.mxu0 0
    %213 = vmatpush1.bf16.xpose.msra.mxu0 0
    %214 = vmatprep.subr.bf16.mxu0 0
    %215 = vmatpush1.bf16.xpose.msra.mxu0 0
    %216 = vmatprep.subr.bf16.mxu0 0
    %217 = vmatpush1.bf16.xpose.msra.mxu0 0
    %218 = vmatprep.subr.bf16.mxu0 0
    %219 = vmatpush1.bf16.xpose.msra.mxu0 0
    %220 = vmatprep.subr.bf16.mxu0 0
    %221 = vmatpush1.bf16.xpose.msra.mxu0 0
    %222 = vmatprep.subr.bf16.mxu0 0
    %223 = vmatpush1.bf16.xpose.msra.mxu0 0
    %224 = vmatprep.subr.bf16.mxu0 0
    %225 = vmatpush1.bf16.xpose.msra.mxu0 0
    %226 = vmatprep.subr.bf16.mxu0 0
    %227 = vmatpush1.bf16.xpose.msra.mxu0 0
    %228 = vmatprep.subr.bf16.mxu0 0
    %229 = vmatpush1.bf16.xpose.msra.mxu0 0
    %230 = vmatprep.mubr.bf16.mxu0 0
    %231 = vmatmul.mubr.bf16.gmra.mrb[0].mxu0 %v193
    %v232 = vpop.f32.mrb[0].mxu0
    %v233 = vadd.f32 %v29, %v232
    %v234 = vpop.f32.mrb[0].mxu0
    %v235 = vpop.f32.mrb[0].mxu0
    %v236 = vpop.f32.mrb[0].mxu0
    %237 = vdwg.mxu0
    %239 = vrot.lane.b32.xlu0 %v133, 96
    %v240 = vpop.permute.xlu0 %239
    %v242 = vsel %vm142, %v133, 0
    %v245 = vsel %vm142, %v240, 0
    %247 = vmatprep.subr.bf16.mxu0 0
    %248 = vmatpush1.bf16.xpose.msra.mxu0 %v245
    %249 = vmatprep.subr.bf16.mxu0 0
    %250 = vmatpush1.bf16.xpose.msra.mxu0 0
    %251 = vmatprep.subr.bf16.mxu0 0
    %252 = vmatpush1.bf16.xpose.msra.mxu0 0
    %253 = vmatprep.subr.bf16.mxu0 0
    %254 = vmatpush1.bf16.xpose.msra.mxu0 0
    %255 = vmatprep.subr.bf16.mxu0 0
    %256 = vmatpush1.bf16.xpose.msra.mxu0 0
    %257 = vmatprep.subr.bf16.mxu0 0
    %258 = vmatpush1.bf16.xpose.msra.mxu0 0
    %259 = vmatprep.subr.bf16.mxu0 0
    %260 = vmatpush1.bf16.xpose.msra.mxu0 0
    %261 = vmatprep.subr.bf16.mxu0 0
    %262 = vmatpush1.bf16.xpose.msra.mxu0 0
    %263 = vmatprep.subr.bf16.mxu0 0
    %264 = vmatpush1.bf16.xpose.msra.mxu0 0
    %265 = vmatprep.subr.bf16.mxu0 0
    %266 = vmatpush1.bf16.xpose.msra.mxu0 0
    %267 = vmatprep.subr.bf16.mxu0 0
    %268 = vmatpush1.bf16.xpose.msra.mxu0 0
    %269 = vmatprep.subr.bf16.mxu0 0
    %270 = vmatpush1.bf16.xpose.msra.mxu0 0
    %271 = vmatprep.subr.bf16.mxu0 0
    %272 = vmatpush1.bf16.xpose.msra.mxu0 0
    %273 = vmatprep.subr.bf16.mxu0 0
    %274 = vmatpush1.bf16.xpose.msra.mxu0 0
    %275 = vmatprep.subr.bf16.mxu0 0
    %276 = vmatpush1.bf16.xpose.msra.mxu0 0
    %277 = vmatprep.subr.bf16.mxu0 0
    %278 = vmatpush1.bf16.xpose.msra.mxu0 0
    %279 = vmatprep.mubr.bf16.mxu0 0
    %280 = vmatmul.mubr.bf16.gmra.mrb[0].mxu0 %v242
    %v281 = vpop.f32.mrb[0].mxu0
    %v282 = vadd.f32 %v29, %v281
    %v283 = vpop.f32.mrb[0].mxu0
    %v284 = vpop.f32.mrb[0].mxu0
    %v285 = vpop.f32.mrb[0].mxu0
    %286 = vdwg.mxu0
    %288 = vrot.lane.b32.xlu0 %v134, 96
    %v289 = vpop.permute.xlu0 %288
    %v291 = vsel %vm142, %v134, 0
    %v294 = vsel %vm142, %v289, 0
    %296 = vmatprep.subr.bf16.mxu0 0
    %297 = vmatpush1.bf16.xpose.msra.mxu0 %v294
    %298 = vmatprep.subr.bf16.mxu0 0
    %299 = vmatpush1.bf16.xpose.msra.mxu0 0
    %300 = vmatprep.subr.bf16.mxu0 0
    %301 = vmatpush1.bf16.xpose.msra.mxu0 0
    %302 = vmatprep.subr.bf16.mxu0 0
    %303 = vmatpush1.bf16.xpose.msra.mxu0 0
    %304 = vmatprep.subr.bf16.mxu0 0
    %305 = vmatpush1.bf16.xpose.msra.mxu0 0
    %306 = vmatprep.subr.bf16.mxu0 0
    %307 = vmatpush1.bf16.xpose.msra.mxu0 0
    %308 = vmatprep.subr.bf16.mxu0 0
    %309 = vmatpush1.bf16.xpose.msra.mxu0 0
    %310 = vmatprep.subr.bf16.mxu0 0
    %311 = vmatpush1.bf16.xpose.msra.mxu0 0
    %312 = vmatprep.subr.bf16.mxu0 0
    %313 = vmatpush1.bf16.xpose.msra.mxu0 0
    %314 = vmatprep.subr.bf16.mxu0 0
    %315 = vmatpush1.bf16.xpose.msra.mxu0 0
    %316 = vmatprep.subr.bf16.mxu0 0
    %317 = vmatpush1.bf16.xpose.msra.mxu0 0
    %318 = vmatprep.subr.bf16.mxu0 0
    %319 = vmatpush1.bf16.xpose.msra.mxu0 0
    %320 = vmatprep.subr.bf16.mxu0 0
    %321 = vmatpush1.bf16.xpose.msra.mxu0 0
    %322 = vmatprep.subr.bf16.mxu0 0
    %323 = vmatpush1.bf16.xpose.msra.mxu0 0
    %324 = vmatprep.subr.bf16.mxu0 0
    %325 = vmatpush1.bf16.xpose.msra.mxu0 0
    %326 = vmatprep.subr.bf16.mxu0 0
    %327 = vmatpush1.bf16.xpose.msra.mxu0 0
    %328 = vmatprep.mubr.bf16.mxu0 0
    %329 = vmatmul.mubr.bf16.gmra.mrb[0].mxu0 %v291
    %v330 = vpop.f32.mrb[0].mxu0
    %v331 = vadd.f32 %v29, %v330
    %v332 = vpop.f32.mrb[0].mxu0
    %v333 = vpop.f32.mrb[0].mxu0
    %v334 = vpop.f32.mrb[0].mxu0
    %335 = vdwg.mxu0
    %337 = vrot.lane.b32.xlu0 %v135, 96
    %v338 = vpop.permute.xlu0 %337
    %v340 = vsel %vm142, %v135, 0
    %v343 = vsel %vm142, %v338, 0
    %345 = vmatprep.subr.bf16.mxu0 0
    %346 = vmatpush1.bf16.xpose.msra.mxu0 %v343
    %347 = vmatprep.subr.bf16.mxu0 0
    %348 = vmatpush1.bf16.xpose.msra.mxu0 0
    %349 = vmatprep.subr.bf16.mxu0 0
    %350 = vmatpush1.bf16.xpose.msra.mxu0 0
    %351 = vmatprep.subr.bf16.mxu0 0
    %352 = vmatpush1.bf16.xpose.msra.mxu0 0
    %353 = vmatprep.subr.bf16.mxu0 0
    %354 = vmatpush1.bf16.xpose.msra.mxu0 0
    %355 = vmatprep.subr.bf16.mxu0 0
    %356 = vmatpush1.bf16.xpose.msra.mxu0 0
    %357 = vmatprep.subr.bf16.mxu0 0
    %358 = vmatpush1.bf16.xpose.msra.mxu0 0
    %359 = vmatprep.subr.bf16.mxu0 0
    %360 = vmatpush1.bf16.xpose.msra.mxu0 0
    %361 = vmatprep.subr.bf16.mxu0 0
    %362 = vmatpush1.bf16.xpose.msra.mxu0 0
    %363 = vmatprep.subr.bf16.mxu0 0
    %364 = vmatpush1.bf16.xpose.msra.mxu0 0
    %365 = vmatprep.subr.bf16.mxu0 0
    %366 = vmatpush1.bf16.xpose.msra.mxu0 0
    %367 = vmatprep.subr.bf16.mxu0 0
    %368 = vmatpush1.bf16.xpose.msra.mxu0 0
    %369 = vmatprep.subr.bf16.mxu0 0
    %370 = vmatpush1.bf16.xpose.msra.mxu0 0
    %371 = vmatprep.subr.bf16.mxu0 0
    %372 = vmatpush1.bf16.xpose.msra.mxu0 0
    %373 = vmatprep.subr.bf16.mxu0 0
    %374 = vmatpush1.bf16.xpose.msra.mxu0 0
    %375 = vmatprep.subr.bf16.mxu0 0
    %376 = vmatpush1.bf16.xpose.msra.mxu0 0
    %377 = vmatprep.mubr.bf16.mxu0 0
    %378 = vmatmul.mubr.bf16.gmra.mrb[0].mxu0 %v340
    %v379 = vpop.f32.mrb[0].mxu0
    %v380 = vadd.f32 %v29, %v379
    %v381 = vpop.f32.mrb[0].mxu0
    %v382 = vpop.f32.mrb[0].mxu0
    %v383 = vpop.f32.mrb[0].mxu0
    %384 = vdwg.mxu0
    %386 = vrot.lane.b32.xlu0 %v136, 96
    %v387 = vpop.permute.xlu0 %386
    %v389 = vsel %vm142, %v136, 0
    %v392 = vsel %vm142, %v387, 0
    %394 = vmatprep.subr.bf16.mxu0 0
    %395 = vmatpush1.bf16.xpose.msra.mxu0 %v392
    %396 = vmatprep.subr.bf16.mxu0 0
    %397 = vmatpush1.bf16.xpose.msra.mxu0 0
    %398 = vmatprep.subr.bf16.mxu0 0
    %399 = vmatpush1.bf16.xpose.msra.mxu0 0
    %400 = vmatprep.subr.bf16.mxu0 0
    %401 = vmatpush1.bf16.xpose.msra.mxu0 0
    %402 = vmatprep.subr.bf16.mxu0 0
    %403 = vmatpush1.bf16.xpose.msra.mxu0 0
    %404 = vmatprep.subr.bf16.mxu0 0
    %405 = vmatpush1.bf16.xpose.msra.mxu0 0
    %406 = vmatprep.subr.bf16.mxu0 0
    %407 = vmatpush1.bf16.xpose.msra.mxu0 0
    %408 = vmatprep.subr.bf16.mxu0 0
    %409 = vmatpush1.bf16.xpose.msra.mxu0 0
    %410 = vmatprep.subr.bf16.mxu0 0
    %411 = vmatpush1.bf16.xpose.msra.mxu0 0
    %412 = vmatprep.subr.bf16.mxu0 0
    %413 = vmatpush1.bf16.xpose.msra.mxu0 0
    %414 = vmatprep.subr.bf16.mxu0 0
    %415 = vmatpush1.bf16.xpose.msra.mxu0 0
    %416 = vmatprep.subr.bf16.mxu0 0
    %417 = vmatpush1.bf16.xpose.msra.mxu0 0
    %418 = vmatprep.subr.bf16.mxu0 0
    %419 = vmatpush1.bf16.xpose.msra.mxu0 0
    %420 = vmatprep.subr.bf16.mxu0 0
    %421 = vmatpush1.bf16.xpose.msra.mxu0 0
    %422 = vmatprep.subr.bf16.mxu0 0
    %423 = vmatpush1.bf16.xpose.msra.mxu0 0
    %424 = vmatprep.subr.bf16.mxu0 0
    %425 = vmatpush1.bf16.xpose.msra.mxu0 0
    %426 = vmatprep.mubr.bf16.mxu0 0
    %427 = vmatmul.mubr.bf16.gmra.mrb[0].mxu0 %v389
    %v428 = vpop.f32.mrb[0].mxu0
    %v429 = vadd.f32 %v29, %v428
    %v430 = vpop.f32.mrb[0].mxu0
    %v431 = vpop.f32.mrb[0].mxu0
    %v432 = vpop.f32.mrb[0].mxu0
    %433 = vdwg.mxu0
    %435 = vrot.lane.b32.xlu0 %v137, 96
    %v436 = vpop.permute.xlu0 %435
    %v438 = vsel %vm142, %v137, 0
    %v441 = vsel %vm142, %v436, 0
    %443 = vmatprep.subr.bf16.mxu0 0
    %444 = vmatpush1.bf16.xpose.msra.mxu0 %v441
    %445 = vmatprep.subr.bf16.mxu0 0
    %446 = vmatpush1.bf16.xpose.msra.mxu0 0
    %447 = vmatprep.subr.bf16.mxu0 0
    %448 = vmatpush1.bf16.xpose.msra.mxu0 0
    %449 = vmatprep.subr.bf16.mxu0 0
    %450 = vmatpush1.bf16.xpose.msra.mxu0 0
    %451 = vmatprep.subr.bf16.mxu0 0
    %452 = vmatpush1.bf16.xpose.msra.mxu0 0
    %453 = vmatprep.subr.bf16.mxu0 0
    %454 = vmatpush1.bf16.xpose.msra.mxu0 0
    %455 = vmatprep.subr.bf16.mxu0 0
    %456 = vmatpush1.bf16.xpose.msra.mxu0 0
    %457 = vmatprep.subr.bf16.mxu0 0
    %458 = vmatpush1.bf16.xpose.msra.mxu0 0
    %459 = vmatprep.subr.bf16.mxu0 0
    %460 = vmatpush1.bf16.xpose.msra.mxu0 0
    %461 = vmatprep.subr.bf16.mxu0 0
    %462 = vmatpush1.bf16.xpose.msra.mxu0 0
    %463 = vmatprep.subr.bf16.mxu0 0
    %464 = vmatpush1.bf16.xpose.msra.mxu0 0
    %465 = vmatprep.subr.bf16.mxu0 0
    %466 = vmatpush1.bf16.xpose.msra.mxu0 0
    %467 = vmatprep.subr.bf16.mxu0 0
    %468 = vmatpush1.bf16.xpose.msra.mxu0 0
    %469 = vmatprep.subr.bf16.mxu0 0
    %470 = vmatpush1.bf16.xpose.msra.mxu0 0
    %471 = vmatprep.subr.bf16.mxu0 0
    %472 = vmatpush1.bf16.xpose.msra.mxu0 0
    %473 = vmatprep.subr.bf16.mxu0 0
    %474 = vmatpush1.bf16.xpose.msra.mxu0 0
    %475 = vmatprep.mubr.bf16.mxu0 0
    %476 = vmatmul.mubr.bf16.gmra.mrb[0].mxu0 %v438
    %v477 = vpop.f32.mrb[0].mxu0
    %v478 = vadd.f32 %v29, %v477
    %v479 = vpop.f32.mrb[0].mxu0
    %v480 = vpop.f32.mrb[0].mxu0
    %v481 = vpop.f32.mrb[0].mxu0
    %482 = vdwg.mxu0
    %484 = vrot.lane.b32.xlu0 %v138, 96
    %v485 = vpop.permute.xlu0 %484
    %v487 = vsel %vm142, %v138, 0
    %v490 = vsel %vm142, %v485, 0
    %492 = vmatprep.subr.bf16.mxu0 0
    %493 = vmatpush1.bf16.xpose.msra.mxu0 %v490
    %494 = vmatprep.subr.bf16.mxu0 0
    %495 = vmatpush1.bf16.xpose.msra.mxu0 0
    %496 = vmatprep.subr.bf16.mxu0 0
    %497 = vmatpush1.bf16.xpose.msra.mxu0 0
    %498 = vmatprep.subr.bf16.mxu0 0
    %499 = vmatpush1.bf16.xpose.msra.mxu0 0
    %500 = vmatprep.subr.bf16.mxu0 0
    %501 = vmatpush1.bf16.xpose.msra.mxu0 0
    %502 = vmatprep.subr.bf16.mxu0 0
    %503 = vmatpush1.bf16.xpose.msra.mxu0 0
    %504 = vmatprep.subr.bf16.mxu0 0
    %505 = vmatpush1.bf16.xpose.msra.mxu0 0
    %506 = vmatprep.subr.bf16.mxu0 0
    %507 = vmatpush1.bf16.xpose.msra.mxu0 0
    %508 = vmatprep.subr.bf16.mxu0 0
    %509 = vmatpush1.bf16.xpose.msra.mxu0 0
    %510 = vmatprep.subr.bf16.mxu0 0
    %511 = vmatpush1.bf16.xpose.msra.mxu0 0
    %512 = vmatprep.subr.bf16.mxu0 0
    %513 = vmatpush1.bf16.xpose.msra.mxu0 0
    %514 = vmatprep.subr.bf16.mxu0 0
    %515 = vmatpush1.bf16.xpose.msra.mxu0 0
    %516 = vmatprep.subr.bf16.mxu0 0
    %517 = vmatpush1.bf16.xpose.msra.mxu0 0
    %518 = vmatprep.subr.bf16.mxu0 0
    %519 = vmatpush1.bf16.xpose.msra.mxu0 0
    %520 = vmatprep.subr.bf16.mxu0 0
    %521 = vmatpush1.bf16.xpose.msra.mxu0 0
    %522 = vmatprep.subr.bf16.mxu0 0
    %523 = vmatpush1.bf16.xpose.msra.mxu0 0
    %524 = vmatprep.mubr.bf16.mxu0 0
    %525 = vmatmul.mubr.bf16.gmra.mrb[0].mxu0 %v487
    %v526 = vpop.f32.mrb[0].mxu0
    %v527 = vadd.f32 %v29, %v526
    %v528 = vpop.f32.mrb[0].mxu0
    %v529 = vpop.f32.mrb[0].mxu0
    %v530 = vpop.f32.mrb[0].mxu0
    %531 = vdwg.mxu0
    %v532 = vsel %vm142, %v184, -inf
    %533 = vmax.xlane.f32.xlu0 %v532
    %v534 = vpop.xlane.xlu0 %533
    %v535 = vsel %vm142, %v233, -inf
    %536 = vmax.xlane.f32.xlu0 %v535
    %v537 = vpop.xlane.xlu0 %536
    %v538 = vsel %vm142, %v282, -inf
    %539 = vmax.xlane.f32.xlu0 %v538
    %v540 = vpop.xlane.xlu0 %539
    %v541 = vsel %vm142, %v331, -inf
    %542 = vmax.xlane.f32.xlu0 %v541
    %v543 = vpop.xlane.xlu0 %542
    %v544 = vsel %vm142, %v380, -inf
    %545 = vmax.xlane.f32.xlu0 %v544
    %v546 = vpop.xlane.xlu0 %545
    %v547 = vsel %vm142, %v429, -inf
    %548 = vmax.xlane.f32.xlu0 %v547
    %v549 = vpop.xlane.xlu0 %548
    %v550 = vsel %vm142, %v478, -inf
    %551 = vmax.xlane.f32.xlu0 %v550
    %v552 = vpop.xlane.xlu0 %551
    %v553 = vsel %vm142, %v527, -inf
    %554 = vmax.xlane.f32.xlu0 %v553
    %v555 = vpop.xlane.xlu0 %554
    %v556 = vsub.f32 %v184, %v534
    %v557 = vsub.f32 %v233, %v537
    %v558 = vsub.f32 %v282, %v540
    %v559 = vsub.f32 %v331, %v543
    %v560 = vsub.f32 %v380, %v546
    %v561 = vsub.f32 %v429, %v549
    %v562 = vsub.f32 %v478, %v552
    %v563 = vsub.f32 %v527, %v555
    %v564 = vmul.f32 %v556, 1.442695
    %v565 = vpow.pop %v564
    %v566 = vmul.f32 %v557, 1.442695
    %v567 = vpow.pop %v566
    %v568 = vmul.f32 %v558, 1.442695
    %v569 = vpow.pop %v568
    %v570 = vmul.f32 %v559, 1.442695
    %v571 = vpow.pop %v570
    %v572 = vmul.f32 %v560, 1.442695
    %v573 = vpow.pop %v572
    %v574 = vmul.f32 %v561, 1.442695
    %v575 = vpow.pop %v574
    %v576 = vmul.f32 %v562, 1.442695
    %v577 = vpow.pop %v576
    %v578 = vmul.f32 %v563, 1.442695
    %v579 = vpow.pop %v578
    %v580 = vsel %vm142, %v565, 0.0
    %581 = vadd.xlane.f32.xlu0 %v580
    %v582 = vpop.xlane.xlu0 %581
    %v583 = vsel %vm142, %v567, 0.0
    %584 = vadd.xlane.f32.xlu0 %v583
    %v585 = vpop.xlane.xlu0 %584
    %v586 = vsel %vm142, %v569, 0.0
    %587 = vadd.xlane.f32.xlu0 %v586
    %v588 = vpop.xlane.xlu0 %587
    %v589 = vsel %vm142, %v571, 0.0
    %590 = vadd.xlane.f32.xlu0 %v589
    %v591 = vpop.xlane.xlu0 %590
    %v592 = vsel %vm142, %v573, 0.0
    %593 = vadd.xlane.f32.xlu0 %v592
    %v594 = vpop.xlane.xlu0 %593
    %v595 = vsel %vm142, %v575, 0.0
    %596 = vadd.xlane.f32.xlu0 %v595
    %v597 = vpop.xlane.xlu0 %596
    %v598 = vsel %vm142, %v577, 0.0
    %599 = vadd.xlane.f32.xlu0 %v598
    %v600 = vpop.xlane.xlu0 %599
    %v601 = vsel %vm142, %v579, 0.0
    %602 = vadd.xlane.f32.xlu0 %v601
    %v603 = vpop.xlane.xlu0 %602
    %v604 = vrcp.pop %v582
    %v605 = vrcp.pop %v585
    %v606 = vrcp.pop %v588
    %v607 = vrcp.pop %v591
    %v608 = vrcp.pop %v594
    %v609 = vrcp.pop %v597
    %v610 = vrcp.pop %v600
    %v611 = vrcp.pop %v603
    %v612 = vmul.f32 %v565, %v604
    %v613 = vmul.f32 %v567, %v605
    %v614 = vmul.f32 %v569, %v606
    %v615 = vmul.f32 %v571, %v607
    %v616 = vmul.f32 %v573, %v608
    %v617 = vmul.f32 %v575, %v609
    %v618 = vmul.f32 %v577, %v610
    %v619 = vmul.f32 %v579, %v611
    %v620 = vpack.c.bf16 %v612, %v612
    %v621 = vpack.c.bf16 %v613, %v613
    %v622 = vpack.c.bf16 %v614, %v614
    %v623 = vpack.c.bf16 %v615, %v615
    %v624 = vpack.c.bf16 %v616, %v616
    %v625 = vpack.c.bf16 %v617, %v617
    %v626 = vpack.c.bf16 %v618, %v618
    %v627 = vpack.c.bf16 %v619, %v619
    %628 = vrot.lane.b32.xlu0 %v131, 64
    %v629 = vpop.permute.xlu0 %628
    %v631 = vsel %vm142, %v620, 0
    %vm633 = vcmask 1043456
    %v635 = vsel %vm633, %v629, 0
    %637 = vmatprep.subr.bf16.mxu0 0
    %638 = vmatpush1.bf16.msra.mxu0 %v635
    %639 = vmatprep.subr.bf16.mxu0 0
    %640 = vmatpush1.bf16.msra.mxu0 0
    %641 = vmatprep.subr.bf16.mxu0 0
    %642 = vmatpush1.bf16.msra.mxu0 0
    %643 = vmatprep.subr.bf16.mxu0 0
    %644 = vmatpush1.bf16.msra.mxu0 0
    %645 = vmatprep.subr.bf16.mxu0 0
    %646 = vmatpush1.bf16.msra.mxu0 0
    %647 = vmatprep.subr.bf16.mxu0 0
    %648 = vmatpush1.bf16.msra.mxu0 0
    %649 = vmatprep.subr.bf16.mxu0 0
    %650 = vmatpush1.bf16.msra.mxu0 0
    %651 = vmatprep.subr.bf16.mxu0 0
    %652 = vmatpush1.bf16.msra.mxu0 0
    %653 = vmatprep.subr.bf16.mxu0 0
    %654 = vmatpush1.bf16.msra.mxu0 0
    %655 = vmatprep.subr.bf16.mxu0 0
    %656 = vmatpush1.bf16.msra.mxu0 0
    %657 = vmatprep.subr.bf16.mxu0 0
    %658 = vmatpush1.bf16.msra.mxu0 0
    %659 = vmatprep.subr.bf16.mxu0 0
    %660 = vmatpush1.bf16.msra.mxu0 0
    %661 = vmatprep.subr.bf16.mxu0 0
    %662 = vmatpush1.bf16.msra.mxu0 0
    %663 = vmatprep.subr.bf16.mxu0 0
    %664 = vmatpush1.bf16.msra.mxu0 0
    %665 = vmatprep.subr.bf16.mxu0 0
    %666 = vmatpush1.bf16.msra.mxu0 0
    %667 = vmatprep.subr.bf16.mxu0 0
    %668 = vmatpush1.bf16.msra.mxu0 0
    %669 = vmatprep.mubr.bf16.mxu0 0
    %670 = vmatmul.mubr.bf16.gmra.mrb[0].mxu0 %v631
    %v671 = vpop.f32.mrb[0].mxu0
    %v672 = vadd.f32 0.0, %v671
    %v673 = vpop.f32.mrb[0].mxu0
    %v674 = vpop.f32.mrb[0].mxu0
    %v675 = vpop.f32.mrb[0].mxu0
    %676 = vdwg.mxu0
    %677 = vrot.lane.b32.xlu0 %v132, 64
    %v678 = vpop.permute.xlu0 %677
    %v680 = vsel %vm142, %v621, 0
    %v683 = vsel %vm633, %v678, 0
    %685 = vmatprep.subr.bf16.mxu0 0
    %686 = vmatpush1.bf16.msra.mxu0 %v683
    %687 = vmatprep.subr.bf16.mxu0 0
    %688 = vmatpush1.bf16.msra.mxu0 0
    %689 = vmatprep.subr.bf16.mxu0 0
    %690 = vmatpush1.bf16.msra.mxu0 0
    %691 = vmatprep.subr.bf16.mxu0 0
    %692 = vmatpush1.bf16.msra.mxu0 0
    %693 = vmatprep.subr.bf16.mxu0 0
    %694 = vmatpush1.bf16.msra.mxu0 0
    %695 = vmatprep.subr.bf16.mxu0 0
    %696 = vmatpush1.bf16.msra.mxu0 0
    %697 = vmatprep.subr.bf16.mxu0 0
    %698 = vmatpush1.bf16.msra.mxu0 0
    %699 = vmatprep.subr.bf16.mxu0 0
    %700 = vmatpush1.bf16.msra.mxu0 0
    %701 = vmatprep.subr.bf16.mxu0 0
    %702 = vmatpush1.bf16.msra.mxu0 0
    %703 = vmatprep.subr.bf16.mxu0 0
    %704 = vmatpush1.bf16.msra.mxu0 0
    %705 = vmatprep.subr.bf16.mxu0 0
    %706 = vmatpush1.bf16.msra.mxu0 0
    %707 = vmatprep.subr.bf16.mxu0 0
    %708 = vmatpush1.bf16.msra.mxu0 0
    %709 = vmatprep.subr.bf16.mxu0 0
    %710 = vmatpush1.bf16.msra.mxu0 0
    %711 = vmatprep.subr.bf16.mxu0 0
    %712 = vmatpush1.bf16.msra.mxu0 0
    %713 = vmatprep.subr.bf16.mxu0 0
    %714 = vmatpush1.bf16.msra.mxu0 0
    %715 = vmatprep.subr.bf16.mxu0 0
    %716 = vmatpush1.bf16.msra.mxu0 0
    %717 = vmatprep.mubr.bf16.mxu0 0
    %718 = vmatmul.mubr.bf16.gmra.mrb[0].mxu0 %v680
    %v719 = vpop.f32.mrb[0].mxu0
    %v720 = vadd.f32 0.0, %v719
    %v721 = vpop.f32.mrb[0].mxu0
    %v722 = vpop.f32.mrb[0].mxu0
    %v723 = vpop.f32.mrb[0].mxu0
    %724 = vdwg.mxu0
    %725 = vrot.lane.b32.xlu0 %v133, 64
    %v726 = vpop.permute.xlu0 %725
    %v728 = vsel %vm142, %v622, 0
    %v731 = vsel %vm633, %v726, 0
    %733 = vmatprep.subr.bf16.mxu0 0
    %734 = vmatpush1.bf16.msra.mxu0 %v731
    %735 = vmatprep.subr.bf16.mxu0 0
    %736 = vmatpush1.bf16.msra.mxu0 0
    %737 = vmatprep.subr.bf16.mxu0 0
    %738 = vmatpush1.bf16.msra.mxu0 0
    %739 = vmatprep.subr.bf16.mxu0 0
    %740 = vmatpush1.bf16.msra.mxu0 0
    %741 = vmatprep.subr.bf16.mxu0 0
    %742 = vmatpush1.bf16.msra.mxu0 0
    %743 = vmatprep.subr.bf16.mxu0 0
    %744 = vmatpush1.bf16.msra.mxu0 0
    %745 = vmatprep.subr.bf16.mxu0 0
    %746 = vmatpush1.bf16.msra.mxu0 0
    %747 = vmatprep.subr.bf16.mxu0 0
    %748 = vmatpush1.bf16.msra.mxu0 0
    %749 = vmatprep.subr.bf16.mxu0 0
    %750 = vmatpush1.bf16.msra.mxu0 0
    %751 = vmatprep.subr.bf16.mxu0 0
    %752 = vmatpush1.bf16.msra.mxu0 0
    %753 = vmatprep.subr.bf16.mxu0 0
    %754 = vmatpush1.bf16.msra.mxu0 0
    %755 = vmatprep.subr.bf16.mxu0 0
    %756 = vmatpush1.bf16.msra.mxu0 0
    %757 = vmatprep.subr.bf16.mxu0 0
    %758 = vmatpush1.bf16.msra.mxu0 0
    %759 = vmatprep.subr.bf16.mxu0 0
    %760 = vmatpush1.bf16.msra.mxu0 0
    %761 = vmatprep.subr.bf16.mxu0 0
    %762 = vmatpush1.bf16.msra.mxu0 0
    %763 = vmatprep.subr.bf16.mxu0 0
    %764 = vmatpush1.bf16.msra.mxu0 0
    %765 = vmatprep.mubr.bf16.mxu0 0
    %766 = vmatmul.mubr.bf16.gmra.mrb[0].mxu0 %v728
    %v767 = vpop.f32.mrb[0].mxu0
    %v768 = vadd.f32 0.0, %v767
    %v769 = vpop.f32.mrb[0].mxu0
    %v770 = vpop.f32.mrb[0].mxu0
    %v771 = vpop.f32.mrb[0].mxu0
    %772 = vdwg.mxu0
    %773 = vrot.lane.b32.xlu0 %v134, 64
    %v774 = vpop.permute.xlu0 %773
    %v776 = vsel %vm142, %v623, 0
    %v779 = vsel %vm633, %v774, 0
    %781 = vmatprep.subr.bf16.mxu0 0
    %782 = vmatpush1.bf16.msra.mxu0 %v779
    %783 = vmatprep.subr.bf16.mxu0 0
    %784 = vmatpush1.bf16.msra.mxu0 0
    %785 = vmatprep.subr.bf16.mxu0 0
    %786 = vmatpush1.bf16.msra.mxu0 0
    %787 = vmatprep.subr.bf16.mxu0 0
    %788 = vmatpush1.bf16.msra.mxu0 0
    %789 = vmatprep.subr.bf16.mxu0 0
    %790 = vmatpush1.bf16.msra.mxu0 0
    %791 = vmatprep.subr.bf16.mxu0 0
    %792 = vmatpush1.bf16.msra.mxu0 0
    %793 = vmatprep.subr.bf16.mxu0 0
    %794 = vmatpush1.bf16.msra.mxu0 0
    %795 = vmatprep.subr.bf16.mxu0 0
    %796 = vmatpush1.bf16.msra.mxu0 0
    %797 = vmatprep.subr.bf16.mxu0 0
    %798 = vmatpush1.bf16.msra.mxu0 0
    %799 = vmatprep.subr.bf16.mxu0 0
    %800 = vmatpush1.bf16.msra.mxu0 0
    %801 = vmatprep.subr.bf16.mxu0 0
    %802 = vmatpush1.bf16.msra.mxu0 0
    %803 = vmatprep.subr.bf16.mxu0 0
    %804 = vmatpush1.bf16.msra.mxu0 0
    %805 = vmatprep.subr.bf16.mxu0 0
    %806 = vmatpush1.bf16.msra.mxu0 0
    %807 = vmatprep.subr.bf16.mxu0 0
    %808 = vmatpush1.bf16.msra.mxu0 0
    %809 = vmatprep.subr.bf16.mxu0 0
    %810 = vmatpush1.bf16.msra.mxu0 0
    %811 = vmatprep.subr.bf16.mxu0 0
    %812 = vmatpush1.bf16.msra.mxu0 0
    %813 = vmatprep.mubr.bf16.mxu0 0
    %814 = vmatmul.mubr.bf16.gmra.mrb[0].mxu0 %v776
    %v815 = vpop.f32.mrb[0].mxu0
    %v816 = vadd.f32 0.0, %v815
    %v817 = vpop.f32.mrb[0].mxu0
    %v818 = vpop.f32.mrb[0].mxu0
    %v819 = vpop.f32.mrb[0].mxu0
    %820 = vdwg.mxu0
    %821 = vrot.lane.b32.xlu0 %v135, 64
    %v822 = vpop.permute.xlu0 %821
    %v824 = vsel %vm142, %v624, 0
    %v827 = vsel %vm633, %v822, 0
    %829 = vmatprep.subr.bf16.mxu0 0
    %830 = vmatpush1.bf16.msra.mxu0 %v827
    %831 = vmatprep.subr.bf16.mxu0 0
    %832 = vmatpush1.bf16.msra.mxu0 0
    %833 = vmatprep.subr.bf16.mxu0 0
    %834 = vmatpush1.bf16.msra.mxu0 0
    %835 = vmatprep.subr.bf16.mxu0 0
    %836 = vmatpush1.bf16.msra.mxu0 0
    %837 = vmatprep.subr.bf16.mxu0 0
    %838 = vmatpush1.bf16.msra.mxu0 0
    %839 = vmatprep.subr.bf16.mxu0 0
    %840 = vmatpush1.bf16.msra.mxu0 0
    %841 = vmatprep.subr.bf16.mxu0 0
    %842 = vmatpush1.bf16.msra.mxu0 0
    %843 = vmatprep.subr.bf16.mxu0 0
    %844 = vmatpush1.bf16.msra.mxu0 0
    %845 = vmatprep.subr.bf16.mxu0 0
    %846 = vmatpush1.bf16.msra.mxu0 0
    %847 = vmatprep.subr.bf16.mxu0 0
    %848 = vmatpush1.bf16.msra.mxu0 0
    %849 = vmatprep.subr.bf16.mxu0 0
    %850 = vmatpush1.bf16.msra.mxu0 0
    %851 = vmatprep.subr.bf16.mxu0 0
    %852 = vmatpush1.bf16.msra.mxu0 0
    %853 = vmatprep.subr.bf16.mxu0 0
    %854 = vmatpush1.bf16.msra.mxu0 0
    %855 = vmatprep.subr.bf16.mxu0 0
    %856 = vmatpush1.bf16.msra.mxu0 0
    %857 = vmatprep.subr.bf16.mxu0 0
    %858 = vmatpush1.bf16.msra.mxu0 0
    %859 = vmatprep.subr.bf16.mxu0 0
    %860 = vmatpush1.bf16.msra.mxu0 0
    %861 = vmatprep.mubr.bf16.mxu0 0
    %862 = vmatmul.mubr.bf16.gmra.mrb[0].mxu0 %v824
    %v863 = vpop.f32.mrb[0].mxu0
    %v864 = vadd.f32 0.0, %v863
    %v865 = vpop.f32.mrb[0].mxu0
    %v866 = vpop.f32.mrb[0].mxu0
    %v867 = vpop.f32.mrb[0].mxu0
    %868 = vdwg.mxu0
    %869 = vrot.lane.b32.xlu0 %v136, 64
    %v870 = vpop.permute.xlu0 %869
    %v872 = vsel %vm142, %v625, 0
    %v875 = vsel %vm633, %v870, 0
    %877 = vmatprep.subr.bf16.mxu0 0
    %878 = vmatpush1.bf16.msra.mxu0 %v875
    %879 = vmatprep.subr.bf16.mxu0 0
    %880 = vmatpush1.bf16.msra.mxu0 0
    %881 = vmatprep.subr.bf16.mxu0 0
    %882 = vmatpush1.bf16.msra.mxu0 0
    %883 = vmatprep.subr.bf16.mxu0 0
    %884 = vmatpush1.bf16.msra.mxu0 0
    %885 = vmatprep.subr.bf16.mxu0 0
    %886 = vmatpush1.bf16.msra.mxu0 0
    %887 = vmatprep.subr.bf16.mxu0 0
    %888 = vmatpush1.bf16.msra.mxu0 0
    %889 = vmatprep.subr.bf16.mxu0 0
    %890 = vmatpush1.bf16.msra.mxu0 0
    %891 = vmatprep.subr.bf16.mxu0 0
    %892 = vmatpush1.bf16.msra.mxu0 0
    %893 = vmatprep.subr.bf16.mxu0 0
    %894 = vmatpush1.bf16.msra.mxu0 0
    %895 = vmatprep.subr.bf16.mxu0 0
    %896 = vmatpush1.bf16.msra.mxu0 0
    %897 = vmatprep.subr.bf16.mxu0 0
    %898 = vmatpush1.bf16.msra.mxu0 0
    %899 = vmatprep.subr.bf16.mxu0 0
    %900 = vmatpush1.bf16.msra.mxu0 0
    %901 = vmatprep.subr.bf16.mxu0 0
    %902 = vmatpush1.bf16.msra.mxu0 0
    %903 = vmatprep.subr.bf16.mxu0 0
    %904 = vmatpush1.bf16.msra.mxu0 0
    %905 = vmatprep.subr.bf16.mxu0 0
    %906 = vmatpush1.bf16.msra.mxu0 0
    %907 = vmatprep.subr.bf16.mxu0 0
    %908 = vmatpush1.bf16.msra.mxu0 0
    %909 = vmatprep.mubr.bf16.mxu0 0
    %910 = vmatmul.mubr.bf16.gmra.mrb[0].mxu0 %v872
    %v911 = vpop.f32.mrb[0].mxu0
    %v912 = vadd.f32 0.0, %v911
    %v913 = vpop.f32.mrb[0].mxu0
    %v914 = vpop.f32.mrb[0].mxu0
    %v915 = vpop.f32.mrb[0].mxu0
    %916 = vdwg.mxu0
    %917 = vrot.lane.b32.xlu0 %v137, 64
    %v918 = vpop.permute.xlu0 %917
    %v920 = vsel %vm142, %v626, 0
    %v923 = vsel %vm633, %v918, 0
    %925 = vmatprep.subr.bf16.mxu0 0
    %926 = vmatpush1.bf16.msra.mxu0 %v923
    %927 = vmatprep.subr.bf16.mxu0 0
    %928 = vmatpush1.bf16.msra.mxu0 0
    %929 = vmatprep.subr.bf16.mxu0 0
    %930 = vmatpush1.bf16.msra.mxu0 0
    %931 = vmatprep.subr.bf16.mxu0 0
    %932 = vmatpush1.bf16.msra.mxu0 0
    %933 = vmatprep.subr.bf16.mxu0 0
    %934 = vmatpush1.bf16.msra.mxu0 0
    %935 = vmatprep.subr.bf16.mxu0 0
    %936 = vmatpush1.bf16.msra.mxu0 0
    %937 = vmatprep.subr.bf16.mxu0 0
    %938 = vmatpush1.bf16.msra.mxu0 0
    %939 = vmatprep.subr.bf16.mxu0 0
    %940 = vmatpush1.bf16.msra.mxu0 0
    %941 = vmatprep.subr.bf16.mxu0 0
    %942 = vmatpush1.bf16.msra.mxu0 0
    %943 = vmatprep.subr.bf16.mxu0 0
    %944 = vmatpush1.bf16.msra.mxu0 0
    %945 = vmatprep.subr.bf16.mxu0 0
    %946 = vmatpush1.bf16.msra.mxu0 0
    %947 = vmatprep.subr.bf16.mxu0 0
    %948 = vmatpush1.bf16.msra.mxu0 0
    %949 = vmatprep.subr.bf16.mxu0 0
    %950 = vmatpush1.bf16.msra.mxu0 0
    %951 = vmatprep.subr.bf16.mxu0 0
    %952 = vmatpush1.bf16.msra.mxu0 0
    %953 = vmatprep.subr.bf16.mxu0 0
    %954 = vmatpush1.bf16.msra.mxu0 0
    %955 = vmatprep.subr.bf16.mxu0 0
    %956 = vmatpush1.bf16.msra.mxu0 0
    %957 = vmatprep.mubr.bf16.mxu0 0
    %958 = vmatmul.mubr.bf16.gmra.mrb[0].mxu0 %v920
    %v959 = vpop.f32.mrb[0].mxu0
    %v960 = vadd.f32 0.0, %v959
    %v961 = vpop.f32.mrb[0].mxu0
    %v962 = vpop.f32.mrb[0].mxu0
    %v963 = vpop.f32.mrb[0].mxu0
    %964 = vdwg.mxu0
    %965 = vrot.lane.b32.xlu0 %v138, 64
    %v966 = vpop.permute.xlu0 %965
    %v968 = vsel %vm142, %v627, 0
    %v971 = vsel %vm633, %v966, 0
    %973 = vmatprep.subr.bf16.mxu0 0
    %974 = vmatpush1.bf16.msra.mxu0 %v971
    %975 = vmatprep.subr.bf16.mxu0 0
    %976 = vmatpush1.bf16.msra.mxu0 0
    %977 = vmatprep.subr.bf16.mxu0 0
    %978 = vmatpush1.bf16.msra.mxu0 0
    %979 = vmatprep.subr.bf16.mxu0 0
    %980 = vmatpush1.bf16.msra.mxu0 0
    %981 = vmatprep.subr.bf16.mxu0 0
    %982 = vmatpush1.bf16.msra.mxu0 0
    %983 = vmatprep.subr.bf16.mxu0 0
    %984 = vmatpush1.bf16.msra.mxu0 0
    %985 = vmatprep.subr.bf16.mxu0 0
    %986 = vmatpush1.bf16.msra.mxu0 0
    %987 = vmatprep.subr.bf16.mxu0 0
    %988 = vmatpush1.bf16.msra.mxu0 0
    %989 = vmatprep.subr.bf16.mxu0 0
    %990 = vmatpush1.bf16.msra.mxu0 0
    %991 = vmatprep.subr.bf16.mxu0 0
    %992 = vmatpush1.bf16.msra.mxu0 0
    %993 = vmatprep.subr.bf16.mxu0 0
    %994 = vmatpush1.bf16.msra.mxu0 0
    %995 = vmatprep.subr.bf16.mxu0 0
    %996 = vmatpush1.bf16.msra.mxu0 0
    %997 = vmatprep.subr.bf16.mxu0 0
    %998 = vmatpush1.bf16.msra.mxu0 0
    %999 = vmatprep.subr.bf16.mxu0 0
    %1000 = vmatpush1.bf16.msra.mxu0 0
    %1001 = vmatprep.subr.bf16.mxu0 0
    %1002 = vmatpush1.bf16.msra.mxu0 0
    %1003 = vmatprep.subr.bf16.mxu0 0
    %1004 = vmatpush1.bf16.msra.mxu0 0
    %1005 = vmatprep.mubr.bf16.mxu0 0
    %1006 = vmatmul.mubr.bf16.gmra.mrb[0].mxu0 %v968
    %v1007 = vpop.f32.mrb[0].mxu0
    %v1008 = vadd.f32 0.0, %v1007
    %v1009 = vpop.f32.mrb[0].mxu0
    %v1010 = vpop.f32.mrb[0].mxu0
    %v1011 = vpop.f32.mrb[0].mxu0
    %1012 = vdwg.mxu0
    %1015 = vrot.lane.b32.xlu0 %v720, 8
    %v1016 = vpop.permute.xlu0 %1015
    %1017 = vrot.lane.b32.xlu0 %v912, 8
    %v1018 = vpop.permute.xlu0 %1017
    %1023 = vrot.lane.b32.xlu0 %v768, 16
    %v1024 = vpop.permute.xlu0 %1023
    %1025 = vrot.lane.b32.xlu0 %v960, 16
    %v1026 = vpop.permute.xlu0 %1025
    %1031 = vrot.lane.b32.xlu0 %v816, 24
    %v1032 = vpop.permute.xlu0 %1031
    %1033 = vrot.lane.b32.xlu0 %v1008, 24
    %v1034 = vpop.permute.xlu0 %1033
    %v1037 = vsel %vm142, %v672, %v1016
    %v1038 = vsel %vm142, %v864, %v1018
    %vm1039 = vcmask 130048
    %v1040 = vsel %vm1039, %v1037, %v1024
    %v1041 = vsel %vm1039, %v1038, %v1026
    %vm1042 = vcmask 195584
    %v1043 = vsel %vm1042, %v1040, %v1032
    %v1044 = vsel %vm1042, %v1041, %v1034
    %v1045 = vpack.c.bf16 %v1044, %v1043
    %v1046 = vlaneseq
    %v1047 = vshrl.u32 %v1046, 7
    %v1048 = vsub.s32 1, %v1047
    %v1049 = vrot.slane %v47, %v1048
    %v1050 = vunpack.c.h.b16 %v31
    %v1051 = vunpack.c.h.b16 %v33
    %v1052 = vunpack.c.h.b16 %v35
    %v1053 = vunpack.c.h.b16 %v37
    %v1054 = vpack.c.b16 %v1051, %v1050
    %v1055 = vpack.c.b16 %v1053, %v1052
    %1056 = vrot.lane.b32.xlu0 %v1054, 64
    %v1057 = vpop.permute.xlu0 %1056
    %1058 = vrot.lane.b32.xlu0 %v1055, 64
    %v1059 = vpop.permute.xlu0 %1058
    %v1063 = vsel %vm66, %v1045, 0
    %1065 = vmatprep.subr.bf16.mxu0 0
    %1066 = vmatpush1.bf16.msra.mxu0 %v1057
    %1067 = vmatprep.subr.bf16.mxu0 0
    %1068 = vmatpush1.bf16.msra.mxu0 %v1059
    %1069 = vmatprep.subr.bf16.mxu0 0
    %1070 = vmatpush1.bf16.msra.mxu0 0
    %1071 = vmatprep.subr.bf16.mxu0 0
    %1072 = vmatpush1.bf16.msra.mxu0 0
    %1073 = vmatprep.subr.bf16.mxu0 0
    %1074 = vmatpush1.bf16.msra.mxu0 0
    %1075 = vmatprep.subr.bf16.mxu0 0
    %1076 = vmatpush1.bf16.msra.mxu0 0
    %1077 = vmatprep.subr.bf16.mxu0 0
    %1078 = vmatpush1.bf16.msra.mxu0 0
    %1079 = vmatprep.subr.bf16.mxu0 0
    %1080 = vmatpush1.bf16.msra.mxu0 0
    %1081 = vmatprep.subr.bf16.mxu0 0
    %1082 = vmatpush1.bf16.msra.mxu0 0
    %1083 = vmatprep.subr.bf16.mxu0 0
    %1084 = vmatpush1.bf16.msra.mxu0 0
    %1085 = vmatprep.subr.bf16.mxu0 0
    %1086 = vmatpush1.bf16.msra.mxu0 0
    %1087 = vmatprep.subr.bf16.mxu0 0
    %1088 = vmatpush1.bf16.msra.mxu0 0
    %1089 = vmatprep.subr.bf16.mxu0 0
    %1090 = vmatpush1.bf16.msra.mxu0 0
    %1091 = vmatprep.subr.bf16.mxu0 0
    %1092 = vmatpush1.bf16.msra.mxu0 0
    %1093 = vmatprep.subr.bf16.mxu0 0
    %1094 = vmatpush1.bf16.msra.mxu0 0
    %1095 = vmatprep.subr.bf16.mxu0 0
    %1096 = vmatpush1.bf16.msra.mxu0 0
    %1097 = vmatprep.mubr.bf16.mxu0 0
    %1098 = vmatmul.mubr.bf16.gmra.mrb[0].mxu0 %v1063
    %v1099 = vpop.f32.mrb[0].mxu0
    %v1100 = vadd.f32 %v1049, %v1099
    %v1101 = vpop.f32.mrb[0].mxu0
    %v1102 = vpop.f32.mrb[0].mxu0
    %v1103 = vadd.f32 %v1049, %v1102
    %v1104 = vpop.f32.mrb[0].mxu0
    %1105 = vdwg.mxu0
    %v1106 = vadd.f32 %v25, %v1100
    %v1107 = vadd.f32 %v26, %v1103
    %v1108 = vsel %vm66, %v1106, 0.0
    %1109 = vadd.xlane.f32.xlu0 %v1108
    %v1110 = vpop.xlane.xlu0 %1109
    %v1111 = vsel %vm66, %v1107, 0.0
    %1112 = vadd.xlane.f32.xlu0 %v1111
    %v1113 = vpop.xlane.xlu0 %1112
    %v1114 = vrcp.pop 32.0
    %v1115 = vmul.f32 %v1110, %v1114
    %v1116 = vmul.f32 %v1113, %v1114
    %v1117 = vsub.f32 %v1106, %v1115
    %v1118 = vsub.f32 %v1107, %v1116
    %v1119 = vmul.f32 %v1117, %v1117
    %v1120 = vmul.f32 %v1118, %v1118
    %v1121 = vsel %vm66, %v1119, 0.0
    %1122 = vadd.xlane.f32.xlu0 %v1121
    %v1123 = vpop.xlane.xlu0 %1122
    %v1124 = vsel %vm66, %v1120, 0.0
    %1125 = vadd.xlane.f32.xlu0 %v1124
    %v1126 = vpop.xlane.xlu0 %1125
    %v1127 = vmul.f32 %v1123, %v1114
    %v1128 = vmul.f32 %v1126, %v1114
    %v1129 = vadd.f32 %v1127, 1e-05
    %v1130 = vadd.f32 %v1128, 1e-05
    %v1131 = vrsqrt.pop %v1129
    %v1132 = vrsqrt.pop %v1130
    %v1133 = vmul.f32 %v1117, %v1131
    %v1134 = vmul.f32 %v1118, %v1132
    %v1135 = vlaneseq
    %v1136 = vshrl.u32 %v1135, 7
    %v1137 = vsub.s32 7, %v1136
    %v1138 = vrot.slane %v47, %v1137
    %v1139 = vmul.f32 %v1133, %v1138
    %v1140 = vmul.f32 %v1134, %v1138
    %v1141 = vlaneseq
    %v1142 = vshrl.u32 %v1141, 7
    %v1143 = vsub.s32 0, %v1142
    %v1144 = vrot.slane %v48, %v1143
    %v1145 = vadd.f32 %v1139, %v1144
    %v1146 = vadd.f32 %v1140, %v1144
    %v1147 = vpack.c.bf16 %v1146, %v1145
    %v1148 = vlaneseq
    %v1149 = vshrl.u32 %v1148, 7
    %v1150 = vsub.s32 2, %v1149
    %v1151 = vrot.slane %v47, %v1150
    %1152 = vrot.lane.b32.xlu0 %v62, 32
    %v1153 = vpop.permute.xlu0 %1152
    %1154 = vrot.lane.b32.xlu0 %v63, 32
    %v1155 = vpop.permute.xlu0 %1154
    %v1159 = vsel %vm66, %v1147, 0
    %1161 = vmatprep.subr.bf16.mxu0 0
    %1162 = vmatpush1.bf16.msra.mxu0 %v1153
    %1163 = vmatprep.subr.bf16.mxu0 0
    %1164 = vmatpush1.bf16.msra.mxu0 %v1155
    %1165 = vmatprep.subr.bf16.mxu0 0
    %1166 = vmatpush1.bf16.msra.mxu0 0
    %1167 = vmatprep.subr.bf16.mxu0 0
    %1168 = vmatpush1.bf16.msra.mxu0 0
    %1169 = vmatprep.subr.bf16.mxu0 0
    %1170 = vmatpush1.bf16.msra.mxu0 0
    %1171 = vmatprep.subr.bf16.mxu0 0
    %1172 = vmatpush1.bf16.msra.mxu0 0
    %1173 = vmatprep.subr.bf16.mxu0 0
    %1174 = vmatpush1.bf16.msra.mxu0 0
    %1175 = vmatprep.subr.bf16.mxu0 0
    %1176 = vmatpush1.bf16.msra.mxu0 0
    %1177 = vmatprep.subr.bf16.mxu0 0
    %1178 = vmatpush1.bf16.msra.mxu0 0
    %1179 = vmatprep.subr.bf16.mxu0 0
    %1180 = vmatpush1.bf16.msra.mxu0 0
    %1181 = vmatprep.subr.bf16.mxu0 0
    %1182 = vmatpush1.bf16.msra.mxu0 0
    %1183 = vmatprep.subr.bf16.mxu0 0
    %1184 = vmatpush1.bf16.msra.mxu0 0
    %1185 = vmatprep.subr.bf16.mxu0 0
    %1186 = vmatpush1.bf16.msra.mxu0 0
    %1187 = vmatprep.subr.bf16.mxu0 0
    %1188 = vmatpush1.bf16.msra.mxu0 0
    %1189 = vmatprep.subr.bf16.mxu0 0
    %1190 = vmatpush1.bf16.msra.mxu0 0
    %1191 = vmatprep.subr.bf16.mxu0 0
    %1192 = vmatpush1.bf16.msra.mxu0 0
    %1193 = vmatprep.mubr.bf16.mxu0 0
    %1194 = vmatmul.mubr.bf16.gmra.mrb[0].mxu0 %v1159
    %v1195 = vpop.f32.mrb[0].mxu0
    %v1196 = vadd.f32 %v1151, %v1195
    %v1197 = vpop.f32.mrb[0].mxu0
    %v1198 = vpop.f32.mrb[0].mxu0
    %v1199 = vadd.f32 %v1151, %v1198
    %v1200 = vpop.f32.mrb[0].mxu0
    %1201 = vdwg.mxu0
    %v1202 = vlaneseq
    %v1203 = vshrl.u32 %v1202, 7
    %v1204 = vsub.s32 3, %v1203
    %v1205 = vrot.slane %v47, %v1204
    %v1209 = vsel %vm66, %v30, 0
    %1211 = vmatprep.subr.bf16.mxu0 0
    %1212 = vmatpush1.bf16.msra.mxu0 %v1054
    %1213 = vmatprep.subr.bf16.mxu0 0
    %1214 = vmatpush1.bf16.msra.mxu0 %v1055
    %1215 = vmatprep.subr.bf16.mxu0 0
    %1216 = vmatpush1.bf16.msra.mxu0 0
    %1217 = vmatprep.subr.bf16.mxu0 0
    %1218 = vmatpush1.bf16.msra.mxu0 0
    %1219 = vmatprep.subr.bf16.mxu0 0
    %1220 = vmatpush1.bf16.msra.mxu0 0
    %1221 = vmatprep.subr.bf16.mxu0 0
    %1222 = vmatpush1.bf16.msra.mxu0 0
    %1223 = vmatprep.subr.bf16.mxu0 0
    %1224 = vmatpush1.bf16.msra.mxu0 0
    %1225 = vmatprep.subr.bf16.mxu0 0
    %1226 = vmatpush1.bf16.msra.mxu0 0
    %1227 = vmatprep.subr.bf16.mxu0 0
    %1228 = vmatpush1.bf16.msra.mxu0 0
    %1229 = vmatprep.subr.bf16.mxu0 0
    %1230 = vmatpush1.bf16.msra.mxu0 0
    %1231 = vmatprep.subr.bf16.mxu0 0
    %1232 = vmatpush1.bf16.msra.mxu0 0
    %1233 = vmatprep.subr.bf16.mxu0 0
    %1234 = vmatpush1.bf16.msra.mxu0 0
    %1235 = vmatprep.subr.bf16.mxu0 0
    %1236 = vmatpush1.bf16.msra.mxu0 0
    %1237 = vmatprep.subr.bf16.mxu0 0
    %1238 = vmatpush1.bf16.msra.mxu0 0
    %1239 = vmatprep.subr.bf16.mxu0 0
    %1240 = vmatpush1.bf16.msra.mxu0 0
    %1241 = vmatprep.subr.bf16.mxu0 0
    %1242 = vmatpush1.bf16.msra.mxu0 0
    %1243 = vmatprep.mubr.bf16.mxu0 0
    %1244 = vmatmul.mubr.bf16.gmra.mrb[0].mxu0 %v1209
    %v1245 = vpop.f32.mrb[0].mxu0
    %v1246 = vadd.f32 %v1205, %v1245
    %v1247 = vpop.f32.mrb[0].mxu0
    %v1248 = vpop.f32.mrb[0].mxu0
    %v1249 = vadd.f32 %v1205, %v1248
    %v1250 = vpop.f32.mrb[0].mxu0
    %1251 = vdwg.mxu0
    %1254 = vrot.lane.b32.xlu0 %v1196, 120
    %v1255 = vpop.permute.xlu0 %1254
    %1256 = vrot.lane.b32.xlu0 %v1199, 120
    %v1257 = vpop.permute.xlu0 %1256
    %1260 = vrot.lane.b32.xlu0 %v1196, 112
    %v1261 = vpop.permute.xlu0 %1260
    %1262 = vrot.lane.b32.xlu0 %v1199, 112
    %v1263 = vpop.permute.xlu0 %1262
    %1266 = vrot.lane.b32.xlu0 %v1196, 104
    %v1267 = vpop.permute.xlu0 %1266
    %1268 = vrot.lane.b32.xlu0 %v1199, 104
    %v1269 = vpop.permute.xlu0 %1268
    %v1272 = vpack.c.bf16 %v1196, %v1196
    %v1273 = vpack.c.bf16 %v1255, %v1255
    %v1274 = vpack.c.bf16 %v1261, %v1261
    %v1275 = vpack.c.bf16 %v1267, %v1267
    %v1276 = vpack.c.bf16 %v1199, %v1199
    %v1277 = vpack.c.bf16 %v1257, %v1257
    %v1278 = vpack.c.bf16 %v1263, %v1263
    %v1279 = vpack.c.bf16 %v1269, %v1269
    %1282 = vrot.lane.b32.xlu0 %v1246, 120
    %v1283 = vpop.permute.xlu0 %1282
    %1284 = vrot.lane.b32.xlu0 %v1249, 120
    %v1285 = vpop.permute.xlu0 %1284
    %1288 = vrot.lane.b32.xlu0 %v1246, 112
    %v1289 = vpop.permute.xlu0 %1288
    %1290 = vrot.lane.b32.xlu0 %v1249, 112
    %v1291 = vpop.permute.xlu0 %1290
    %1294 = vrot.lane.b32.xlu0 %v1246, 104
    %v1295 = vpop.permute.xlu0 %1294
    %1296 = vrot.lane.b32.xlu0 %v1249, 104
    %v1297 = vpop.permute.xlu0 %1296
    %v1300 = vpack.c.bf16 %v1246, %v1246
    %v1301 = vpack.c.bf16 %v1283, %v1283
    %v1302 = vpack.c.bf16 %v1289, %v1289
    %v1303 = vpack.c.bf16 %v1295, %v1295
    %v1304 = vpack.c.bf16 %v1249, %v1249
    %v1305 = vpack.c.bf16 %v1285, %v1285
    %v1306 = vpack.c.bf16 %v1291, %v1291
    %v1307 = vpack.c.bf16 %v1297, %v1297
    %v1309 = vsel %vm142, %v1272, 0
    %v1312 = vsel %vm142, %v1300, 0
    %1314 = vmatprep.subr.bf16.mxu0 0
    %1315 = vmatpush1.bf16.xpose.msra.mxu0 %v1312
    %1316 = vmatprep.subr.bf16.mxu0 0
    %1317 = vmatpush1.bf16.xpose.msra.mxu0 0
    %1318 = vmatprep.subr.bf16.mxu0 0
    %1319 = vmatpush1.bf16.xpose.msra.mxu0 0
    %1320 = vmatprep.subr.bf16.mxu0 0
    %1321 = vmatpush1.bf16.xpose.msra.mxu0 0
    %1322 = vmatprep.subr.bf16.mxu0 0
    %1323 = vmatpush1.bf16.xpose.msra.mxu0 0
    %1324 = vmatprep.subr.bf16.mxu0 0
    %1325 = vmatpush1.bf16.xpose.msra.mxu0 0
    %1326 = vmatprep.subr.bf16.mxu0 0
    %1327 = vmatpush1.bf16.xpose.msra.mxu0 0
    %1328 = vmatprep.subr.bf16.mxu0 0
    %1329 = vmatpush1.bf16.xpose.msra.mxu0 0
    %1330 = vmatprep.subr.bf16.mxu0 0
    %1331 = vmatpush1.bf16.xpose.msra.mxu0 0
    %1332 = vmatprep.subr.bf16.mxu0 0
    %1333 = vmatpush1.bf16.xpose.msra.mxu0 0
    %1334 = vmatprep.subr.bf16.mxu0 0
    %1335 = vmatpush1.bf16.xpose.msra.mxu0 0
    %1336 = vmatprep.subr.bf16.mxu0 0
    %1337 = vmatpush1.bf16.xpose.msra.mxu0 0
    %1338 = vmatprep.subr.bf16.mxu0 0
    %1339 = vmatpush1.bf16.xpose.msra.mxu0 0
    %1340 = vmatprep.subr.bf16.mxu0 0
    %1341 = vmatpush1.bf16.xpose.msra.mxu0 0
    %1342 = vmatprep.subr.bf16.mxu0 0
    %1343 = vmatpush1.bf16.xpose.msra.mxu0 0
    %1344 = vmatprep.subr.bf16.mxu0 0
    %1345 = vmatpush1.bf16.xpose.msra.mxu0 0
    %1346 = vmatprep.mubr.bf16.mxu0 0
    %1347 = vmatmul.mubr.bf16.gmra.mrb[0].mxu0 %v1309
    %v1348 = vpop.f32.mrb[0].mxu0
    %v1349 = vadd.f32 0.0, %v1348
    %v1350 = vpop.f32.mrb[0].mxu0
    %v1351 = vpop.f32.mrb[0].mxu0
    %v1352 = vpop.f32.mrb[0].mxu0
    %1353 = vdwg.mxu0
    %v1355 = vsel %vm142, %v1273, 0
    %v1358 = vsel %vm142, %v1301, 0
    %1360 = vmatprep.subr.bf16.mxu0 0
    %1361 = vmatpush1.bf16.xpose.msra.mxu0 %v1358
    %1362 = vmatprep.subr.bf16.mxu0 0
    %1363 = vmatpush1.bf16.xpose.msra.mxu0 0
    %1364 = vmatprep.subr.bf16.mxu0 0
    %1365 = vmatpush1.bf16.xpose.msra.mxu0 0
    %1366 = vmatprep.subr.bf16.mxu0 0
    %1367 = vmatpush1.bf16.xpose.msra.mxu0 0
    %1368 = vmatprep.subr.bf16.mxu0 0
    %1369 = vmatpush1.bf16.xpose.msra.mxu0 0
    %1370 = vmatprep.subr.bf16.mxu0 0
    %1371 = vmatpush1.bf16.xpose.msra.mxu0 0
    %1372 = vmatprep.subr.bf16.mxu0 0
    %1373 = vmatpush1.bf16.xpose.msra.mxu0 0
    %1374 = vmatprep.subr.bf16.mxu0 0
    %1375 = vmatpush1.bf16.xpose.msra.mxu0 0
    %1376 = vmatprep.subr.bf16.mxu0 0
    %1377 = vmatpush1.bf16.xpose.msra.mxu0 0
    %1378 = vmatprep.subr.bf16.mxu0 0
    %1379 = vmatpush1.bf16.xpose.msra.mxu0 0
    %1380 = vmatprep.subr.bf16.mxu0 0
    %1381 = vmatpush1.bf16.xpose.msra.mxu0 0
    %1382 = vmatprep.subr.bf16.mxu0 0
    %1383 = vmatpush1.bf16.xpose.msra.mxu0 0
    %1384 = vmatprep.subr.bf16.mxu0 0
    %1385 = vmatpush1.bf16.xpose.msra.mxu0 0
    %1386 = vmatprep.subr.bf16.mxu0 0
    %1387 = vmatpush1.bf16.xpose.msra.mxu0 0
    %1388 = vmatprep.subr.bf16.mxu0 0
    %1389 = vmatpush1.bf16.xpose.msra.mxu0 0
    %1390 = vmatprep.subr.bf16.mxu0 0
    %1391 = vmatpush1.bf16.xpose.msra.mxu0 0
    %1392 = vmatprep.mubr.bf16.mxu0 0
    %1393 = vmatmul.mubr.bf16.gmra.mrb[0].mxu0 %v1355
    %v1394 = vpop.f32.mrb[0].mxu0
    %v1395 = vadd.f32 0.0, %v1394
    %v1396 = vpop.f32.mrb[0].mxu0
    %v1397 = vpop.f32.mrb[0].mxu0
    %v1398 = vpop.f32.mrb[0].mxu0
    %1399 = vdwg.mxu0
    %v1401 = vsel %vm142, %v1274, 0
    %v1404 = vsel %vm142, %v1302, 0
    %1406 = vmatprep.subr.bf16.mxu0 0
    %1407 = vmatpush1.bf16.xpose.msra.mxu0 %v1404
    %1408 = vmatprep.subr.bf16.mxu0 0
    %1409 = vmatpush1.bf16.xpose.msra.mxu0 0
    %1410 = vmatprep.subr.bf16.mxu0 0
    %1411 = vmatpush1.bf16.xpose.msra.mxu0 0
    %1412 = vmatprep.subr.bf16.mxu0 0
    %1413 = vmatpush1.bf16.xpose.msra.mxu0 0
    %1414 = vmatprep.subr.bf16.mxu0 0
    %1415 = vmatpush1.bf16.xpose.msra.mxu0 0
    %1416 = vmatprep.subr.bf16.mxu0 0
    %1417 = vmatpush1.bf16.xpose.msra.mxu0 0
    %1418 = vmatprep.subr.bf16.mxu0 0
    %1419 = vmatpush1.bf16.xpose.msra.mxu0 0
    %1420 = vmatprep.subr.bf16.mxu0 0
    %1421 = vmatpush1.bf16.xpose.msra.mxu0 0
    %1422 = vmatprep.subr.bf16.mxu0 0
    %1423 = vmatpush1.bf16.xpose.msra.mxu0 0
    %1424 = vmatprep.subr.bf16.mxu0 0
    %1425 = vmatpush1.bf16.xpose.msra.mxu0 0
    %1426 = vmatprep.subr.bf16.mxu0 0
    %1427 = vmatpush1.bf16.xpose.msra.mxu0 0
    %1428 = vmatprep.subr.bf16.mxu0 0
    %1429 = vmatpush1.bf16.xpose.msra.mxu0 0
    %1430 = vmatprep.subr.bf16.mxu0 0
    %1431 = vmatpush1.bf16.xpose.msra.mxu0 0
    %1432 = vmatprep.subr.bf16.mxu0 0
    %1433 = vmatpush1.bf16.xpose.msra.mxu0 0
    %1434 = vmatprep.subr.bf16.mxu0 0
    %1435 = vmatpush1.bf16.xpose.msra.mxu0 0
    %1436 = vmatprep.subr.bf16.mxu0 0
    %1437 = vmatpush1.bf16.xpose.msra.mxu0 0
    %1438 = vmatprep.mubr.bf16.mxu0 0
    %1439 = vmatmul.mubr.bf16.gmra.mrb[0].mxu0 %v1401
    %v1440 = vpop.f32.mrb[0].mxu0
    %v1441 = vadd.f32 0.0, %v1440
    %v1442 = vpop.f32.mrb[0].mxu0
    %v1443 = vpop.f32.mrb[0].mxu0
    %v1444 = vpop.f32.mrb[0].mxu0
    %1445 = vdwg.mxu0
    %v1447 = vsel %vm142, %v1275, 0
    %v1450 = vsel %vm142, %v1303, 0
    %1452 = vmatprep.subr.bf16.mxu0 0
    %1453 = vmatpush1.bf16.xpose.msra.mxu0 %v1450
    %1454 = vmatprep.subr.bf16.mxu0 0
    %1455 = vmatpush1.bf16.xpose.msra.mxu0 0
    %1456 = vmatprep.subr.bf16.mxu0 0
    %1457 = vmatpush1.bf16.xpose.msra.mxu0 0
    %1458 = vmatprep.subr.bf16.mxu0 0
    %1459 = vmatpush1.bf16.xpose.msra.mxu0 0
    %1460 = vmatprep.subr.bf16.mxu0 0
    %1461 = vmatpush1.bf16.xpose.msra.mxu0 0
    %1462 = vmatprep.subr.bf16.mxu0 0
    %1463 = vmatpush1.bf16.xpose.msra.mxu0 0
    %1464 = vmatprep.subr.bf16.mxu0 0
    %1465 = vmatpush1.bf16.xpose.msra.mxu0 0
    %1466 = vmatprep.subr.bf16.mxu0 0
    %1467 = vmatpush1.bf16.xpose.msra.mxu0 0
    %1468 = vmatprep.subr.bf16.mxu0 0
    %1469 = vmatpush1.bf16.xpose.msra.mxu0 0
    %1470 = vmatprep.subr.bf16.mxu0 0
    %1471 = vmatpush1.bf16.xpose.msra.mxu0 0
    %1472 = vmatprep.subr.bf16.mxu0 0
    %1473 = vmatpush1.bf16.xpose.msra.mxu0 0
    %1474 = vmatprep.subr.bf16.mxu0 0
    %1475 = vmatpush1.bf16.xpose.msra.mxu0 0
    %1476 = vmatprep.subr.bf16.mxu0 0
    %1477 = vmatpush1.bf16.xpose.msra.mxu0 0
    %1478 = vmatprep.subr.bf16.mxu0 0
    %1479 = vmatpush1.bf16.xpose.msra.mxu0 0
    %1480 = vmatprep.subr.bf16.mxu0 0
    %1481 = vmatpush1.bf16.xpose.msra.mxu0 0
    %1482 = vmatprep.subr.bf16.mxu0 0
    %1483 = vmatpush1.bf16.xpose.msra.mxu0 0
    %1484 = vmatprep.mubr.bf16.mxu0 0
    %1485 = vmatmul.mubr.bf16.gmra.mrb[0].mxu0 %v1447
    %v1486 = vpop.f32.mrb[0].mxu0
    %v1487 = vadd.f32 0.0, %v1486
    %v1488 = vpop.f32.mrb[0].mxu0
    %v1489 = vpop.f32.mrb[0].mxu0
    %v1490 = vpop.f32.mrb[0].mxu0
    %1491 = vdwg.mxu0
    %v1493 = vsel %vm142, %v1276, 0
    %v1496 = vsel %vm142, %v1304, 0
    %1498 = vmatprep.subr.bf16.mxu0 0
    %1499 = vmatpush1.bf16.xpose.msra.mxu0 %v1496
    %1500 = vmatprep.subr.bf16.mxu0 0
    %1501 = vmatpush1.bf16.xpose.msra.mxu0 0
    %1502 = vmatprep.subr.bf16.mxu0 0
    %1503 = vmatpush1.bf16.xpose.msra.mxu0 0
    %1504 = vmatprep.subr.bf16.mxu0 0
    %1505 = vmatpush1.bf16.xpose.msra.mxu0 0
    %1506 = vmatprep.subr.bf16.mxu0 0
    %1507 = vmatpush1.bf16.xpose.msra.mxu0 0
    %1508 = vmatprep.subr.bf16.mxu0 0
    %1509 = vmatpush1.bf16.xpose.msra.mxu0 0
    %1510 = vmatprep.subr.bf16.mxu0 0
    %1511 = vmatpush1.bf16.xpose.msra.mxu0 0
    %1512 = vmatprep.subr.bf16.mxu0 0
    %1513 = vmatpush1.bf16.xpose.msra.mxu0 0
    %1514 = vmatprep.subr.bf16.mxu0 0
    %1515 = vmatpush1.bf16.xpose.msra.mxu0 0
    %1516 = vmatprep.subr.bf16.mxu0 0
    %1517 = vmatpush1.bf16.xpose.msra.mxu0 0
    %1518 = vmatprep.subr.bf16.mxu0 0
    %1519 = vmatpush1.bf16.xpose.msra.mxu0 0
    %1520 = vmatprep.subr.bf16.mxu0 0
    %1521 = vmatpush1.bf16.xpose.msra.mxu0 0
    %1522 = vmatprep.subr.bf16.mxu0 0
    %1523 = vmatpush1.bf16.xpose.msra.mxu0 0
    %1524 = vmatprep.subr.bf16.mxu0 0
    %1525 = vmatpush1.bf16.xpose.msra.mxu0 0
    %1526 = vmatprep.subr.bf16.mxu0 0
    %1527 = vmatpush1.bf16.xpose.msra.mxu0 0
    %1528 = vmatprep.subr.bf16.mxu0 0
    %1529 = vmatpush1.bf16.xpose.msra.mxu0 0
    %1530 = vmatprep.mubr.bf16.mxu0 0
    %1531 = vmatmul.mubr.bf16.gmra.mrb[0].mxu0 %v1493
    %v1532 = vpop.f32.mrb[0].mxu0
    %v1533 = vadd.f32 0.0, %v1532
    %v1534 = vpop.f32.mrb[0].mxu0
    %v1535 = vpop.f32.mrb[0].mxu0
    %v1536 = vpop.f32.mrb[0].mxu0
    %1537 = vdwg.mxu0
    %v1539 = vsel %vm142, %v1277, 0
    %v1542 = vsel %vm142, %v1305, 0
    %1544 = vmatprep.subr.bf16.mxu0 0
    %1545 = vmatpush1.bf16.xpose.msra.mxu0 %v1542
    %1546 = vmatprep.subr.bf16.mxu0 0
    %1547 = vmatpush1.bf16.xpose.msra.mxu0 0
    %1548 = vmatprep.subr.bf16.mxu0 0
    %1549 = vmatpush1.bf16.xpose.msra.mxu0 0
    %1550 = vmatprep.subr.bf16.mxu0 0
    %1551 = vmatpush1.bf16.xpose.msra.mxu0 0
    %1552 = vmatprep.subr.bf16.mxu0 0
    %1553 = vmatpush1.bf16.xpose.msra.mxu0 0
    %1554 = vmatprep.subr.bf16.mxu0 0
    %1555 = vmatpush1.bf16.xpose.msra.mxu0 0
    %1556 = vmatprep.subr.bf16.mxu0 0
    %1557 = vmatpush1.bf16.xpose.msra.mxu0 0
    %1558 = vmatprep.subr.bf16.mxu0 0
    %1559 = vmatpush1.bf16.xpose.msra.mxu0 0
    %1560 = vmatprep.subr.bf16.mxu0 0
    %1561 = vmatpush1.bf16.xpose.msra.mxu0 0
    %1562 = vmatprep.subr.bf16.mxu0 0
    %1563 = vmatpush1.bf16.xpose.msra.mxu0 0
    %1564 = vmatprep.subr.bf16.mxu0 0
    %1565 = vmatpush1.bf16.xpose.msra.mxu0 0
    %1566 = vmatprep.subr.bf16.mxu0 0
    %1567 = vmatpush1.bf16.xpose.msra.mxu0 0
    %1568 = vmatprep.subr.bf16.mxu0 0
    %1569 = vmatpush1.bf16.xpose.msra.mxu0 0
    %1570 = vmatprep.subr.bf16.mxu0 0
    %1571 = vmatpush1.bf16.xpose.msra.mxu0 0
    %1572 = vmatprep.subr.bf16.mxu0 0
    %1573 = vmatpush1.bf16.xpose.msra.mxu0 0
    %1574 = vmatprep.subr.bf16.mxu0 0
    %1575 = vmatpush1.bf16.xpose.msra.mxu0 0
    %1576 = vmatprep.mubr.bf16.mxu0 0
    %1577 = vmatmul.mubr.bf16.gmra.mrb[0].mxu0 %v1539
    %v1578 = vpop.f32.mrb[0].mxu0
    %v1579 = vadd.f32 0.0, %v1578
    %v1580 = vpop.f32.mrb[0].mxu0
    %v1581 = vpop.f32.mrb[0].mxu0
    %v1582 = vpop.f32.mrb[0].mxu0
    %1583 = vdwg.mxu0
    %v1585 = vsel %vm142, %v1278, 0
    %v1588 = vsel %vm142, %v1306, 0
    %1590 = vmatprep.subr.bf16.mxu0 0
    %1591 = vmatpush1.bf16.xpose.msra.mxu0 %v1588
    %1592 = vmatprep.subr.bf16.mxu0 0
    %1593 = vmatpush1.bf16.xpose.msra.mxu0 0
    %1594 = vmatprep.subr.bf16.mxu0 0
    %1595 = vmatpush1.bf16.xpose.msra.mxu0 0
    %1596 = vmatprep.subr.bf16.mxu0 0
    %1597 = vmatpush1.bf16.xpose.msra.mxu0 0
    %1598 = vmatprep.subr.bf16.mxu0 0
    %1599 = vmatpush1.bf16.xpose.msra.mxu0 0
    %1600 = vmatprep.subr.bf16.mxu0 0
    %1601 = vmatpush1.bf16.xpose.msra.mxu0 0
    %1602 = vmatprep.subr.bf16.mxu0 0
    %1603 = vmatpush1.bf16.xpose.msra.mxu0 0
    %1604 = vmatprep.subr.bf16.mxu0 0
    %1605 = vmatpush1.bf16.xpose.msra.mxu0 0
    %1606 = vmatprep.subr.bf16.mxu0 0
    %1607 = vmatpush1.bf16.xpose.msra.mxu0 0
    %1608 = vmatprep.subr.bf16.mxu0 0
    %1609 = vmatpush1.bf16.xpose.msra.mxu0 0
    %1610 = vmatprep.subr.bf16.mxu0 0
    %1611 = vmatpush1.bf16.xpose.msra.mxu0 0
    %1612 = vmatprep.subr.bf16.mxu0 0
    %1613 = vmatpush1.bf16.xpose.msra.mxu0 0
    %1614 = vmatprep.subr.bf16.mxu0 0
    %1615 = vmatpush1.bf16.xpose.msra.mxu0 0
    %1616 = vmatprep.subr.bf16.mxu0 0
    %1617 = vmatpush1.bf16.xpose.msra.mxu0 0
    %1618 = vmatprep.subr.bf16.mxu0 0
    %1619 = vmatpush1.bf16.xpose.msra.mxu0 0
    %1620 = vmatprep.subr.bf16.mxu0 0
    %1621 = vmatpush1.bf16.xpose.msra.mxu0 0
    %1622 = vmatprep.mubr.bf16.mxu0 0
    %1623 = vmatmul.mubr.bf16.gmra.mrb[0].mxu0 %v1585
    %v1624 = vpop.f32.mrb[0].mxu0
    %v1625 = vadd.f32 0.0, %v1624
    %v1626 = vpop.f32.mrb[0].mxu0
    %v1627 = vpop.f32.mrb[0].mxu0
    %v1628 = vpop.f32.mrb[0].mxu0
    %1629 = vdwg.mxu0
    %v1631 = vsel %vm142, %v1279, 0
    %v1634 = vsel %vm142, %v1307, 0
    %1636 = vmatprep.subr.bf16.mxu0 0
    %1637 = vmatpush1.bf16.xpose.msra.mxu0 %v1634
    %1638 = vmatprep.subr.bf16.mxu0 0
    %1639 = vmatpush1.bf16.xpose.msra.mxu0 0
    %1640 = vmatprep.subr.bf16.mxu0 0
    %1641 = vmatpush1.bf16.xpose.msra.mxu0 0
    %1642 = vmatprep.subr.bf16.mxu0 0
    %1643 = vmatpush1.bf16.xpose.msra.mxu0 0
    %1644 = vmatprep.subr.bf16.mxu0 0
    %1645 = vmatpush1.bf16.xpose.msra.mxu0 0
    %1646 = vmatprep.subr.bf16.mxu0 0
    %1647 = vmatpush1.bf16.xpose.msra.mxu0 0
    %1648 = vmatprep.subr.bf16.mxu0 0
    %1649 = vmatpush1.bf16.xpose.msra.mxu0 0
    %1650 = vmatprep.subr.bf16.mxu0 0
    %1651 = vmatpush1.bf16.xpose.msra.mxu0 0
    %1652 = vmatprep.subr.bf16.mxu0 0
    %1653 = vmatpush1.bf16.xpose.msra.mxu0 0
    %1654 = vmatprep.subr.bf16.mxu0 0
    %1655 = vmatpush1.bf16.xpose.msra.mxu0 0
    %1656 = vmatprep.subr.bf16.mxu0 0
    %1657 = vmatpush1.bf16.xpose.msra.mxu0 0
    %1658 = vmatprep.subr.bf16.mxu0 0
    %1659 = vmatpush1.bf16.xpose.msra.mxu0 0
    %1660 = vmatprep.subr.bf16.mxu0 0
    %1661 = vmatpush1.bf16.xpose.msra.mxu0 0
    %1662 = vmatprep.subr.bf16.mxu0 0
    %1663 = vmatpush1.bf16.xpose.msra.mxu0 0
    %1664 = vmatprep.subr.bf16.mxu0 0
    %1665 = vmatpush1.bf16.xpose.msra.mxu0 0
    %1666 = vmatprep.subr.bf16.mxu0 0
    %1667 = vmatpush1.bf16.xpose.msra.mxu0 0
    %1668 = vmatprep.mubr.bf16.mxu0 0
    %1669 = vmatmul.mubr.bf16.gmra.mrb[0].mxu0 %v1631
    %v1670 = vpop.f32.mrb[0].mxu0
    %v1671 = vadd.f32 0.0, %v1670
    %v1672 = vpop.f32.mrb[0].mxu0
    %v1673 = vpop.f32.mrb[0].mxu0
    %v1674 = vpop.f32.mrb[0].mxu0
    %1675 = vdwg.mxu0
    %v1676 = vsel %vm142, %v1349, -inf
    %1677 = vmax.xlane.f32.xlu0 %v1676
    %v1678 = vpop.xlane.xlu0 %1677
    %v1679 = vsel %vm142, %v1395, -inf
    %1680 = vmax.xlane.f32.xlu0 %v1679
    %v1681 = vpop.xlane.xlu0 %1680
    %v1682 = vsel %vm142, %v1441, -inf
    %1683 = vmax.xlane.f32.xlu0 %v1682
    %v1684 = vpop.xlane.xlu0 %1683
    %v1685 = vsel %vm142, %v1487, -inf
    %1686 = vmax.xlane.f32.xlu0 %v1685
    %v1687 = vpop.xlane.xlu0 %1686
    %v1688 = vsel %vm142, %v1533, -inf
    %1689 = vmax.xlane.f32.xlu0 %v1688
    %v1690 = vpop.xlane.xlu0 %1689
    %v1691 = vsel %vm142, %v1579, -inf
    %1692 = vmax.xlane.f32.xlu0 %v1691
    %v1693 = vpop.xlane.xlu0 %1692
    %v1694 = vsel %vm142, %v1625, -inf
    %1695 = vmax.xlane.f32.xlu0 %v1694
    %v1696 = vpop.xlane.xlu0 %1695
    %v1697 = vsel %vm142, %v1671, -inf
    %1698 = vmax.xlane.f32.xlu0 %v1697
    %v1699 = vpop.xlane.xlu0 %1698
    %v1700 = vsub.f32 %v1349, %v1678
    %v1701 = vsub.f32 %v1395, %v1681
    %v1702 = vsub.f32 %v1441, %v1684
    %v1703 = vsub.f32 %v1487, %v1687
    %v1704 = vsub.f32 %v1533, %v1690
    %v1705 = vsub.f32 %v1579, %v1693
    %v1706 = vsub.f32 %v1625, %v1696
    %v1707 = vsub.f32 %v1671, %v1699
    %v1708 = vmul.f32 %v1700, 1.442695
    %v1709 = vpow.pop %v1708
    %v1710 = vmul.f32 %v1701, 1.442695
    %v1711 = vpow.pop %v1710
    %v1712 = vmul.f32 %v1702, 1.442695
    %v1713 = vpow.pop %v1712
    %v1714 = vmul.f32 %v1703, 1.442695
    %v1715 = vpow.pop %v1714
    %v1716 = vmul.f32 %v1704, 1.442695
    %v1717 = vpow.pop %v1716
    %v1718 = vmul.f32 %v1705, 1.442695
    %v1719 = vpow.pop %v1718
    %v1720 = vmul.f32 %v1706, 1.442695
    %v1721 = vpow.pop %v1720
    %v1722 = vmul.f32 %v1707, 1.442695
    %v1723 = vpow.pop %v1722
    %v1724 = vsel %vm142, %v1709, 0.0
    %1725 = vadd.xlane.f32.xlu0 %v1724
    %v1726 = vpop.xlane.xlu0 %1725
    %v1727 = vsel %vm142, %v1711, 0.0
    %1728 = vadd.xlane.f32.xlu0 %v1727
    %v1729 = vpop.xlane.xlu0 %1728
    %v1730 = vsel %vm142, %v1713, 0.0
    %1731 = vadd.xlane.f32.xlu0 %v1730
    %v1732 = vpop.xlane.xlu0 %1731
    %v1733 = vsel %vm142, %v1715, 0.0
    %1734 = vadd.xlane.f32.xlu0 %v1733
    %v1735 = vpop.xlane.xlu0 %1734
    %v1736 = vsel %vm142, %v1717, 0.0
    %1737 = vadd.xlane.f32.xlu0 %v1736
    %v1738 = vpop.xlane.xlu0 %1737
    %v1739 = vsel %vm142, %v1719, 0.0
    %1740 = vadd.xlane.f32.xlu0 %v1739
    %v1741 = vpop.xlane.xlu0 %1740
    %v1742 = vsel %vm142, %v1721, 0.0
    %1743 = vadd.xlane.f32.xlu0 %v1742
    %v1744 = vpop.xlane.xlu0 %1743
    %v1745 = vsel %vm142, %v1723, 0.0
    %1746 = vadd.xlane.f32.xlu0 %v1745
    %v1747 = vpop.xlane.xlu0 %1746
    %v1748 = vrcp.pop %v1726
    %v1749 = vrcp.pop %v1729
    %v1750 = vrcp.pop %v1732
    %v1751 = vrcp.pop %v1735
    %v1752 = vrcp.pop %v1738
    %v1753 = vrcp.pop %v1741
    %v1754 = vrcp.pop %v1744
    %v1755 = vrcp.pop %v1747
    %v1756 = vmul.f32 %v1709, %v1748
    %v1757 = vmul.f32 %v1711, %v1749
    %v1758 = vmul.f32 %v1713, %v1750
    %v1759 = vmul.f32 %v1715, %v1751
    %v1760 = vmul.f32 %v1717, %v1752
    %v1761 = vmul.f32 %v1719, %v1753
    %v1762 = vmul.f32 %v1721, %v1754
    %v1763 = vmul.f32 %v1723, %v1755
    %v1764 = vpack.c.bf16 %v1756, %v1756
    %v1765 = vpack.c.bf16 %v1757, %v1757
    %v1766 = vpack.c.bf16 %v1758, %v1758
    %v1767 = vpack.c.bf16 %v1759, %v1759
    %v1768 = vpack.c.bf16 %v1760, %v1760
    %v1769 = vpack.c.bf16 %v1761, %v1761
    %v1770 = vpack.c.bf16 %v1762, %v1762
    %v1771 = vpack.c.bf16 %v1763, %v1763
    %1773 = vrot.lane.b32.xlu0 %v1300, 96
    %v1774 = vpop.permute.xlu0 %1773
    %v1776 = vsel %vm142, %v1764, 0
    %v1779 = vsel %vm633, %v1774, 0
    %1781 = vmatprep.subr.bf16.mxu0 0
    %1782 = vmatpush1.bf16.msra.mxu0 %v1779
    %1783 = vmatprep.subr.bf16.mxu0 0
    %1784 = vmatpush1.bf16.msra.mxu0 0
    %1785 = vmatprep.subr.bf16.mxu0 0
    %1786 = vmatpush1.bf16.msra.mxu0 0
    %1787 = vmatprep.subr.bf16.mxu0 0
    %1788 = vmatpush1.bf16.msra.mxu0 0
    %1789 = vmatprep.subr.bf16.mxu0 0
    %1790 = vmatpush1.bf16.msra.mxu0 0
    %1791 = vmatprep.subr.bf16.mxu0 0
    %1792 = vmatpush1.bf16.msra.mxu0 0
    %1793 = vmatprep.subr.bf16.mxu0 0
    %1794 = vmatpush1.bf16.msra.mxu0 0
    %1795 = vmatprep.subr.bf16.mxu0 0
    %1796 = vmatpush1.bf16.msra.mxu0 0
    %1797 = vmatprep.subr.bf16.mxu0 0
    %1798 = vmatpush1.bf16.msra.mxu0 0
    %1799 = vmatprep.subr.bf16.mxu0 0
    %1800 = vmatpush1.bf16.msra.mxu0 0
    %1801 = vmatprep.subr.bf16.mxu0 0
    %1802 = vmatpush1.bf16.msra.mxu0 0
    %1803 = vmatprep.subr.bf16.mxu0 0
    %1804 = vmatpush1.bf16.msra.mxu0 0
    %1805 = vmatprep.subr.bf16.mxu0 0
    %1806 = vmatpush1.bf16.msra.mxu0 0
    %1807 = vmatprep.subr.bf16.mxu0 0
    %1808 = vmatpush1.bf16.msra.mxu0 0
    %1809 = vmatprep.subr.bf16.mxu0 0
    %1810 = vmatpush1.bf16.msra.mxu0 0
    %1811 = vmatprep.subr.bf16.mxu0 0
    %1812 = vmatpush1.bf16.msra.mxu0 0
    %1813 = vmatprep.mubr.bf16.mxu0 0
    %1814 = vmatmul.mubr.bf16.gmra.mrb[0].mxu0 %v1776
    %v1815 = vpop.f32.mrb[0].mxu0
    %v1816 = vadd.f32 0.0, %v1815
    %v1817 = vpop.f32.mrb[0].mxu0
    %v1818 = vpop.f32.mrb[0].mxu0
    %v1819 = vpop.f32.mrb[0].mxu0
    %1820 = vdwg.mxu0
    %1822 = vrot.lane.b32.xlu0 %v1301, 96
    %v1823 = vpop.permute.xlu0 %1822
    %v1825 = vsel %vm142, %v1765, 0
    %v1828 = vsel %vm633, %v1823, 0
    %1830 = vmatprep.subr.bf16.mxu0 0
    %1831 = vmatpush1.bf16.msra.mxu0 %v1828
    %1832 = vmatprep.subr.bf16.mxu0 0
    %1833 = vmatpush1.bf16.msra.mxu0 0
    %1834 = vmatprep.subr.bf16.mxu0 0
    %1835 = vmatpush1.bf16.msra.mxu0 0
    %1836 = vmatprep.subr.bf16.mxu0 0
    %1837 = vmatpush1.bf16.msra.mxu0 0
    %1838 = vmatprep.subr.bf16.mxu0 0
    %1839 = vmatpush1.bf16.msra.mxu0 0
    %1840 = vmatprep.subr.bf16.mxu0 0
    %1841 = vmatpush1.bf16.msra.mxu0 0
    %1842 = vmatprep.subr.bf16.mxu0 0
    %1843 = vmatpush1.bf16.msra.mxu0 0
    %1844 = vmatprep.subr.bf16.mxu0 0
    %1845 = vmatpush1.bf16.msra.mxu0 0
    %1846 = vmatprep.subr.bf16.mxu0 0
    %1847 = vmatpush1.bf16.msra.mxu0 0
    %1848 = vmatprep.subr.bf16.mxu0 0
    %1849 = vmatpush1.bf16.msra.mxu0 0
    %1850 = vmatprep.subr.bf16.mxu0 0
    %1851 = vmatpush1.bf16.msra.mxu0 0
    %1852 = vmatprep.subr.bf16.mxu0 0
    %1853 = vmatpush1.bf16.msra.mxu0 0
    %1854 = vmatprep.subr.bf16.mxu0 0
    %1855 = vmatpush1.bf16.msra.mxu0 0
    %1856 = vmatprep.subr.bf16.mxu0 0
    %1857 = vmatpush1.bf16.msra.mxu0 0
    %1858 = vmatprep.subr.bf16.mxu0 0
    %1859 = vmatpush1.bf16.msra.mxu0 0
    %1860 = vmatprep.subr.bf16.mxu0 0
    %1861 = vmatpush1.bf16.msra.mxu0 0
    %1862 = vmatprep.mubr.bf16.mxu0 0
    %1863 = vmatmul.mubr.bf16.gmra.mrb[0].mxu0 %v1825
    %v1864 = vpop.f32.mrb[0].mxu0
    %v1865 = vadd.f32 0.0, %v1864
    %v1866 = vpop.f32.mrb[0].mxu0
    %v1867 = vpop.f32.mrb[0].mxu0
    %v1868 = vpop.f32.mrb[0].mxu0
    %1869 = vdwg.mxu0
    %1871 = vrot.lane.b32.xlu0 %v1302, 96
    %v1872 = vpop.permute.xlu0 %1871
    %v1874 = vsel %vm142, %v1766, 0
    %v1877 = vsel %vm633, %v1872, 0
    %1879 = vmatprep.subr.bf16.mxu0 0
    %1880 = vmatpush1.bf16.msra.mxu0 %v1877
    %1881 = vmatprep.subr.bf16.mxu0 0
    %1882 = vmatpush1.bf16.msra.mxu0 0
    %1883 = vmatprep.subr.bf16.mxu0 0
    %1884 = vmatpush1.bf16.msra.mxu0 0
    %1885 = vmatprep.subr.bf16.mxu0 0
    %1886 = vmatpush1.bf16.msra.mxu0 0
    %1887 = vmatprep.subr.bf16.mxu0 0
    %1888 = vmatpush1.bf16.msra.mxu0 0
    %1889 = vmatprep.subr.bf16.mxu0 0
    %1890 = vmatpush1.bf16.msra.mxu0 0
    %1891 = vmatprep.subr.bf16.mxu0 0
    %1892 = vmatpush1.bf16.msra.mxu0 0
    %1893 = vmatprep.subr.bf16.mxu0 0
    %1894 = vmatpush1.bf16.msra.mxu0 0
    %1895 = vmatprep.subr.bf16.mxu0 0
    %1896 = vmatpush1.bf16.msra.mxu0 0
    %1897 = vmatprep.subr.bf16.mxu0 0
    %1898 = vmatpush1.bf16.msra.mxu0 0
    %1899 = vmatprep.subr.bf16.mxu0 0
    %1900 = vmatpush1.bf16.msra.mxu0 0
    %1901 = vmatprep.subr.bf16.mxu0 0
    %1902 = vmatpush1.bf16.msra.mxu0 0
    %1903 = vmatprep.subr.bf16.mxu0 0
    %1904 = vmatpush1.bf16.msra.mxu0 0
    %1905 = vmatprep.subr.bf16.mxu0 0
    %1906 = vmatpush1.bf16.msra.mxu0 0
    %1907 = vmatprep.subr.bf16.mxu0 0
    %1908 = vmatpush1.bf16.msra.mxu0 0
    %1909 = vmatprep.subr.bf16.mxu0 0
    %1910 = vmatpush1.bf16.msra.mxu0 0
    %1911 = vmatprep.mubr.bf16.mxu0 0
    %1912 = vmatmul.mubr.bf16.gmra.mrb[0].mxu0 %v1874
    %v1913 = vpop.f32.mrb[0].mxu0
    %v1914 = vadd.f32 0.0, %v1913
    %v1915 = vpop.f32.mrb[0].mxu0
    %v1916 = vpop.f32.mrb[0].mxu0
    %v1917 = vpop.f32.mrb[0].mxu0
    %1918 = vdwg.mxu0
    %1920 = vrot.lane.b32.xlu0 %v1303, 96
    %v1921 = vpop.permute.xlu0 %1920
    %v1923 = vsel %vm142, %v1767, 0
    %v1926 = vsel %vm633, %v1921, 0
    %1928 = vmatprep.subr.bf16.mxu0 0
    %1929 = vmatpush1.bf16.msra.mxu0 %v1926
    %1930 = vmatprep.subr.bf16.mxu0 0
    %1931 = vmatpush1.bf16.msra.mxu0 0
    %1932 = vmatprep.subr.bf16.mxu0 0
    %1933 = vmatpush1.bf16.msra.mxu0 0
    %1934 = vmatprep.subr.bf16.mxu0 0
    %1935 = vmatpush1.bf16.msra.mxu0 0
    %1936 = vmatprep.subr.bf16.mxu0 0
    %1937 = vmatpush1.bf16.msra.mxu0 0
    %1938 = vmatprep.subr.bf16.mxu0 0
    %1939 = vmatpush1.bf16.msra.mxu0 0
    %1940 = vmatprep.subr.bf16.mxu0 0
    %1941 = vmatpush1.bf16.msra.mxu0 0
    %1942 = vmatprep.subr.bf16.mxu0 0
    %1943 = vmatpush1.bf16.msra.mxu0 0
    %1944 = vmatprep.subr.bf16.mxu0 0
    %1945 = vmatpush1.bf16.msra.mxu0 0
    %1946 = vmatprep.subr.bf16.mxu0 0
    %1947 = vmatpush1.bf16.msra.mxu0 0
    %1948 = vmatprep.subr.bf16.mxu0 0
    %1949 = vmatpush1.bf16.msra.mxu0 0
    %1950 = vmatprep.subr.bf16.mxu0 0
    %1951 = vmatpush1.bf16.msra.mxu0 0
    %1952 = vmatprep.subr.bf16.mxu0 0
    %1953 = vmatpush1.bf16.msra.mxu0 0
    %1954 = vmatprep.subr.bf16.mxu0 0
    %1955 = vmatpush1.bf16.msra.mxu0 0
    %1956 = vmatprep.subr.bf16.mxu0 0
    %1957 = vmatpush1.bf16.msra.mxu0 0
    %1958 = vmatprep.subr.bf16.mxu0 0
    %1959 = vmatpush1.bf16.msra.mxu0 0
    %1960 = vmatprep.mubr.bf16.mxu0 0
    %1961 = vmatmul.mubr.bf16.gmra.mrb[0].mxu0 %v1923
    %v1962 = vpop.f32.mrb[0].mxu0
    %v1963 = vadd.f32 0.0, %v1962
    %v1964 = vpop.f32.mrb[0].mxu0
    %v1965 = vpop.f32.mrb[0].mxu0
    %v1966 = vpop.f32.mrb[0].mxu0
    %1967 = vdwg.mxu0
    %1969 = vrot.lane.b32.xlu0 %v1304, 96
    %v1970 = vpop.permute.xlu0 %1969
    %v1972 = vsel %vm142, %v1768, 0
    %v1975 = vsel %vm633, %v1970, 0
    %1977 = vmatprep.subr.bf16.mxu0 0
    %1978 = vmatpush1.bf16.msra.mxu0 %v1975
    %1979 = vmatprep.subr.bf16.mxu0 0
    %1980 = vmatpush1.bf16.msra.mxu0 0
    %1981 = vmatprep.subr.bf16.mxu0 0
    %1982 = vmatpush1.bf16.msra.mxu0 0
    %1983 = vmatprep.subr.bf16.mxu0 0
    %1984 = vmatpush1.bf16.msra.mxu0 0
    %1985 = vmatprep.subr.bf16.mxu0 0
    %1986 = vmatpush1.bf16.msra.mxu0 0
    %1987 = vmatprep.subr.bf16.mxu0 0
    %1988 = vmatpush1.bf16.msra.mxu0 0
    %1989 = vmatprep.subr.bf16.mxu0 0
    %1990 = vmatpush1.bf16.msra.mxu0 0
    %1991 = vmatprep.subr.bf16.mxu0 0
    %1992 = vmatpush1.bf16.msra.mxu0 0
    %1993 = vmatprep.subr.bf16.mxu0 0
    %1994 = vmatpush1.bf16.msra.mxu0 0
    %1995 = vmatprep.subr.bf16.mxu0 0
    %1996 = vmatpush1.bf16.msra.mxu0 0
    %1997 = vmatprep.subr.bf16.mxu0 0
    %1998 = vmatpush1.bf16.msra.mxu0 0
    %1999 = vmatprep.subr.bf16.mxu0 0
    %2000 = vmatpush1.bf16.msra.mxu0 0
    %2001 = vmatprep.subr.bf16.mxu0 0
    %2002 = vmatpush1.bf16.msra.mxu0 0
    %2003 = vmatprep.subr.bf16.mxu0 0
    %2004 = vmatpush1.bf16.msra.mxu0 0
    %2005 = vmatprep.subr.bf16.mxu0 0
    %2006 = vmatpush1.bf16.msra.mxu0 0
    %2007 = vmatprep.subr.bf16.mxu0 0
    %2008 = vmatpush1.bf16.msra.mxu0 0
    %2009 = vmatprep.mubr.bf16.mxu0 0
    %2010 = vmatmul.mubr.bf16.gmra.mrb[0].mxu0 %v1972
    %v2011 = vpop.f32.mrb[0].mxu0
    %v2012 = vadd.f32 0.0, %v2011
    %v2013 = vpop.f32.mrb[0].mxu0
    %v2014 = vpop.f32.mrb[0].mxu0
    %v2015 = vpop.f32.mrb[0].mxu0
    %2016 = vdwg.mxu0
    %2018 = vrot.lane.b32.xlu0 %v1305, 96
    %v2019 = vpop.permute.xlu0 %2018
    %v2021 = vsel %vm142, %v1769, 0
    %v2024 = vsel %vm633, %v2019, 0
    %2026 = vmatprep.subr.bf16.mxu0 0
    %2027 = vmatpush1.bf16.msra.mxu0 %v2024
    %2028 = vmatprep.subr.bf16.mxu0 0
    %2029 = vmatpush1.bf16.msra.mxu0 0
    %2030 = vmatprep.subr.bf16.mxu0 0
    %2031 = vmatpush1.bf16.msra.mxu0 0
    %2032 = vmatprep.subr.bf16.mxu0 0
    %2033 = vmatpush1.bf16.msra.mxu0 0
    %2034 = vmatprep.subr.bf16.mxu0 0
    %2035 = vmatpush1.bf16.msra.mxu0 0
    %2036 = vmatprep.subr.bf16.mxu0 0
    %2037 = vmatpush1.bf16.msra.mxu0 0
    %2038 = vmatprep.subr.bf16.mxu0 0
    %2039 = vmatpush1.bf16.msra.mxu0 0
    %2040 = vmatprep.subr.bf16.mxu0 0
    %2041 = vmatpush1.bf16.msra.mxu0 0
    %2042 = vmatprep.subr.bf16.mxu0 0
    %2043 = vmatpush1.bf16.msra.mxu0 0
    %2044 = vmatprep.subr.bf16.mxu0 0
    %2045 = vmatpush1.bf16.msra.mxu0 0
    %2046 = vmatprep.subr.bf16.mxu0 0
    %2047 = vmatpush1.bf16.msra.mxu0 0
    %2048 = vmatprep.subr.bf16.mxu0 0
    %2049 = vmatpush1.bf16.msra.mxu0 0
    %2050 = vmatprep.subr.bf16.mxu0 0
    %2051 = vmatpush1.bf16.msra.mxu0 0
    %2052 = vmatprep.subr.bf16.mxu0 0
    %2053 = vmatpush1.bf16.msra.mxu0 0
    %2054 = vmatprep.subr.bf16.mxu0 0
    %2055 = vmatpush1.bf16.msra.mxu0 0
    %2056 = vmatprep.subr.bf16.mxu0 0
    %2057 = vmatpush1.bf16.msra.mxu0 0
    %2058 = vmatprep.mubr.bf16.mxu0 0
    %2059 = vmatmul.mubr.bf16.gmra.mrb[0].mxu0 %v2021
    %v2060 = vpop.f32.mrb[0].mxu0
    %v2061 = vadd.f32 0.0, %v2060
    %v2062 = vpop.f32.mrb[0].mxu0
    %v2063 = vpop.f32.mrb[0].mxu0
    %v2064 = vpop.f32.mrb[0].mxu0
    %2065 = vdwg.mxu0
    %2067 = vrot.lane.b32.xlu0 %v1306, 96
    %v2068 = vpop.permute.xlu0 %2067
    %v2070 = vsel %vm142, %v1770, 0
    %v2073 = vsel %vm633, %v2068, 0
    %2075 = vmatprep.subr.bf16.mxu0 0
    %2076 = vmatpush1.bf16.msra.mxu0 %v2073
    %2077 = vmatprep.subr.bf16.mxu0 0
    %2078 = vmatpush1.bf16.msra.mxu0 0
    %2079 = vmatprep.subr.bf16.mxu0 0
    %2080 = vmatpush1.bf16.msra.mxu0 0
    %2081 = vmatprep.subr.bf16.mxu0 0
    %2082 = vmatpush1.bf16.msra.mxu0 0
    %2083 = vmatprep.subr.bf16.mxu0 0
    %2084 = vmatpush1.bf16.msra.mxu0 0
    %2085 = vmatprep.subr.bf16.mxu0 0
    %2086 = vmatpush1.bf16.msra.mxu0 0
    %2087 = vmatprep.subr.bf16.mxu0 0
    %2088 = vmatpush1.bf16.msra.mxu0 0
    %2089 = vmatprep.subr.bf16.mxu0 0
    %2090 = vmatpush1.bf16.msra.mxu0 0
    %2091 = vmatprep.subr.bf16.mxu0 0
    %2092 = vmatpush1.bf16.msra.mxu0 0
    %2093 = vmatprep.subr.bf16.mxu0 0
    %2094 = vmatpush1.bf16.msra.mxu0 0
    %2095 = vmatprep.subr.bf16.mxu0 0
    %2096 = vmatpush1.bf16.msra.mxu0 0
    %2097 = vmatprep.subr.bf16.mxu0 0
    %2098 = vmatpush1.bf16.msra.mxu0 0
    %2099 = vmatprep.subr.bf16.mxu0 0
    %2100 = vmatpush1.bf16.msra.mxu0 0
    %2101 = vmatprep.subr.bf16.mxu0 0
    %2102 = vmatpush1.bf16.msra.mxu0 0
    %2103 = vmatprep.subr.bf16.mxu0 0
    %2104 = vmatpush1.bf16.msra.mxu0 0
    %2105 = vmatprep.subr.bf16.mxu0 0
    %2106 = vmatpush1.bf16.msra.mxu0 0
    %2107 = vmatprep.mubr.bf16.mxu0 0
    %2108 = vmatmul.mubr.bf16.gmra.mrb[0].mxu0 %v2070
    %v2109 = vpop.f32.mrb[0].mxu0
    %v2110 = vadd.f32 0.0, %v2109
    %v2111 = vpop.f32.mrb[0].mxu0
    %v2112 = vpop.f32.mrb[0].mxu0
    %v2113 = vpop.f32.mrb[0].mxu0
    %2114 = vdwg.mxu0
    %2116 = vrot.lane.b32.xlu0 %v1307, 96
    %v2117 = vpop.permute.xlu0 %2116
    %v2119 = vsel %vm142, %v1771, 0
    %v2122 = vsel %vm633, %v2117, 0
    %2124 = vmatprep.subr.bf16.mxu0 0
    %2125 = vmatpush1.bf16.msra.mxu0 %v2122
    %2126 = vmatprep.subr.bf16.mxu0 0
    %2127 = vmatpush1.bf16.msra.mxu0 0
    %2128 = vmatprep.subr.bf16.mxu0 0
    %2129 = vmatpush1.bf16.msra.mxu0 0
    %2130 = vmatprep.subr.bf16.mxu0 0
    %2131 = vmatpush1.bf16.msra.mxu0 0
    %2132 = vmatprep.subr.bf16.mxu0 0
    %2133 = vmatpush1.bf16.msra.mxu0 0
    %2134 = vmatprep.subr.bf16.mxu0 0
    %2135 = vmatpush1.bf16.msra.mxu0 0
    %2136 = vmatprep.subr.bf16.mxu0 0
    %2137 = vmatpush1.bf16.msra.mxu0 0
    %2138 = vmatprep.subr.bf16.mxu0 0
    %2139 = vmatpush1.bf16.msra.mxu0 0
    %2140 = vmatprep.subr.bf16.mxu0 0
    %2141 = vmatpush1.bf16.msra.mxu0 0
    %2142 = vmatprep.subr.bf16.mxu0 0
    %2143 = vmatpush1.bf16.msra.mxu0 0
    %2144 = vmatprep.subr.bf16.mxu0 0
    %2145 = vmatpush1.bf16.msra.mxu0 0
    %2146 = vmatprep.subr.bf16.mxu0 0
    %2147 = vmatpush1.bf16.msra.mxu0 0
    %2148 = vmatprep.subr.bf16.mxu0 0
    %2149 = vmatpush1.bf16.msra.mxu0 0
    %2150 = vmatprep.subr.bf16.mxu0 0
    %2151 = vmatpush1.bf16.msra.mxu0 0
    %2152 = vmatprep.subr.bf16.mxu0 0
    %2153 = vmatpush1.bf16.msra.mxu0 0
    %2154 = vmatprep.subr.bf16.mxu0 0
    %2155 = vmatpush1.bf16.msra.mxu0 0
    %2156 = vmatprep.mubr.bf16.mxu0 0
    %2157 = vmatmul.mubr.bf16.gmra.mrb[0].mxu0 %v2119
    %v2158 = vpop.f32.mrb[0].mxu0
    %v2159 = vadd.f32 0.0, %v2158
    %v2160 = vpop.f32.mrb[0].mxu0
    %v2161 = vpop.f32.mrb[0].mxu0
    %v2162 = vpop.f32.mrb[0].mxu0
    %2163 = vdwg.mxu0
    %2166 = vrot.lane.b32.xlu0 %v1865, 8
    %v2167 = vpop.permute.xlu0 %2166
    %2168 = vrot.lane.b32.xlu0 %v2061, 8
    %v2169 = vpop.permute.xlu0 %2168
    %2174 = vrot.lane.b32.xlu0 %v1914, 16
    %v2175 = vpop.permute.xlu0 %2174
    %2176 = vrot.lane.b32.xlu0 %v2110, 16
    %v2177 = vpop.permute.xlu0 %2176
    %2182 = vrot.lane.b32.xlu0 %v1963, 24
    %v2183 = vpop.permute.xlu0 %2182
    %2184 = vrot.lane.b32.xlu0 %v2159, 24
    %v2185 = vpop.permute.xlu0 %2184
    %v2188 = vsel %vm142, %v1816, %v2167
    %v2189 = vsel %vm142, %v2012, %v2169
    %v2190 = vsel %vm1039, %v2188, %v2175
    %v2191 = vsel %vm1039, %v2189, %v2177
    %v2192 = vsel %vm1042, %v2190, %v2183
    %v2193 = vsel %vm1042, %v2191, %v2185
    %v2194 = vpack.c.bf16 %v2193, %v2192
    %v2195 = vlaneseq
    %v2196 = vshrl.u32 %v2195, 7
    %v2197 = vsub.s32 4, %v2196
    %v2198 = vrot.slane %v47, %v2197
    %2199 = vrot.lane.b32.xlu0 %v1054, 32
    %v2200 = vpop.permute.xlu0 %2199
    %2201 = vrot.lane.b32.xlu0 %v1055, 32
    %v2202 = vpop.permute.xlu0 %2201
    %v2206 = vsel %vm66, %v2194, 0
    %2208 = vmatprep.subr.bf16.mxu0 0
    %2209 = vmatpush1.bf16.msra.mxu0 %v2200
    %2210 = vmatprep.subr.bf16.mxu0 0
    %2211 = vmatpush1.bf16.msra.mxu0 %v2202
    %2212 = vmatprep.subr.bf16.mxu0 0
    %2213 = vmatpush1.bf16.msra.mxu0 0
    %2214 = vmatprep.subr.bf16.mxu0 0
    %2215 = vmatpush1.bf16.msra.mxu0 0
    %2216 = vmatprep.subr.bf16.mxu0 0
    %2217 = vmatpush1.bf16.msra.mxu0 0
    %2218 = vmatprep.subr.bf16.mxu0 0
    %2219 = vmatpush1.bf16.msra.mxu0 0
    %2220 = vmatprep.subr.bf16.mxu0 0
    %2221 = vmatpush1.bf16.msra.mxu0 0
    %2222 = vmatprep.subr.bf16.mxu0 0
    %2223 = vmatpush1.bf16.msra.mxu0 0
    %2224 = vmatprep.subr.bf16.mxu0 0
    %2225 = vmatpush1.bf16.msra.mxu0 0
    %2226 = vmatprep.subr.bf16.mxu0 0
    %2227 = vmatpush1.bf16.msra.mxu0 0
    %2228 = vmatprep.subr.bf16.mxu0 0
    %2229 = vmatpush1.bf16.msra.mxu0 0
    %2230 = vmatprep.subr.bf16.mxu0 0
    %2231 = vmatpush1.bf16.msra.mxu0 0
    %2232 = vmatprep.subr.bf16.mxu0 0
    %2233 = vmatpush1.bf16.msra.mxu0 0
    %2234 = vmatprep.subr.bf16.mxu0 0
    %2235 = vmatpush1.bf16.msra.mxu0 0
    %2236 = vmatprep.subr.bf16.mxu0 0
    %2237 = vmatpush1.bf16.msra.mxu0 0
    %2238 = vmatprep.subr.bf16.mxu0 0
    %2239 = vmatpush1.bf16.msra.mxu0 0
    %2240 = vmatprep.mubr.bf16.mxu0 0
    %2241 = vmatmul.mubr.bf16.gmra.mrb[0].mxu0 %v2206
    %v2242 = vpop.f32.mrb[0].mxu0
    %v2243 = vadd.f32 %v2198, %v2242
    %v2244 = vpop.f32.mrb[0].mxu0
    %v2245 = vpop.f32.mrb[0].mxu0
    %v2246 = vadd.f32 %v2198, %v2245
    %v2247 = vpop.f32.mrb[0].mxu0
    %2248 = vdwg.mxu0
    %v2249 = vadd.f32 %v1145, %v2243
    %v2250 = vadd.f32 %v1146, %v2246
    %v2251 = vsel %vm66, %v2249, 0.0
    %2252 = vadd.xlane.f32.xlu0 %v2251
    %v2253 = vpop.xlane.xlu0 %2252
    %v2254 = vsel %vm66, %v2250, 0.0
    %2255 = vadd.xlane.f32.xlu0 %v2254
    %v2256 = vpop.xlane.xlu0 %2255
    %v2257 = vmul.f32 %v2253, %v1114
    %v2258 = vmul.f32 %v2256, %v1114
    %v2259 = vsub.f32 %v2249, %v2257
    %v2260 = vsub.f32 %v2250, %v2258
    %v2261 = vmul.f32 %v2259, %v2259
    %v2262 = vmul.f32 %v2260, %v2260
    %v2263 = vsel %vm66, %v2261, 0.0
    %2264 = vadd.xlane.f32.xlu0 %v2263
    %v2265 = vpop.xlane.xlu0 %2264
    %v2266 = vsel %vm66, %v2262, 0.0
    %2267 = vadd.xlane.f32.xlu0 %v2266
    %v2268 = vpop.xlane.xlu0 %2267
    %v2269 = vmul.f32 %v2265, %v1114
    %v2270 = vmul.f32 %v2268, %v1114
    %v2271 = vadd.f32 %v2269, 1e-05
    %v2272 = vadd.f32 %v2270, 1e-05
    %v2273 = vrsqrt.pop %v2271
    %v2274 = vrsqrt.pop %v2272
    %v2275 = vmul.f32 %v2259, %v2273
    %v2276 = vmul.f32 %v2260, %v2274
    %v2277 = vlaneseq
    %v2278 = vshrl.u32 %v2277, 7
    %v2279 = vsub.s32 1, %v2278
    %v2280 = vrot.slane %v48, %v2279
    %v2281 = vmul.f32 %v2275, %v2280
    %v2282 = vmul.f32 %v2276, %v2280
    %v2283 = vlaneseq
    %v2284 = vshrl.u32 %v2283, 7
    %v2285 = vsub.s32 2, %v2284
    %v2286 = vrot.slane %v48, %v2285
    %v2287 = vadd.f32 %v2281, %v2286
    %v2288 = vadd.f32 %v2282, %v2286
    %v2289 = vpack.c.bf16 %v2288, %v2287
    %v2290 = vlaneseq
    %v2291 = vshrl.u32 %v2290, 7
    %v2292 = vsub.s32 5, %v2291
    %v2293 = vrot.slane %v47, %v2292
    %v2298 = vunpack.c.l.b16 %v32
    %v2299 = vunpack.c.l.b16 %v34
    %v2300 = vunpack.c.l.b16 %v36
    %v2301 = vunpack.c.l.b16 %v38
    %v2302 = vpack.c.b16 %v2299, %v2298
    %v2303 = vpack.c.b16 %v2301, %v2300
    %v2307 = vsel %vm66, %v2289, 0
    %2309 = vmatprep.subr.bf16.mxu0 0
    %2310 = vmatpush1.bf16.msra.mxu0 %v2302
    %2311 = vmatprep.subr.bf16.mxu0 0
    %2312 = vmatpush1.bf16.msra.mxu0 %v2303
    %2313 = vmatprep.subr.bf16.mxu0 0
    %2314 = vmatpush1.bf16.msra.mxu0 0
    %2315 = vmatprep.subr.bf16.mxu0 0
    %2316 = vmatpush1.bf16.msra.mxu0 0
    %2317 = vmatprep.subr.bf16.mxu0 0
    %2318 = vmatpush1.bf16.msra.mxu0 0
    %2319 = vmatprep.subr.bf16.mxu0 0
    %2320 = vmatpush1.bf16.msra.mxu0 0
    %2321 = vmatprep.subr.bf16.mxu0 0
    %2322 = vmatpush1.bf16.msra.mxu0 0
    %2323 = vmatprep.subr.bf16.mxu0 0
    %2324 = vmatpush1.bf16.msra.mxu0 0
    %2325 = vmatprep.subr.bf16.mxu0 0
    %2326 = vmatpush1.bf16.msra.mxu0 0
    %2327 = vmatprep.subr.bf16.mxu0 0
    %2328 = vmatpush1.bf16.msra.mxu0 0
    %2329 = vmatprep.subr.bf16.mxu0 0
    %2330 = vmatpush1.bf16.msra.mxu0 0
    %2331 = vmatprep.subr.bf16.mxu0 0
    %2332 = vmatpush1.bf16.msra.mxu0 0
    %2333 = vmatprep.subr.bf16.mxu0 0
    %2334 = vmatpush1.bf16.msra.mxu0 0
    %2335 = vmatprep.subr.bf16.mxu0 0
    %2336 = vmatpush1.bf16.msra.mxu0 0
    %2337 = vmatprep.subr.bf16.mxu0 0
    %2338 = vmatpush1.bf16.msra.mxu0 0
    %2339 = vmatprep.subr.bf16.mxu0 0
    %2340 = vmatpush1.bf16.msra.mxu0 0
    %2341 = vmatprep.mubr.bf16.mxu0 0
    %2342 = vmatmul.mubr.bf16.gmra.mrb[0].mxu0 %v2307
    %v2343 = vpop.f32.mrb[0].mxu0
    %v2344 = vadd.f32 %v2293, %v2343
    %v2345 = vpop.f32.mrb[0].mxu0
    %v2346 = vpop.f32.mrb[0].mxu0
    %v2347 = vadd.f32 %v2293, %v2346
    %v2348 = vpop.f32.mrb[0].mxu0
    %2349 = vdwg.mxu0
    %v2350 = vmax.f32 %v2344, 0.0
    %v2351 = vmax.f32 %v2347, 0.0
    %v2352 = vpack.c.bf16 %v2351, %v2350
    %v2353 = vlaneseq
    %v2354 = vshrl.u32 %v2353, 7
    %v2355 = vsub.s32 6, %v2354
    %v2356 = vrot.slane %v47, %v2355
    %v2365 = vunpack.c.l.b16 %v39
    %v2366 = vunpack.c.l.b16 %v40
    %v2367 = vunpack.c.l.b16 %v41
    %v2368 = vunpack.c.l.b16 %v42
    %v2369 = vunpack.c.l.b16 %v43
    %v2370 = vunpack.c.l.b16 %v44
    %v2371 = vunpack.c.l.b16 %v45
    %v2372 = vunpack.c.l.b16 %v46
    %v2373 = vpack.c.b16 %v2366, %v2365
    %v2374 = vpack.c.b16 %v2368, %v2367
    %v2375 = vpack.c.b16 %v2370, %v2369
    %v2376 = vpack.c.b16 %v2372, %v2371
    %vm2381 = vcmask 523264
    %v2383 = vsel %vm2381, %v2352, 0
    %2385 = vmatprep.subr.bf16.mxu0 0
    %2386 = vmatpush1.bf16.msra.mxu0 %v2373
    %2387 = vmatprep.subr.bf16.mxu0 0
    %2388 = vmatpush1.bf16.msra.mxu0 %v2374
    %2389 = vmatprep.subr.bf16.mxu0 0
    %2390 = vmatpush1.bf16.msra.mxu0 %v2375
    %2391 = vmatprep.subr.bf16.mxu0 0
    %2392 = vmatpush1.bf16.msra.mxu0 %v2376
    %2393 = vmatprep.subr.bf16.mxu0 0
    %2394 = vmatpush1.bf16.msra.mxu0 0
    %2395 = vmatprep.subr.bf16.mxu0 0
    %2396 = vmatpush1.bf16.msra.mxu0 0
    %2397 = vmatprep.subr.bf16.mxu0 0
    %2398 = vmatpush1.bf16.msra.mxu0 0
    %2399 = vmatprep.subr.bf16.mxu0 0
    %2400 = vmatpush1.bf16.msra.mxu0 0
    %2401 = vmatprep.subr.bf16.mxu0 0
    %2402 = vmatpush1.bf16.msra.mxu0 0
    %2403 = vmatprep.subr.bf16.mxu0 0
    %2404 = vmatpush1.bf16.msra.mxu0 0
    %2405 = vmatprep.subr.bf16.mxu0 0
    %2406 = vmatpush1.bf16.msra.mxu0 0
    %2407 = vmatprep.subr.bf16.mxu0 0
    %2408 = vmatpush1.bf16.msra.mxu0 0
    %2409 = vmatprep.subr.bf16.mxu0 0
    %2410 = vmatpush1.bf16.msra.mxu0 0
    %2411 = vmatprep.subr.bf16.mxu0 0
    %2412 = vmatpush1.bf16.msra.mxu0 0
    %2413 = vmatprep.subr.bf16.mxu0 0
    %2414 = vmatpush1.bf16.msra.mxu0 0
    %2415 = vmatprep.subr.bf16.mxu0 0
    %2416 = vmatpush1.bf16.msra.mxu0 0
    %2417 = vmatprep.mubr.bf16.mxu0 0
    %2418 = vmatmul.mubr.bf16.gmra.mrb[0].mxu0 %v2383
    %v2419 = vpop.f32.mrb[0].mxu0
    %v2420 = vadd.f32 %v2356, %v2419
    %v2421 = vpop.f32.mrb[0].mxu0
    %v2422 = vpop.f32.mrb[0].mxu0
    %v2423 = vadd.f32 %v2356, %v2422
    %v2424 = vpop.f32.mrb[0].mxu0
    %2425 = vdwg.mxu0
    %v2426 = vadd.f32 %v2287, %v2420
    %v2427 = vadd.f32 %v2288, %v2423
    %v2428 = vsel %vm66, %v2426, 0.0
    %2429 = vadd.xlane.f32.xlu0 %v2428
    %v2430 = vpop.xlane.xlu0 %2429
    %v2431 = vsel %vm66, %v2427, 0.0
    %2432 = vadd.xlane.f32.xlu0 %v2431
    %v2433 = vpop.xlane.xlu0 %2432
    %v2434 = vmul.f32 %v2430, %v1114
    %v2435 = vmul.f32 %v2433, %v1114
    %v2436 = vsub.f32 %v2426, %v2434
    %v2437 = vsub.f32 %v2427, %v2435
    %v2438 = vmul.f32 %v2436, %v2436
    %v2439 = vmul.f32 %v2437, %v2437
    %v2440 = vsel %vm66, %v2438, 0.0
    %2441 = vadd.xlane.f32.xlu0 %v2440
    %v2442 = vpop.xlane.xlu0 %2441
    %v2443 = vsel %vm66, %v2439, 0.0
    %2444 = vadd.xlane.f32.xlu0 %v2443
    %v2445 = vpop.xlane.xlu0 %2444
    %v2446 = vmul.f32 %v2442, %v1114
    %v2447 = vmul.f32 %v2445, %v1114
    %v2448 = vadd.f32 %v2446, 1e-05
    %v2449 = vadd.f32 %v2447, 1e-05
    %v2450 = vrsqrt.pop %v2448
    %v2451 = vrsqrt.pop %v2449
    %v2452 = vmul.f32 %v2436, %v2450
    %v2453 = vmul.f32 %v2437, %v2451
    %v2454 = vlaneseq
    %v2455 = vshrl.u32 %v2454, 7
    %v2456 = vsub.s32 3, %v2455
    %v2457 = vrot.slane %v48, %v2456
    %v2458 = vmul.f32 %v2452, %v2457
    %v2459 = vmul.f32 %v2453, %v2457
    %v2460 = vlaneseq
    %v2461 = vshrl.u32 %v2460, 7
    %v2462 = vsub.s32 4, %v2461
    %v2463 = vrot.slane %v48, %v2462
    %v2464 = vadd.f32 %v2458, %v2463
    %v2465 = vadd.f32 %v2459, %v2463
    %s2466 = scalar_lea.vmem %s3, 48
    %v2467 = vld [vmem:[%s2466] sm:$0xff]
    %v2468 = vld [vmem:[%s2466 + $0x8] sm:$0xf]
    %v2469 = vld [vmem:[%s2466 + $0xc] sm:$0xff]
    %v2470 = vld [vmem:[%s2466 + $0x14] sm:$0xf]
    %v2471 = vld [vmem:[%s2466 + $0x18] sm:$0xff]
    %v2472 = vld [vmem:[%s2466 + $0x20] sm:$0xf]
    %v2473 = vld [vmem:[%s2466 + $0x24] sm:$0xff]
    %v2474 = vld [vmem:[%s2466 + $0x2c] sm:$0xf]
    %s2475 = scalar_lea.vmem %s4, 32
    %v2476 = vld [vmem:[%s2475] sm:$0xf]
    %v2477 = vld [vmem:[%s2475 + $0x4] sm:$0xf]
    %v2478 = vld [vmem:[%s2475 + $0x8] sm:$0xf]
    %v2479 = vld [vmem:[%s2475 + $0xc] sm:$0xf]
    %v2480 = vld [vmem:[%s2475 + $0x10] sm:$0xf]
    %v2481 = vld [vmem:[%s2475 + $0x14] sm:$0xf]
    %v2482 = vld [vmem:[%s2475 + $0x18] sm:$0xf]
    %v2483 = vld [vmem:[%s2475 + $0x1c] sm:$0xf]
    %s2484 = scalar_lea.vmem %s5, 16
    %v2485 = vld [vmem:[%s2484] sm:$0xff]
    %v2486 = vld [vmem:[%s2484 + $0x8] sm:$0x1f]
    %v2487 = vpack.c.bf16 %v2465, %v2464
    %v2488 = vlaneseq
    %v2489 = vshrl.u32 %v2488, 7
    %v2490 = vsub.s32 0, %v2489
    %v2491 = vrot.slane %v2485, %v2490
    %v2496 = vunpack.c.l.b16 %v2467
    %v2497 = vunpack.c.l.b16 %v2469
    %v2498 = vunpack.c.l.b16 %v2471
    %v2499 = vunpack.c.l.b16 %v2473
    %v2500 = vpack.c.b16 %v2497, %v2496
    %v2501 = vpack.c.b16 %v2499, %v2498
    %v2505 = vsel %vm66, %v2487, 0
    %2507 = vmatprep.subr.bf16.mxu0 0
    %2508 = vmatpush1.bf16.msra.mxu0 %v2500
    %2509 = vmatprep.subr.bf16.mxu0 0
    %2510 = vmatpush1.bf16.msra.mxu0 %v2501
    %2511 = vmatprep.subr.bf16.mxu0 0
    %2512 = vmatpush1.bf16.msra.mxu0 0
    %2513 = vmatprep.subr.bf16.mxu0 0
    %2514 = vmatpush1.bf16.msra.mxu0 0
    %2515 = vmatprep.subr.bf16.mxu0 0
    %2516 = vmatpush1.bf16.msra.mxu0 0
    %2517 = vmatprep.subr.bf16.mxu0 0
    %2518 = vmatpush1.bf16.msra.mxu0 0
    %2519 = vmatprep.subr.bf16.mxu0 0
    %2520 = vmatpush1.bf16.msra.mxu0 0
    %2521 = vmatprep.subr.bf16.mxu0 0
    %2522 = vmatpush1.bf16.msra.mxu0 0
    %2523 = vmatprep.subr.bf16.mxu0 0
    %2524 = vmatpush1.bf16.msra.mxu0 0
    %2525 = vmatprep.subr.bf16.mxu0 0
    %2526 = vmatpush1.bf16.msra.mxu0 0
    %2527 = vmatprep.subr.bf16.mxu0 0
    %2528 = vmatpush1.bf16.msra.mxu0 0
    %2529 = vmatprep.subr.bf16.mxu0 0
    %2530 = vmatpush1.bf16.msra.mxu0 0
    %2531 = vmatprep.subr.bf16.mxu0 0
    %2532 = vmatpush1.bf16.msra.mxu0 0
    %2533 = vmatprep.subr.bf16.mxu0 0
    %2534 = vmatpush1.bf16.msra.mxu0 0
    %2535 = vmatprep.subr.bf16.mxu0 0
    %2536 = vmatpush1.bf16.msra.mxu0 0
    %2537 = vmatprep.subr.bf16.mxu0 0
    %2538 = vmatpush1.bf16.msra.mxu0 0
    %2539 = vmatprep.mubr.bf16.mxu0 0
    %2540 = vmatmul.mubr.bf16.gmra.mrb[0].mxu0 %v2505
    %v2541 = vpop.f32.mrb[0].mxu0
    %v2542 = vadd.f32 %v2491, %v2541
    %v2543 = vpop.f32.mrb[0].mxu0
    %v2544 = vpop.f32.mrb[0].mxu0
    %v2545 = vadd.f32 %v2491, %v2544
    %v2546 = vpop.f32.mrb[0].mxu0
    %2547 = vdwg.mxu0
    %2550 = vrot.lane.b32.xlu0 %v2542, 120
    %v2551 = vpop.permute.xlu0 %2550
    %2552 = vrot.lane.b32.xlu0 %v2545, 120
    %v2553 = vpop.permute.xlu0 %2552
    %2556 = vrot.lane.b32.xlu0 %v2542, 112
    %v2557 = vpop.permute.xlu0 %2556
    %2558 = vrot.lane.b32.xlu0 %v2545, 112
    %v2559 = vpop.permute.xlu0 %2558
    %2562 = vrot.lane.b32.xlu0 %v2542, 104
    %v2563 = vpop.permute.xlu0 %2562
    %2564 = vrot.lane.b32.xlu0 %v2545, 104
    %v2565 = vpop.permute.xlu0 %2564
    %v2568 = vpack.c.bf16 %v2542, %v2542
    %v2569 = vpack.c.bf16 %v2551, %v2551
    %v2570 = vpack.c.bf16 %v2557, %v2557
    %v2571 = vpack.c.bf16 %v2563, %v2563
    %v2572 = vpack.c.bf16 %v2545, %v2545
    %v2573 = vpack.c.bf16 %v2553, %v2553
    %v2574 = vpack.c.bf16 %v2559, %v2559
    %v2575 = vpack.c.bf16 %v2565, %v2565
    %2577 = vrot.lane.b32.xlu0 %v2568, 96
    %v2578 = vpop.permute.xlu0 %2577
    %v2580 = vsel %vm142, %v2568, 0
    %v2583 = vsel %vm142, %v2578, 0
    %2585 = vmatprep.subr.bf16.mxu0 0
    %2586 = vmatpush1.bf16.xpose.msra.mxu0 %v2583
    %2587 = vmatprep.subr.bf16.mxu0 0
    %2588 = vmatpush1.bf16.xpose.msra.mxu0 0
    %2589 = vmatprep.subr.bf16.mxu0 0
    %2590 = vmatpush1.bf16.xpose.msra.mxu0 0
    %2591 = vmatprep.subr.bf16.mxu0 0
    %2592 = vmatpush1.bf16.xpose.msra.mxu0 0
    %2593 = vmatprep.subr.bf16.mxu0 0
    %2594 = vmatpush1.bf16.xpose.msra.mxu0 0
    %2595 = vmatprep.subr.bf16.mxu0 0
    %2596 = vmatpush1.bf16.xpose.msra.mxu0 0
    %2597 = vmatprep.subr.bf16.mxu0 0
    %2598 = vmatpush1.bf16.xpose.msra.mxu0 0
    %2599 = vmatprep.subr.bf16.mxu0 0
    %2600 = vmatpush1.bf16.xpose.msra.mxu0 0
    %2601 = vmatprep.subr.bf16.mxu0 0
    %2602 = vmatpush1.bf16.xpose.msra.mxu0 0
    %2603 = vmatprep.subr.bf16.mxu0 0
    %2604 = vmatpush1.bf16.xpose.msra.mxu0 0
    %2605 = vmatprep.subr.bf16.mxu0 0
    %2606 = vmatpush1.bf16.xpose.msra.mxu0 0
    %2607 = vmatprep.subr.bf16.mxu0 0
    %2608 = vmatpush1.bf16.xpose.msra.mxu0 0
    %2609 = vmatprep.subr.bf16.mxu0 0
    %2610 = vmatpush1.bf16.xpose.msra.mxu0 0
    %2611 = vmatprep.subr.bf16.mxu0 0
    %2612 = vmatpush1.bf16.xpose.msra.mxu0 0
    %2613 = vmatprep.subr.bf16.mxu0 0
    %2614 = vmatpush1.bf16.xpose.msra.mxu0 0
    %2615 = vmatprep.subr.bf16.mxu0 0
    %2616 = vmatpush1.bf16.xpose.msra.mxu0 0
    %2617 = vmatprep.mubr.bf16.mxu0 0
    %2618 = vmatmul.mubr.bf16.gmra.mrb[0].mxu0 %v2580
    %v2619 = vpop.f32.mrb[0].mxu0
    %v2620 = vadd.f32 %v29, %v2619
    %v2621 = vpop.f32.mrb[0].mxu0
    %v2622 = vpop.f32.mrb[0].mxu0
    %v2623 = vpop.f32.mrb[0].mxu0
    %2624 = vdwg.mxu0
    %2626 = vrot.lane.b32.xlu0 %v2569, 96
    %v2627 = vpop.permute.xlu0 %2626
    %v2629 = vsel %vm142, %v2569, 0
    %v2632 = vsel %vm142, %v2627, 0
    %2634 = vmatprep.subr.bf16.mxu0 0
    %2635 = vmatpush1.bf16.xpose.msra.mxu0 %v2632
    %2636 = vmatprep.subr.bf16.mxu0 0
    %2637 = vmatpush1.bf16.xpose.msra.mxu0 0
    %2638 = vmatprep.subr.bf16.mxu0 0
    %2639 = vmatpush1.bf16.xpose.msra.mxu0 0
    %2640 = vmatprep.subr.bf16.mxu0 0
    %2641 = vmatpush1.bf16.xpose.msra.mxu0 0
    %2642 = vmatprep.subr.bf16.mxu0 0
    %2643 = vmatpush1.bf16.xpose.msra.mxu0 0
    %2644 = vmatprep.subr.bf16.mxu0 0
    %2645 = vmatpush1.bf16.xpose.msra.mxu0 0
    %2646 = vmatprep.subr.bf16.mxu0 0
    %2647 = vmatpush1.bf16.xpose.msra.mxu0 0
    %2648 = vmatprep.subr.bf16.mxu0 0
    %2649 = vmatpush1.bf16.xpose.msra.mxu0 0
    %2650 = vmatprep.subr.bf16.mxu0 0
    %2651 = vmatpush1.bf16.xpose.msra.mxu0 0
    %2652 = vmatprep.subr.bf16.mxu0 0
    %2653 = vmatpush1.bf16.xpose.msra.mxu0 0
    %2654 = vmatprep.subr.bf16.mxu0 0
    %2655 = vmatpush1.bf16.xpose.msra.mxu0 0
    %2656 = vmatprep.subr.bf16.mxu0 0
    %2657 = vmatpush1.bf16.xpose.msra.mxu0 0
    %2658 = vmatprep.subr.bf16.mxu0 0
    %2659 = vmatpush1.bf16.xpose.msra.mxu0 0
    %2660 = vmatprep.subr.bf16.mxu0 0
    %2661 = vmatpush1.bf16.xpose.msra.mxu0 0
    %2662 = vmatprep.subr.bf16.mxu0 0
    %2663 = vmatpush1.bf16.xpose.msra.mxu0 0
    %2664 = vmatprep.subr.bf16.mxu0 0
    %2665 = vmatpush1.bf16.xpose.msra.mxu0 0
    %2666 = vmatprep.mubr.bf16.mxu0 0
    %2667 = vmatmul.mubr.bf16.gmra.mrb[0].mxu0 %v2629
    %v2668 = vpop.f32.mrb[0].mxu0
    %v2669 = vadd.f32 %v29, %v2668
    %v2670 = vpop.f32.mrb[0].mxu0
    %v2671 = vpop.f32.mrb[0].mxu0
    %v2672 = vpop.f32.mrb[0].mxu0
    %2673 = vdwg.mxu0
    %2675 = vrot.lane.b32.xlu0 %v2570, 96
    %v2676 = vpop.permute.xlu0 %2675
    %v2678 = vsel %vm142, %v2570, 0
    %v2681 = vsel %vm142, %v2676, 0
    %2683 = vmatprep.subr.bf16.mxu0 0
    %2684 = vmatpush1.bf16.xpose.msra.mxu0 %v2681
    %2685 = vmatprep.subr.bf16.mxu0 0
    %2686 = vmatpush1.bf16.xpose.msra.mxu0 0
    %2687 = vmatprep.subr.bf16.mxu0 0
    %2688 = vmatpush1.bf16.xpose.msra.mxu0 0
    %2689 = vmatprep.subr.bf16.mxu0 0
    %2690 = vmatpush1.bf16.xpose.msra.mxu0 0
    %2691 = vmatprep.subr.bf16.mxu0 0
    %2692 = vmatpush1.bf16.xpose.msra.mxu0 0
    %2693 = vmatprep.subr.bf16.mxu0 0
    %2694 = vmatpush1.bf16.xpose.msra.mxu0 0
    %2695 = vmatprep.subr.bf16.mxu0 0
    %2696 = vmatpush1.bf16.xpose.msra.mxu0 0
    %2697 = vmatprep.subr.bf16.mxu0 0
    %2698 = vmatpush1.bf16.xpose.msra.mxu0 0
    %2699 = vmatprep.subr.bf16.mxu0 0
    %2700 = vmatpush1.bf16.xpose.msra.mxu0 0
    %2701 = vmatprep.subr.bf16.mxu0 0
    %2702 = vmatpush1.bf16.xpose.msra.mxu0 0
    %2703 = vmatprep.subr.bf16.mxu0 0
    %2704 = vmatpush1.bf16.xpose.msra.mxu0 0
    %2705 = vmatprep.subr.bf16.mxu0 0
    %2706 = vmatpush1.bf16.xpose.msra.mxu0 0
    %2707 = vmatprep.subr.bf16.mxu0 0
    %2708 = vmatpush1.bf16.xpose.msra.mxu0 0
    %2709 = vmatprep.subr.bf16.mxu0 0
    %2710 = vmatpush1.bf16.xpose.msra.mxu0 0
    %2711 = vmatprep.subr.bf16.mxu0 0
    %2712 = vmatpush1.bf16.xpose.msra.mxu0 0
    %2713 = vmatprep.subr.bf16.mxu0 0
    %2714 = vmatpush1.bf16.xpose.msra.mxu0 0
    %2715 = vmatprep.mubr.bf16.mxu0 0
    %2716 = vmatmul.mubr.bf16.gmra.mrb[0].mxu0 %v2678
    %v2717 = vpop.f32.mrb[0].mxu0
    %v2718 = vadd.f32 %v29, %v2717
    %v2719 = vpop.f32.mrb[0].mxu0
    %v2720 = vpop.f32.mrb[0].mxu0
    %v2721 = vpop.f32.mrb[0].mxu0
    %2722 = vdwg.mxu0
    %2724 = vrot.lane.b32.xlu0 %v2571, 96
    %v2725 = vpop.permute.xlu0 %2724
    %v2727 = vsel %vm142, %v2571, 0
    %v2730 = vsel %vm142, %v2725, 0
    %2732 = vmatprep.subr.bf16.mxu0 0
    %2733 = vmatpush1.bf16.xpose.msra.mxu0 %v2730
    %2734 = vmatprep.subr.bf16.mxu0 0
    %2735 = vmatpush1.bf16.xpose.msra.mxu0 0
    %2736 = vmatprep.subr.bf16.mxu0 0
    %2737 = vmatpush1.bf16.xpose.msra.mxu0 0
    %2738 = vmatprep.subr.bf16.mxu0 0
    %2739 = vmatpush1.bf16.xpose.msra.mxu0 0
    %2740 = vmatprep.subr.bf16.mxu0 0
    %2741 = vmatpush1.bf16.xpose.msra.mxu0 0
    %2742 = vmatprep.subr.bf16.mxu0 0
    %2743 = vmatpush1.bf16.xpose.msra.mxu0 0
    %2744 = vmatprep.subr.bf16.mxu0 0
    %2745 = vmatpush1.bf16.xpose.msra.mxu0 0
    %2746 = vmatprep.subr.bf16.mxu0 0
    %2747 = vmatpush1.bf16.xpose.msra.mxu0 0
    %2748 = vmatprep.subr.bf16.mxu0 0
    %2749 = vmatpush1.bf16.xpose.msra.mxu0 0
    %2750 = vmatprep.subr.bf16.mxu0 0
    %2751 = vmatpush1.bf16.xpose.msra.mxu0 0
    %2752 = vmatprep.subr.bf16.mxu0 0
    %2753 = vmatpush1.bf16.xpose.msra.mxu0 0
    %2754 = vmatprep.subr.bf16.mxu0 0
    %2755 = vmatpush1.bf16.xpose.msra.mxu0 0
    %2756 = vmatprep.subr.bf16.mxu0 0
    %2757 = vmatpush1.bf16.xpose.msra.mxu0 0
    %2758 = vmatprep.subr.bf16.mxu0 0
    %2759 = vmatpush1.bf16.xpose.msra.mxu0 0
    %2760 = vmatprep.subr.bf16.mxu0 0
    %2761 = vmatpush1.bf16.xpose.msra.mxu0 0
    %2762 = vmatprep.subr.bf16.mxu0 0
    %2763 = vmatpush1.bf16.xpose.msra.mxu0 0
    %2764 = vmatprep.mubr.bf16.mxu0 0
    %2765 = vmatmul.mubr.bf16.gmra.mrb[0].mxu0 %v2727
    %v2766 = vpop.f32.mrb[0].mxu0
    %v2767 = vadd.f32 %v29, %v2766
    %v2768 = vpop.f32.mrb[0].mxu0
    %v2769 = vpop.f32.mrb[0].mxu0
    %v2770 = vpop.f32.mrb[0].mxu0
    %2771 = vdwg.mxu0
    %2773 = vrot.lane.b32.xlu0 %v2572, 96
    %v2774 = vpop.permute.xlu0 %2773
    %v2776 = vsel %vm142, %v2572, 0
    %v2779 = vsel %vm142, %v2774, 0
    %2781 = vmatprep.subr.bf16.mxu0 0
    %2782 = vmatpush1.bf16.xpose.msra.mxu0 %v2779
    %2783 = vmatprep.subr.bf16.mxu0 0
    %2784 = vmatpush1.bf16.xpose.msra.mxu0 0
    %2785 = vmatprep.subr.bf16.mxu0 0
    %2786 = vmatpush1.bf16.xpose.msra.mxu0 0
    %2787 = vmatprep.subr.bf16.mxu0 0
    %2788 = vmatpush1.bf16.xpose.msra.mxu0 0
    %2789 = vmatprep.subr.bf16.mxu0 0
    %2790 = vmatpush1.bf16.xpose.msra.mxu0 0
    %2791 = vmatprep.subr.bf16.mxu0 0
    %2792 = vmatpush1.bf16.xpose.msra.mxu0 0
    %2793 = vmatprep.subr.bf16.mxu0 0
    %2794 = vmatpush1.bf16.xpose.msra.mxu0 0
    %2795 = vmatprep.subr.bf16.mxu0 0
    %2796 = vmatpush1.bf16.xpose.msra.mxu0 0
    %2797 = vmatprep.subr.bf16.mxu0 0
    %2798 = vmatpush1.bf16.xpose.msra.mxu0 0
    %2799 = vmatprep.subr.bf16.mxu0 0
    %2800 = vmatpush1.bf16.xpose.msra.mxu0 0
    %2801 = vmatprep.subr.bf16.mxu0 0
    %2802 = vmatpush1.bf16.xpose.msra.mxu0 0
    %2803 = vmatprep.subr.bf16.mxu0 0
    %2804 = vmatpush1.bf16.xpose.msra.mxu0 0
    %2805 = vmatprep.subr.bf16.mxu0 0
    %2806 = vmatpush1.bf16.xpose.msra.mxu0 0
    %2807 = vmatprep.subr.bf16.mxu0 0
    %2808 = vmatpush1.bf16.xpose.msra.mxu0 0
    %2809 = vmatprep.subr.bf16.mxu0 0
    %2810 = vmatpush1.bf16.xpose.msra.mxu0 0
    %2811 = vmatprep.subr.bf16.mxu0 0
    %2812 = vmatpush1.bf16.xpose.msra.mxu0 0
    %2813 = vmatprep.mubr.bf16.mxu0 0
    %2814 = vmatmul.mubr.bf16.gmra.mrb[0].mxu0 %v2776
    %v2815 = vpop.f32.mrb[0].mxu0
    %v2816 = vadd.f32 %v29, %v2815
    %v2817 = vpop.f32.mrb[0].mxu0
    %v2818 = vpop.f32.mrb[0].mxu0
    %v2819 = vpop.f32.mrb[0].mxu0
    %2820 = vdwg.mxu0
    %2822 = vrot.lane.b32.xlu0 %v2573, 96
    %v2823 = vpop.permute.xlu0 %2822
    %v2825 = vsel %vm142, %v2573, 0
    %v2828 = vsel %vm142, %v2823, 0
    %2830 = vmatprep.subr.bf16.mxu0 0
    %2831 = vmatpush1.bf16.xpose.msra.mxu0 %v2828
    %2832 = vmatprep.subr.bf16.mxu0 0
    %2833 = vmatpush1.bf16.xpose.msra.mxu0 0
    %2834 = vmatprep.subr.bf16.mxu0 0
    %2835 = vmatpush1.bf16.xpose.msra.mxu0 0
    %2836 = vmatprep.subr.bf16.mxu0 0
    %2837 = vmatpush1.bf16.xpose.msra.mxu0 0
    %2838 = vmatprep.subr.bf16.mxu0 0
    %2839 = vmatpush1.bf16.xpose.msra.mxu0 0
    %2840 = vmatprep.subr.bf16.mxu0 0
    %2841 = vmatpush1.bf16.xpose.msra.mxu0 0
    %2842 = vmatprep.subr.bf16.mxu0 0
    %2843 = vmatpush1.bf16.xpose.msra.mxu0 0
    %2844 = vmatprep.subr.bf16.mxu0 0
    %2845 = vmatpush1.bf16.xpose.msra.mxu0 0
    %2846 = vmatprep.subr.bf16.mxu0 0
    %2847 = vmatpush1.bf16.xpose.msra.mxu0 0
    %2848 = vmatprep.subr.bf16.mxu0 0
    %2849 = vmatpush1.bf16.xpose.msra.mxu0 0
    %2850 = vmatprep.subr.bf16.mxu0 0
    %2851 = vmatpush1.bf16.xpose.msra.mxu0 0
    %2852 = vmatprep.subr.bf16.mxu0 0
    %2853 = vmatpush1.bf16.xpose.msra.mxu0 0
    %2854 = vmatprep.subr.bf16.mxu0 0
    %2855 = vmatpush1.bf16.xpose.msra.mxu0 0
    %2856 = vmatprep.subr.bf16.mxu0 0
    %2857 = vmatpush1.bf16.xpose.msra.mxu0 0
    %2858 = vmatprep.subr.bf16.mxu0 0
    %2859 = vmatpush1.bf16.xpose.msra.mxu0 0
    %2860 = vmatprep.subr.bf16.mxu0 0
    %2861 = vmatpush1.bf16.xpose.msra.mxu0 0
    %2862 = vmatprep.mubr.bf16.mxu0 0
    %2863 = vmatmul.mubr.bf16.gmra.mrb[0].mxu0 %v2825
    %v2864 = vpop.f32.mrb[0].mxu0
    %v2865 = vadd.f32 %v29, %v2864
    %v2866 = vpop.f32.mrb[0].mxu0
    %v2867 = vpop.f32.mrb[0].mxu0
    %v2868 = vpop.f32.mrb[0].mxu0
    %2869 = vdwg.mxu0
    %2871 = vrot.lane.b32.xlu0 %v2574, 96
    %v2872 = vpop.permute.xlu0 %2871
    %v2874 = vsel %vm142, %v2574, 0
    %v2877 = vsel %vm142, %v2872, 0
    %2879 = vmatprep.subr.bf16.mxu0 0
    %2880 = vmatpush1.bf16.xpose.msra.mxu0 %v2877
    %2881 = vmatprep.subr.bf16.mxu0 0
    %2882 = vmatpush1.bf16.xpose.msra.mxu0 0
    %2883 = vmatprep.subr.bf16.mxu0 0
    %2884 = vmatpush1.bf16.xpose.msra.mxu0 0
    %2885 = vmatprep.subr.bf16.mxu0 0
    %2886 = vmatpush1.bf16.xpose.msra.mxu0 0
    %2887 = vmatprep.subr.bf16.mxu0 0
    %2888 = vmatpush1.bf16.xpose.msra.mxu0 0
    %2889 = vmatprep.subr.bf16.mxu0 0
    %2890 = vmatpush1.bf16.xpose.msra.mxu0 0
    %2891 = vmatprep.subr.bf16.mxu0 0
    %2892 = vmatpush1.bf16.xpose.msra.mxu0 0
    %2893 = vmatprep.subr.bf16.mxu0 0
    %2894 = vmatpush1.bf16.xpose.msra.mxu0 0
    %2895 = vmatprep.subr.bf16.mxu0 0
    %2896 = vmatpush1.bf16.xpose.msra.mxu0 0
    %2897 = vmatprep.subr.bf16.mxu0 0
    %2898 = vmatpush1.bf16.xpose.msra.mxu0 0
    %2899 = vmatprep.subr.bf16.mxu0 0
    %2900 = vmatpush1.bf16.xpose.msra.mxu0 0
    %2901 = vmatprep.subr.bf16.mxu0 0
    %2902 = vmatpush1.bf16.xpose.msra.mxu0 0
    %2903 = vmatprep.subr.bf16.mxu0 0
    %2904 = vmatpush1.bf16.xpose.msra.mxu0 0
    %2905 = vmatprep.subr.bf16.mxu0 0
    %2906 = vmatpush1.bf16.xpose.msra.mxu0 0
    %2907 = vmatprep.subr.bf16.mxu0 0
    %2908 = vmatpush1.bf16.xpose.msra.mxu0 0
    %2909 = vmatprep.subr.bf16.mxu0 0
    %2910 = vmatpush1.bf16.xpose.msra.mxu0 0
    %2911 = vmatprep.mubr.bf16.mxu0 0
    %2912 = vmatmul.mubr.bf16.gmra.mrb[0].mxu0 %v2874
    %v2913 = vpop.f32.mrb[0].mxu0
    %v2914 = vadd.f32 %v29, %v2913
    %v2915 = vpop.f32.mrb[0].mxu0
    %v2916 = vpop.f32.mrb[0].mxu0
    %v2917 = vpop.f32.mrb[0].mxu0
    %2918 = vdwg.mxu0
    %2920 = vrot.lane.b32.xlu0 %v2575, 96
    %v2921 = vpop.permute.xlu0 %2920
    %v2923 = vsel %vm142, %v2575, 0
    %v2926 = vsel %vm142, %v2921, 0
    %2928 = vmatprep.subr.bf16.mxu0 0
    %2929 = vmatpush1.bf16.xpose.msra.mxu0 %v2926
    %2930 = vmatprep.subr.bf16.mxu0 0
    %2931 = vmatpush1.bf16.xpose.msra.mxu0 0
    %2932 = vmatprep.subr.bf16.mxu0 0
    %2933 = vmatpush1.bf16.xpose.msra.mxu0 0
    %2934 = vmatprep.subr.bf16.mxu0 0
    %2935 = vmatpush1.bf16.xpose.msra.mxu0 0
    %2936 = vmatprep.subr.bf16.mxu0 0
    %2937 = vmatpush1.bf16.xpose.msra.mxu0 0
    %2938 = vmatprep.subr.bf16.mxu0 0
    %2939 = vmatpush1.bf16.xpose.msra.mxu0 0
    %2940 = vmatprep.subr.bf16.mxu0 0
    %2941 = vmatpush1.bf16.xpose.msra.mxu0 0
    %2942 = vmatprep.subr.bf16.mxu0 0
    %2943 = vmatpush1.bf16.xpose.msra.mxu0 0
    %2944 = vmatprep.subr.bf16.mxu0 0
    %2945 = vmatpush1.bf16.xpose.msra.mxu0 0
    %2946 = vmatprep.subr.bf16.mxu0 0
    %2947 = vmatpush1.bf16.xpose.msra.mxu0 0
    %2948 = vmatprep.subr.bf16.mxu0 0
    %2949 = vmatpush1.bf16.xpose.msra.mxu0 0
    %2950 = vmatprep.subr.bf16.mxu0 0
    %2951 = vmatpush1.bf16.xpose.msra.mxu0 0
    %2952 = vmatprep.subr.bf16.mxu0 0
    %2953 = vmatpush1.bf16.xpose.msra.mxu0 0
    %2954 = vmatprep.subr.bf16.mxu0 0
    %2955 = vmatpush1.bf16.xpose.msra.mxu0 0
    %2956 = vmatprep.subr.bf16.mxu0 0
    %2957 = vmatpush1.bf16.xpose.msra.mxu0 0
    %2958 = vmatprep.subr.bf16.mxu0 0
    %2959 = vmatpush1.bf16.xpose.msra.mxu0 0
    %2960 = vmatprep.mubr.bf16.mxu0 0
    %2961 = vmatmul.mubr.bf16.gmra.mrb[0].mxu0 %v2923
    %v2962 = vpop.f32.mrb[0].mxu0
    %v2963 = vadd.f32 %v29, %v2962
    %v2964 = vpop.f32.mrb[0].mxu0
    %v2965 = vpop.f32.mrb[0].mxu0
    %v2966 = vpop.f32.mrb[0].mxu0
    %2967 = vdwg.mxu0
    %v2968 = vsel %vm142, %v2620, -inf
    %2969 = vmax.xlane.f32.xlu0 %v2968
    %v2970 = vpop.xlane.xlu0 %2969
    %v2971 = vsel %vm142, %v2669, -inf
    %2972 = vmax.xlane.f32.xlu0 %v2971
    %v2973 = vpop.xlane.xlu0 %2972
    %v2974 = vsel %vm142, %v2718, -inf
    %2975 = vmax.xlane.f32.xlu0 %v2974
    %v2976 = vpop.xlane.xlu0 %2975
    %v2977 = vsel %vm142, %v2767, -inf
    %2978 = vmax.xlane.f32.xlu0 %v2977
    %v2979 = vpop.xlane.xlu0 %2978
    %v2980 = vsel %vm142, %v2816, -inf
    %2981 = vmax.xlane.f32.xlu0 %v2980
    %v2982 = vpop.xlane.xlu0 %2981
    %v2983 = vsel %vm142, %v2865, -inf
    %2984 = vmax.xlane.f32.xlu0 %v2983
    %v2985 = vpop.xlane.xlu0 %2984
    %v2986 = vsel %vm142, %v2914, -inf
    %2987 = vmax.xlane.f32.xlu0 %v2986
    %v2988 = vpop.xlane.xlu0 %2987
    %v2989 = vsel %vm142, %v2963, -inf
    %2990 = vmax.xlane.f32.xlu0 %v2989
    %v2991 = vpop.xlane.xlu0 %2990
    %v2992 = vsub.f32 %v2620, %v2970
    %v2993 = vsub.f32 %v2669, %v2973
    %v2994 = vsub.f32 %v2718, %v2976
    %v2995 = vsub.f32 %v2767, %v2979
    %v2996 = vsub.f32 %v2816, %v2982
    %v2997 = vsub.f32 %v2865, %v2985
    %v2998 = vsub.f32 %v2914, %v2988
    %v2999 = vsub.f32 %v2963, %v2991
    %v3000 = vmul.f32 %v2992, 1.442695
    %v3001 = vpow.pop %v3000
    %v3002 = vmul.f32 %v2993, 1.442695
    %v3003 = vpow.pop %v3002
    %v3004 = vmul.f32 %v2994, 1.442695
    %v3005 = vpow.pop %v3004
    %v3006 = vmul.f32 %v2995, 1.442695
    %v3007 = vpow.pop %v3006
    %v3008 = vmul.f32 %v2996, 1.442695
    %v3009 = vpow.pop %v3008
    %v3010 = vmul.f32 %v2997, 1.442695
    %v3011 = vpow.pop %v3010
    %v3012 = vmul.f32 %v2998, 1.442695
    %v3013 = vpow.pop %v3012
    %v3014 = vmul.f32 %v2999, 1.442695
    %v3015 = vpow.pop %v3014
    %v3016 = vsel %vm142, %v3001, 0.0
    %3017 = vadd.xlane.f32.xlu0 %v3016
    %v3018 = vpop.xlane.xlu0 %3017
    %v3019 = vsel %vm142, %v3003, 0.0
    %3020 = vadd.xlane.f32.xlu0 %v3019
    %v3021 = vpop.xlane.xlu0 %3020
    %v3022 = vsel %vm142, %v3005, 0.0
    %3023 = vadd.xlane.f32.xlu0 %v3022
    %v3024 = vpop.xlane.xlu0 %3023
    %v3025 = vsel %vm142, %v3007, 0.0
    %3026 = vadd.xlane.f32.xlu0 %v3025
    %v3027 = vpop.xlane.xlu0 %3026
    %v3028 = vsel %vm142, %v3009, 0.0
    %3029 = vadd.xlane.f32.xlu0 %v3028
    %v3030 = vpop.xlane.xlu0 %3029
    %v3031 = vsel %vm142, %v3011, 0.0
    %3032 = vadd.xlane.f32.xlu0 %v3031
    %v3033 = vpop.xlane.xlu0 %3032
    %v3034 = vsel %vm142, %v3013, 0.0
    %3035 = vadd.xlane.f32.xlu0 %v3034
    %v3036 = vpop.xlane.xlu0 %3035
    %v3037 = vsel %vm142, %v3015, 0.0
    %3038 = vadd.xlane.f32.xlu0 %v3037
    %v3039 = vpop.xlane.xlu0 %3038
    %v3040 = vrcp.pop %v3018
    %v3041 = vrcp.pop %v3021
    %v3042 = vrcp.pop %v3024
    %v3043 = vrcp.pop %v3027
    %v3044 = vrcp.pop %v3030
    %v3045 = vrcp.pop %v3033
    %v3046 = vrcp.pop %v3036
    %v3047 = vrcp.pop %v3039
    %v3048 = vmul.f32 %v3001, %v3040
    %v3049 = vmul.f32 %v3003, %v3041
    %v3050 = vmul.f32 %v3005, %v3042
    %v3051 = vmul.f32 %v3007, %v3043
    %v3052 = vmul.f32 %v3009, %v3044
    %v3053 = vmul.f32 %v3011, %v3045
    %v3054 = vmul.f32 %v3013, %v3046
    %v3055 = vmul.f32 %v3015, %v3047
    %v3056 = vpack.c.bf16 %v3048, %v3048
    %v3057 = vpack.c.bf16 %v3049, %v3049
    %v3058 = vpack.c.bf16 %v3050, %v3050
    %v3059 = vpack.c.bf16 %v3051, %v3051
    %v3060 = vpack.c.bf16 %v3052, %v3052
    %v3061 = vpack.c.bf16 %v3053, %v3053
    %v3062 = vpack.c.bf16 %v3054, %v3054
    %v3063 = vpack.c.bf16 %v3055, %v3055
    %3064 = vrot.lane.b32.xlu0 %v2568, 64
    %v3065 = vpop.permute.xlu0 %3064
    %v3067 = vsel %vm142, %v3056, 0
    %v3070 = vsel %vm633, %v3065, 0
    %3072 = vmatprep.subr.bf16.mxu0 0
    %3073 = vmatpush1.bf16.msra.mxu0 %v3070
    %3074 = vmatprep.subr.bf16.mxu0 0
    %3075 = vmatpush1.bf16.msra.mxu0 0
    %3076 = vmatprep.subr.bf16.mxu0 0
    %3077 = vmatpush1.bf16.msra.mxu0 0
    %3078 = vmatprep.subr.bf16.mxu0 0
    %3079 = vmatpush1.bf16.msra.mxu0 0
    %3080 = vmatprep.subr.bf16.mxu0 0
    %3081 = vmatpush1.bf16.msra.mxu0 0
    %3082 = vmatprep.subr.bf16.mxu0 0
    %3083 = vmatpush1.bf16.msra.mxu0 0
    %3084 = vmatprep.subr.bf16.mxu0 0
    %3085 = vmatpush1.bf16.msra.mxu0 0
    %3086 = vmatprep.subr.bf16.mxu0 0
    %3087 = vmatpush1.bf16.msra.mxu0 0
    %3088 = vmatprep.subr.bf16.mxu0 0
    %3089 = vmatpush1.bf16.msra.mxu0 0
    %3090 = vmatprep.subr.bf16.mxu0 0
    %3091 = vmatpush1.bf16.msra.mxu0 0
    %3092 = vmatprep.subr.bf16.mxu0 0
    %3093 = vmatpush1.bf16.msra.mxu0 0
    %3094 = vmatprep.subr.bf16.mxu0 0
    %3095 = vmatpush1.bf16.msra.mxu0 0
    %3096 = vmatprep.subr.bf16.mxu0 0
    %3097 = vmatpush1.bf16.msra.mxu0 0
    %3098 = vmatprep.subr.bf16.mxu0 0
    %3099 = vmatpush1.bf16.msra.mxu0 0
    %3100 = vmatprep.subr.bf16.mxu0 0
    %3101 = vmatpush1.bf16.msra.mxu0 0
    %3102 = vmatprep.subr.bf16.mxu0 0
    %3103 = vmatpush1.bf16.msra.mxu0 0
    %3104 = vmatprep.mubr.bf16.mxu0 0
    %3105 = vmatmul.mubr.bf16.gmra.mrb[0].mxu0 %v3067
    %v3106 = vpop.f32.mrb[0].mxu0
    %v3107 = vadd.f32 0.0, %v3106
    %v3108 = vpop.f32.mrb[0].mxu0
    %v3109 = vpop.f32.mrb[0].mxu0
    %v3110 = vpop.f32.mrb[0].mxu0
    %3111 = vdwg.mxu0
    %3112 = vrot.lane.b32.xlu0 %v2569, 64
    %v3113 = vpop.permute.xlu0 %3112
    %v3115 = vsel %vm142, %v3057, 0
    %v3118 = vsel %vm633, %v3113, 0
    %3120 = vmatprep.subr.bf16.mxu0 0
    %3121 = vmatpush1.bf16.msra.mxu0 %v3118
    %3122 = vmatprep.subr.bf16.mxu0 0
    %3123 = vmatpush1.bf16.msra.mxu0 0
    %3124 = vmatprep.subr.bf16.mxu0 0
    %3125 = vmatpush1.bf16.msra.mxu0 0
    %3126 = vmatprep.subr.bf16.mxu0 0
    %3127 = vmatpush1.bf16.msra.mxu0 0
    %3128 = vmatprep.subr.bf16.mxu0 0
    %3129 = vmatpush1.bf16.msra.mxu0 0
    %3130 = vmatprep.subr.bf16.mxu0 0
    %3131 = vmatpush1.bf16.msra.mxu0 0
    %3132 = vmatprep.subr.bf16.mxu0 0
    %3133 = vmatpush1.bf16.msra.mxu0 0
    %3134 = vmatprep.subr.bf16.mxu0 0
    %3135 = vmatpush1.bf16.msra.mxu0 0
    %3136 = vmatprep.subr.bf16.mxu0 0
    %3137 = vmatpush1.bf16.msra.mxu0 0
    %3138 = vmatprep.subr.bf16.mxu0 0
    %3139 = vmatpush1.bf16.msra.mxu0 0
    %3140 = vmatprep.subr.bf16.mxu0 0
    %3141 = vmatpush1.bf16.msra.mxu0 0
    %3142 = vmatprep.subr.bf16.mxu0 0
    %3143 = vmatpush1.bf16.msra.mxu0 0
    %3144 = vmatprep.subr.bf16.mxu0 0
    %3145 = vmatpush1.bf16.msra.mxu0 0
    %3146 = vmatprep.subr.bf16.mxu0 0
    %3147 = vmatpush1.bf16.msra.mxu0 0
    %3148 = vmatprep.subr.bf16.mxu0 0
    %3149 = vmatpush1.bf16.msra.mxu0 0
    %3150 = vmatprep.subr.bf16.mxu0 0
    %3151 = vmatpush1.bf16.msra.mxu0 0
    %3152 = vmatprep.mubr.bf16.mxu0 0
    %3153 = vmatmul.mubr.bf16.gmra.mrb[0].mxu0 %v3115
    %v3154 = vpop.f32.mrb[0].mxu0
    %v3155 = vadd.f32 0.0, %v3154
    %v3156 = vpop.f32.mrb[0].mxu0
    %v3157 = vpop.f32.mrb[0].mxu0
    %v3158 = vpop.f32.mrb[0].mxu0
    %3159 = vdwg.mxu0
    %3160 = vrot.lane.b32.xlu0 %v2570, 64
    %v3161 = vpop.permute.xlu0 %3160
    %v3163 = vsel %vm142, %v3058, 0
    %v3166 = vsel %vm633, %v3161, 0
    %3168 = vmatprep.subr.bf16.mxu0 0
    %3169 = vmatpush1.bf16.msra.mxu0 %v3166
    %3170 = vmatprep.subr.bf16.mxu0 0
    %3171 = vmatpush1.bf16.msra.mxu0 0
    %3172 = vmatprep.subr.bf16.mxu0 0
    %3173 = vmatpush1.bf16.msra.mxu0 0
    %3174 = vmatprep.subr.bf16.mxu0 0
    %3175 = vmatpush1.bf16.msra.mxu0 0
    %3176 = vmatprep.subr.bf16.mxu0 0
    %3177 = vmatpush1.bf16.msra.mxu0 0
    %3178 = vmatprep.subr.bf16.mxu0 0
    %3179 = vmatpush1.bf16.msra.mxu0 0
    %3180 = vmatprep.subr.bf16.mxu0 0
    %3181 = vmatpush1.bf16.msra.mxu0 0
    %3182 = vmatprep.subr.bf16.mxu0 0
    %3183 = vmatpush1.bf16.msra.mxu0 0
    %3184 = vmatprep.subr.bf16.mxu0 0
    %3185 = vmatpush1.bf16.msra.mxu0 0
    %3186 = vmatprep.subr.bf16.mxu0 0
    %3187 = vmatpush1.bf16.msra.mxu0 0
    %3188 = vmatprep.subr.bf16.mxu0 0
    %3189 = vmatpush1.bf16.msra.mxu0 0
    %3190 = vmatprep.subr.bf16.mxu0 0
    %3191 = vmatpush1.bf16.msra.mxu0 0
    %3192 = vmatprep.subr.bf16.mxu0 0
    %3193 = vmatpush1.bf16.msra.mxu0 0
    %3194 = vmatprep.subr.bf16.mxu0 0
    %3195 = vmatpush1.bf16.msra.mxu0 0
    %3196 = vmatprep.subr.bf16.mxu0 0
    %3197 = vmatpush1.bf16.msra.mxu0 0
    %3198 = vmatprep.subr.bf16.mxu0 0
    %3199 = vmatpush1.bf16.msra.mxu0 0
    %3200 = vmatprep.mubr.bf16.mxu0 0
    %3201 = vmatmul.mubr.bf16.gmra.mrb[0].mxu0 %v3163
    %v3202 = vpop.f32.mrb[0].mxu0
    %v3203 = vadd.f32 0.0, %v3202
    %v3204 = vpop.f32.mrb[0].mxu0
    %v3205 = vpop.f32.mrb[0].mxu0
    %v3206 = vpop.f32.mrb[0].mxu0
    %3207 = vdwg.mxu0
    %3208 = vrot.lane.b32.xlu0 %v2571, 64
    %v3209 = vpop.permute.xlu0 %3208
    %v3211 = vsel %vm142, %v3059, 0
    %v3214 = vsel %vm633, %v3209, 0
    %3216 = vmatprep.subr.bf16.mxu0 0
    %3217 = vmatpush1.bf16.msra.mxu0 %v3214
    %3218 = vmatprep.subr.bf16.mxu0 0
    %3219 = vmatpush1.bf16.msra.mxu0 0
    %3220 = vmatprep.subr.bf16.mxu0 0
    %3221 = vmatpush1.bf16.msra.mxu0 0
    %3222 = vmatprep.subr.bf16.mxu0 0
    %3223 = vmatpush1.bf16.msra.mxu0 0
    %3224 = vmatprep.subr.bf16.mxu0 0
    %3225 = vmatpush1.bf16.msra.mxu0 0
    %3226 = vmatprep.subr.bf16.mxu0 0
    %3227 = vmatpush1.bf16.msra.mxu0 0
    %3228 = vmatprep.subr.bf16.mxu0 0
    %3229 = vmatpush1.bf16.msra.mxu0 0
    %3230 = vmatprep.subr.bf16.mxu0 0
    %3231 = vmatpush1.bf16.msra.mxu0 0
    %3232 = vmatprep.subr.bf16.mxu0 0
    %3233 = vmatpush1.bf16.msra.mxu0 0
    %3234 = vmatprep.subr.bf16.mxu0 0
    %3235 = vmatpush1.bf16.msra.mxu0 0
    %3236 = vmatprep.subr.bf16.mxu0 0
    %3237 = vmatpush1.bf16.msra.mxu0 0
    %3238 = vmatprep.subr.bf16.mxu0 0
    %3239 = vmatpush1.bf16.msra.mxu0 0
    %3240 = vmatprep.subr.bf16.mxu0 0
    %3241 = vmatpush1.bf16.msra.mxu0 0
    %3242 = vmatprep.subr.bf16.mxu0 0
    %3243 = vmatpush1.bf16.msra.mxu0 0
    %3244 = vmatprep.subr.bf16.mxu0 0
    %3245 = vmatpush1.bf16.msra.mxu0 0
    %3246 = vmatprep.subr.bf16.mxu0 0
    %3247 = vmatpush1.bf16.msra.mxu0 0
    %3248 = vmatprep.mubr.bf16.mxu0 0
    %3249 = vmatmul.mubr.bf16.gmra.mrb[0].mxu0 %v3211
    %v3250 = vpop.f32.mrb[0].mxu0
    %v3251 = vadd.f32 0.0, %v3250
    %v3252 = vpop.f32.mrb[0].mxu0
    %v3253 = vpop.f32.mrb[0].mxu0
    %v3254 = vpop.f32.mrb[0].mxu0
    %3255 = vdwg.mxu0
    %3256 = vrot.lane.b32.xlu0 %v2572, 64
    %v3257 = vpop.permute.xlu0 %3256
    %v3259 = vsel %vm142, %v3060, 0
    %v3262 = vsel %vm633, %v3257, 0
    %3264 = vmatprep.subr.bf16.mxu0 0
    %3265 = vmatpush1.bf16.msra.mxu0 %v3262
    %3266 = vmatprep.subr.bf16.mxu0 0
    %3267 = vmatpush1.bf16.msra.mxu0 0
    %3268 = vmatprep.subr.bf16.mxu0 0
    %3269 = vmatpush1.bf16.msra.mxu0 0
    %3270 = vmatprep.subr.bf16.mxu0 0
    %3271 = vmatpush1.bf16.msra.mxu0 0
    %3272 = vmatprep.subr.bf16.mxu0 0
    %3273 = vmatpush1.bf16.msra.mxu0 0
    %3274 = vmatprep.subr.bf16.mxu0 0
    %3275 = vmatpush1.bf16.msra.mxu0 0
    %3276 = vmatprep.subr.bf16.mxu0 0
    %3277 = vmatpush1.bf16.msra.mxu0 0
    %3278 = vmatprep.subr.bf16.mxu0 0
    %3279 = vmatpush1.bf16.msra.mxu0 0
    %3280 = vmatprep.subr.bf16.mxu0 0
    %3281 = vmatpush1.bf16.msra.mxu0 0
    %3282 = vmatprep.subr.bf16.mxu0 0
    %3283 = vmatpush1.bf16.msra.mxu0 0
    %3284 = vmatprep.subr.bf16.mxu0 0
    %3285 = vmatpush1.bf16.msra.mxu0 0
    %3286 = vmatprep.subr.bf16.mxu0 0
    %3287 = vmatpush1.bf16.msra.mxu0 0
    %3288 = vmatprep.subr.bf16.mxu0 0
    %3289 = vmatpush1.bf16.msra.mxu0 0
    %3290 = vmatprep.subr.bf16.mxu0 0
    %3291 = vmatpush1.bf16.msra.mxu0 0
    %3292 = vmatprep.subr.bf16.mxu0 0
    %3293 = vmatpush1.bf16.msra.mxu0 0
    %3294 = vmatprep.subr.bf16.mxu0 0
    %3295 = vmatpush1.bf16.msra.mxu0 0
    %3296 = vmatprep.mubr.bf16.mxu0 0
    %3297 = vmatmul.mubr.bf16.gmra.mrb[0].mxu0 %v3259
    %v3298 = vpop.f32.mrb[0].mxu0
    %v3299 = vadd.f32 0.0, %v3298
    %v3300 = vpop.f32.mrb[0].mxu0
    %v3301 = vpop.f32.mrb[0].mxu0
    %v3302 = vpop.f32.mrb[0].mxu0
    %3303 = vdwg.mxu0
    %3304 = vrot.lane.b32.xlu0 %v2573, 64
    %v3305 = vpop.permute.xlu0 %3304
    %v3307 = vsel %vm142, %v3061, 0
    %v3310 = vsel %vm633, %v3305, 0
    %3312 = vmatprep.subr.bf16.mxu0 0
    %3313 = vmatpush1.bf16.msra.mxu0 %v3310
    %3314 = vmatprep.subr.bf16.mxu0 0
    %3315 = vmatpush1.bf16.msra.mxu0 0
    %3316 = vmatprep.subr.bf16.mxu0 0
    %3317 = vmatpush1.bf16.msra.mxu0 0
    %3318 = vmatprep.subr.bf16.mxu0 0
    %3319 = vmatpush1.bf16.msra.mxu0 0
    %3320 = vmatprep.subr.bf16.mxu0 0
    %3321 = vmatpush1.bf16.msra.mxu0 0
    %3322 = vmatprep.subr.bf16.mxu0 0
    %3323 = vmatpush1.bf16.msra.mxu0 0
    %3324 = vmatprep.subr.bf16.mxu0 0
    %3325 = vmatpush1.bf16.msra.mxu0 0
    %3326 = vmatprep.subr.bf16.mxu0 0
    %3327 = vmatpush1.bf16.msra.mxu0 0
    %3328 = vmatprep.subr.bf16.mxu0 0
    %3329 = vmatpush1.bf16.msra.mxu0 0
    %3330 = vmatprep.subr.bf16.mxu0 0
    %3331 = vmatpush1.bf16.msra.mxu0 0
    %3332 = vmatprep.subr.bf16.mxu0 0
    %3333 = vmatpush1.bf16.msra.mxu0 0
    %3334 = vmatprep.subr.bf16.mxu0 0
    %3335 = vmatpush1.bf16.msra.mxu0 0
    %3336 = vmatprep.subr.bf16.mxu0 0
    %3337 = vmatpush1.bf16.msra.mxu0 0
    %3338 = vmatprep.subr.bf16.mxu0 0
    %3339 = vmatpush1.bf16.msra.mxu0 0
    %3340 = vmatprep.subr.bf16.mxu0 0
    %3341 = vmatpush1.bf16.msra.mxu0 0
    %3342 = vmatprep.subr.bf16.mxu0 0
    %3343 = vmatpush1.bf16.msra.mxu0 0
    %3344 = vmatprep.mubr.bf16.mxu0 0
    %3345 = vmatmul.mubr.bf16.gmra.mrb[0].mxu0 %v3307
    %v3346 = vpop.f32.mrb[0].mxu0
    %v3347 = vadd.f32 0.0, %v3346
    %v3348 = vpop.f32.mrb[0].mxu0
    %v3349 = vpop.f32.mrb[0].mxu0
    %v3350 = vpop.f32.mrb[0].mxu0
    %3351 = vdwg.mxu0
    %3352 = vrot.lane.b32.xlu0 %v2574, 64
    %v3353 = vpop.permute.xlu0 %3352
    %v3355 = vsel %vm142, %v3062, 0
    %v3358 = vsel %vm633, %v3353, 0
    %3360 = vmatprep.subr.bf16.mxu0 0
    %3361 = vmatpush1.bf16.msra.mxu0 %v3358
    %3362 = vmatprep.subr.bf16.mxu0 0
    %3363 = vmatpush1.bf16.msra.mxu0 0
    %3364 = vmatprep.subr.bf16.mxu0 0
    %3365 = vmatpush1.bf16.msra.mxu0 0
    %3366 = vmatprep.subr.bf16.mxu0 0
    %3367 = vmatpush1.bf16.msra.mxu0 0
    %3368 = vmatprep.subr.bf16.mxu0 0
    %3369 = vmatpush1.bf16.msra.mxu0 0
    %3370 = vmatprep.subr.bf16.mxu0 0
    %3371 = vmatpush1.bf16.msra.mxu0 0
    %3372 = vmatprep.subr.bf16.mxu0 0
    %3373 = vmatpush1.bf16.msra.mxu0 0
    %3374 = vmatprep.subr.bf16.mxu0 0
    %3375 = vmatpush1.bf16.msra.mxu0 0
    %3376 = vmatprep.subr.bf16.mxu0 0
    %3377 = vmatpush1.bf16.msra.mxu0 0
    %3378 = vmatprep.subr.bf16.mxu0 0
    %3379 = vmatpush1.bf16.msra.mxu0 0
    %3380 = vmatprep.subr.bf16.mxu0 0
    %3381 = vmatpush1.bf16.msra.mxu0 0
    %3382 = vmatprep.subr.bf16.mxu0 0
    %3383 = vmatpush1.bf16.msra.mxu0 0
    %3384 = vmatprep.subr.bf16.mxu0 0
    %3385 = vmatpush1.bf16.msra.mxu0 0
    %3386 = vmatprep.subr.bf16.mxu0 0
    %3387 = vmatpush1.bf16.msra.mxu0 0
    %3388 = vmatprep.subr.bf16.mxu0 0
    %3389 = vmatpush1.bf16.msra.mxu0 0
    %3390 = vmatprep.subr.bf16.mxu0 0
    %3391 = vmatpush1.bf16.msra.mxu0 0
    %3392 = vmatprep.mubr.bf16.mxu0 0
    %3393 = vmatmul.mubr.bf16.gmra.mrb[0].mxu0 %v3355
    %v3394 = vpop.f32.mrb[0].mxu0
    %v3395 = vadd.f32 0.0, %v3394
    %v3396 = vpop.f32.mrb[0].mxu0
    %v3397 = vpop.f32.mrb[0].mxu0
    %v3398 = vpop.f32.mrb[0].mxu0
    %3399 = vdwg.mxu0
    %3400 = vrot.lane.b32.xlu0 %v2575, 64
    %v3401 = vpop.permute.xlu0 %3400
    %v3403 = vsel %vm142, %v3063, 0
    %v3406 = vsel %vm633, %v3401, 0
    %3408 = vmatprep.subr.bf16.mxu0 0
    %3409 = vmatpush1.bf16.msra.mxu0 %v3406
    %3410 = vmatprep.subr.bf16.mxu0 0
    %3411 = vmatpush1.bf16.msra.mxu0 0
    %3412 = vmatprep.subr.bf16.mxu0 0
    %3413 = vmatpush1.bf16.msra.mxu0 0
    %3414 = vmatprep.subr.bf16.mxu0 0
    %3415 = vmatpush1.bf16.msra.mxu0 0
    %3416 = vmatprep.subr.bf16.mxu0 0
    %3417 = vmatpush1.bf16.msra.mxu0 0
    %3418 = vmatprep.subr.bf16.mxu0 0
    %3419 = vmatpush1.bf16.msra.mxu0 0
    %3420 = vmatprep.subr.bf16.mxu0 0
    %3421 = vmatpush1.bf16.msra.mxu0 0
    %3422 = vmatprep.subr.bf16.mxu0 0
    %3423 = vmatpush1.bf16.msra.mxu0 0
    %3424 = vmatprep.subr.bf16.mxu0 0
    %3425 = vmatpush1.bf16.msra.mxu0 0
    %3426 = vmatprep.subr.bf16.mxu0 0
    %3427 = vmatpush1.bf16.msra.mxu0 0
    %3428 = vmatprep.subr.bf16.mxu0 0
    %3429 = vmatpush1.bf16.msra.mxu0 0
    %3430 = vmatprep.subr.bf16.mxu0 0
    %3431 = vmatpush1.bf16.msra.mxu0 0
    %3432 = vmatprep.subr.bf16.mxu0 0
    %3433 = vmatpush1.bf16.msra.mxu0 0
    %3434 = vmatprep.subr.bf16.mxu0 0
    %3435 = vmatpush1.bf16.msra.mxu0 0
    %3436 = vmatprep.subr.bf16.mxu0 0
    %3437 = vmatpush1.bf16.msra.mxu0 0
    %3438 = vmatprep.subr.bf16.mxu0 0
    %3439 = vmatpush1.bf16.msra.mxu0 0
    %3440 = vmatprep.mubr.bf16.mxu0 0
    %3441 = vmatmul.mubr.bf16.gmra.mrb[0].mxu0 %v3403
    %v3442 = vpop.f32.mrb[0].mxu0
    %v3443 = vadd.f32 0.0, %v3442
    %v3444 = vpop.f32.mrb[0].mxu0
    %v3445 = vpop.f32.mrb[0].mxu0
    %v3446 = vpop.f32.mrb[0].mxu0
    %3447 = vdwg.mxu0
    %3450 = vrot.lane.b32.xlu0 %v3155, 8
    %v3451 = vpop.permute.xlu0 %3450
    %3452 = vrot.lane.b32.xlu0 %v3347, 8
    %v3453 = vpop.permute.xlu0 %3452
    %3458 = vrot.lane.b32.xlu0 %v3203, 16
    %v3459 = vpop.permute.xlu0 %3458
    %3460 = vrot.lane.b32.xlu0 %v3395, 16
    %v3461 = vpop.permute.xlu0 %3460
    %3466 = vrot.lane.b32.xlu0 %v3251, 24
    %v3467 = vpop.permute.xlu0 %3466
    %3468 = vrot.lane.b32.xlu0 %v3443, 24
    %v3469 = vpop.permute.xlu0 %3468
    %v3472 = vsel %vm142, %v3107, %v3451
    %v3473 = vsel %vm142, %v3299, %v3453
    %v3474 = vsel %vm1039, %v3472, %v3459
    %v3475 = vsel %vm1039, %v3473, %v3461
    %v3476 = vsel %vm1042, %v3474, %v3467
    %v3477 = vsel %vm1042, %v3475, %v3469
    %v3478 = vpack.c.bf16 %v3477, %v3476
    %v3479 = vlaneseq
    %v3480 = vshrl.u32 %v3479, 7
    %v3481 = vsub.s32 1, %v3480
    %v3482 = vrot.slane %v2485, %v3481
    %v3483 = vunpack.c.h.b16 %v2467
    %v3484 = vunpack.c.h.b16 %v2469
    %v3485 = vunpack.c.h.b16 %v2471
    %v3486 = vunpack.c.h.b16 %v2473
    %v3487 = vpack.c.b16 %v3484, %v3483
    %v3488 = vpack.c.b16 %v3486, %v3485
    %3489 = vrot.lane.b32.xlu0 %v3487, 64
    %v3490 = vpop.permute.xlu0 %3489
    %3491 = vrot.lane.b32.xlu0 %v3488, 64
    %v3492 = vpop.permute.xlu0 %3491
    %v3496 = vsel %vm66, %v3478, 0
    %3498 = vmatprep.subr.bf16.mxu0 0
    %3499 = vmatpush1.bf16.msra.mxu0 %v3490
    %3500 = vmatprep.subr.bf16.mxu0 0
    %3501 = vmatpush1.bf16.msra.mxu0 %v3492
    %3502 = vmatprep.subr.bf16.mxu0 0
    %3503 = vmatpush1.bf16.msra.mxu0 0
    %3504 = vmatprep.subr.bf16.mxu0 0
    %3505 = vmatpush1.bf16.msra.mxu0 0
    %3506 = vmatprep.subr.bf16.mxu0 0
    %3507 = vmatpush1.bf16.msra.mxu0 0
    %3508 = vmatprep.subr.bf16.mxu0 0
    %3509 = vmatpush1.bf16.msra.mxu0 0
    %3510 = vmatprep.subr.bf16.mxu0 0
    %3511 = vmatpush1.bf16.msra.mxu0 0
    %3512 = vmatprep.subr.bf16.mxu0 0
    %3513 = vmatpush1.bf16.msra.mxu0 0
    %3514 = vmatprep.subr.bf16.mxu0 0
    %3515 = vmatpush1.bf16.msra.mxu0 0
    %3516 = vmatprep.subr.bf16.mxu0 0
    %3517 = vmatpush1.bf16.msra.mxu0 0
    %3518 = vmatprep.subr.bf16.mxu0 0
    %3519 = vmatpush1.bf16.msra.mxu0 0
    %3520 = vmatprep.subr.bf16.mxu0 0
    %3521 = vmatpush1.bf16.msra.mxu0 0
    %3522 = vmatprep.subr.bf16.mxu0 0
    %3523 = vmatpush1.bf16.msra.mxu0 0
    %3524 = vmatprep.subr.bf16.mxu0 0
    %3525 = vmatpush1.bf16.msra.mxu0 0
    %3526 = vmatprep.subr.bf16.mxu0 0
    %3527 = vmatpush1.bf16.msra.mxu0 0
    %3528 = vmatprep.subr.bf16.mxu0 0
    %3529 = vmatpush1.bf16.msra.mxu0 0
    %3530 = vmatprep.mubr.bf16.mxu0 0
    %3531 = vmatmul.mubr.bf16.gmra.mrb[0].mxu0 %v3496
    %v3532 = vpop.f32.mrb[0].mxu0
    %v3533 = vadd.f32 %v3482, %v3532
    %v3534 = vpop.f32.mrb[0].mxu0
    %v3535 = vpop.f32.mrb[0].mxu0
    %v3536 = vadd.f32 %v3482, %v3535
    %v3537 = vpop.f32.mrb[0].mxu0
    %3538 = vdwg.mxu0
    %v3539 = vadd.f32 %v2464, %v3533
    %v3540 = vadd.f32 %v2465, %v3536
    %v3541 = vsel %vm66, %v3539, 0.0
    %3542 = vadd.xlane.f32.xlu0 %v3541
    %v3543 = vpop.xlane.xlu0 %3542
    %v3544 = vsel %vm66, %v3540, 0.0
    %3545 = vadd.xlane.f32.xlu0 %v3544
    %v3546 = vpop.xlane.xlu0 %3545
    %v3547 = vmul.f32 %v3543, %v1114
    %v3548 = vmul.f32 %v3546, %v1114
    %v3549 = vsub.f32 %v3539, %v3547
    %v3550 = vsub.f32 %v3540, %v3548
    %v3551 = vmul.f32 %v3549, %v3549
    %v3552 = vmul.f32 %v3550, %v3550
    %v3553 = vsel %vm66, %v3551, 0.0
    %3554 = vadd.xlane.f32.xlu0 %v3553
    %v3555 = vpop.xlane.xlu0 %3554
    %v3556 = vsel %vm66, %v3552, 0.0
    %3557 = vadd.xlane.f32.xlu0 %v3556
    %v3558 = vpop.xlane.xlu0 %3557
    %v3559 = vmul.f32 %v3555, %v1114
    %v3560 = vmul.f32 %v3558, %v1114
    %v3561 = vadd.f32 %v3559, 1e-05
    %v3562 = vadd.f32 %v3560, 1e-05
    %v3563 = vrsqrt.pop %v3561
    %v3564 = vrsqrt.pop %v3562
    %v3565 = vmul.f32 %v3549, %v3563
    %v3566 = vmul.f32 %v3550, %v3564
    %v3567 = vlaneseq
    %v3568 = vshrl.u32 %v3567, 7
    %v3569 = vsub.s32 7, %v3568
    %v3570 = vrot.slane %v2485, %v3569
    %v3571 = vmul.f32 %v3565, %v3570
    %v3572 = vmul.f32 %v3566, %v3570
    %v3573 = vlaneseq
    %v3574 = vshrl.u32 %v3573, 7
    %v3575 = vsub.s32 0, %v3574
    %v3576 = vrot.slane %v2486, %v3575
    %v3577 = vadd.f32 %v3571, %v3576
    %v3578 = vadd.f32 %v3572, %v3576
    %v3579 = vpack.c.bf16 %v3578, %v3577
    %v3580 = vlaneseq
    %v3581 = vshrl.u32 %v3580, 7
    %v3582 = vsub.s32 2, %v3581
    %v3583 = vrot.slane %v2485, %v3582
    %3584 = vrot.lane.b32.xlu0 %v2500, 32
    %v3585 = vpop.permute.xlu0 %3584
    %3586 = vrot.lane.b32.xlu0 %v2501, 32
    %v3587 = vpop.permute.xlu0 %3586
    %v3591 = vsel %vm66, %v3579, 0
    %3593 = vmatprep.subr.bf16.mxu0 0
    %3594 = vmatpush1.bf16.msra.mxu0 %v3585
    %3595 = vmatprep.subr.bf16.mxu0 0
    %3596 = vmatpush1.bf16.msra.mxu0 %v3587
    %3597 = vmatprep.subr.bf16.mxu0 0
    %3598 = vmatpush1.bf16.msra.mxu0 0
    %3599 = vmatprep.subr.bf16.mxu0 0
    %3600 = vmatpush1.bf16.msra.mxu0 0
    %3601 = vmatprep.subr.bf16.mxu0 0
    %3602 = vmatpush1.bf16.msra.mxu0 0
    %3603 = vmatprep.subr.bf16.mxu0 0
    %3604 = vmatpush1.bf16.msra.mxu0 0
    %3605 = vmatprep.subr.bf16.mxu0 0
    %3606 = vmatpush1.bf16.msra.mxu0 0
    %3607 = vmatprep.subr.bf16.mxu0 0
    %3608 = vmatpush1.bf16.msra.mxu0 0
    %3609 = vmatprep.subr.bf16.mxu0 0
    %3610 = vmatpush1.bf16.msra.mxu0 0
    %3611 = vmatprep.subr.bf16.mxu0 0
    %3612 = vmatpush1.bf16.msra.mxu0 0
    %3613 = vmatprep.subr.bf16.mxu0 0
    %3614 = vmatpush1.bf16.msra.mxu0 0
    %3615 = vmatprep.subr.bf16.mxu0 0
    %3616 = vmatpush1.bf16.msra.mxu0 0
    %3617 = vmatprep.subr.bf16.mxu0 0
    %3618 = vmatpush1.bf16.msra.mxu0 0
    %3619 = vmatprep.subr.bf16.mxu0 0
    %3620 = vmatpush1.bf16.msra.mxu0 0
    %3621 = vmatprep.subr.bf16.mxu0 0
    %3622 = vmatpush1.bf16.msra.mxu0 0
    %3623 = vmatprep.subr.bf16.mxu0 0
    %3624 = vmatpush1.bf16.msra.mxu0 0
    %3625 = vmatprep.mubr.bf16.mxu0 0
    %3626 = vmatmul.mubr.bf16.gmra.mrb[0].mxu0 %v3591
    %v3627 = vpop.f32.mrb[0].mxu0
    %v3628 = vadd.f32 %v3583, %v3627
    %v3629 = vpop.f32.mrb[0].mxu0
    %v3630 = vpop.f32.mrb[0].mxu0
    %v3631 = vadd.f32 %v3583, %v3630
    %v3632 = vpop.f32.mrb[0].mxu0
    %3633 = vdwg.mxu0
    %v3634 = vlaneseq
    %v3635 = vshrl.u32 %v3634, 7
    %v3636 = vsub.s32 3, %v3635
    %v3637 = vrot.slane %v2485, %v3636
    %3640 = vmatprep.subr.bf16.mxu0 0
    %3641 = vmatpush1.bf16.msra.mxu0 %v3487
    %3642 = vmatprep.subr.bf16.mxu0 0
    %3643 = vmatpush1.bf16.msra.mxu0 %v3488
    %3644 = vmatprep.subr.bf16.mxu0 0
    %3645 = vmatpush1.bf16.msra.mxu0 0
    %3646 = vmatprep.subr.bf16.mxu0 0
    %3647 = vmatpush1.bf16.msra.mxu0 0
    %3648 = vmatprep.subr.bf16.mxu0 0
    %3649 = vmatpush1.bf16.msra.mxu0 0
    %3650 = vmatprep.subr.bf16.mxu0 0
    %3651 = vmatpush1.bf16.msra.mxu0 0
    %3652 = vmatprep.subr.bf16.mxu0 0
    %3653 = vmatpush1.bf16.msra.mxu0 0
    %3654 = vmatprep.subr.bf16.mxu0 0
    %3655 = vmatpush1.bf16.msra.mxu0 0
    %3656 = vmatprep.subr.bf16.mxu0 0
    %3657 = vmatpush1.bf16.msra.mxu0 0
    %3658 = vmatprep.subr.bf16.mxu0 0
    %3659 = vmatpush1.bf16.msra.mxu0 0
    %3660 = vmatprep.subr.bf16.mxu0 0
    %3661 = vmatpush1.bf16.msra.mxu0 0
    %3662 = vmatprep.subr.bf16.mxu0 0
    %3663 = vmatpush1.bf16.msra.mxu0 0
    %3664 = vmatprep.subr.bf16.mxu0 0
    %3665 = vmatpush1.bf16.msra.mxu0 0
    %3666 = vmatprep.subr.bf16.mxu0 0
    %3667 = vmatpush1.bf16.msra.mxu0 0
    %3668 = vmatprep.subr.bf16.mxu0 0
    %3669 = vmatpush1.bf16.msra.mxu0 0
    %3670 = vmatprep.subr.bf16.mxu0 0
    %3671 = vmatpush1.bf16.msra.mxu0 0
    %3672 = vmatprep.mubr.bf16.mxu0 0
    %3673 = vmatmul.mubr.bf16.gmra.mrb[0].mxu0 %v1209
    %v3674 = vpop.f32.mrb[0].mxu0
    %v3675 = vadd.f32 %v3637, %v3674
    %v3676 = vpop.f32.mrb[0].mxu0
    %v3677 = vpop.f32.mrb[0].mxu0
    %v3678 = vadd.f32 %v3637, %v3677
    %v3679 = vpop.f32.mrb[0].mxu0
    %3680 = vdwg.mxu0
    %3683 = vrot.lane.b32.xlu0 %v3628, 120
    %v3684 = vpop.permute.xlu0 %3683
    %3685 = vrot.lane.b32.xlu0 %v3631, 120
    %v3686 = vpop.permute.xlu0 %3685
    %3689 = vrot.lane.b32.xlu0 %v3628, 112
    %v3690 = vpop.permute.xlu0 %3689
    %3691 = vrot.lane.b32.xlu0 %v3631, 112
    %v3692 = vpop.permute.xlu0 %3691
    %3695 = vrot.lane.b32.xlu0 %v3628, 104
    %v3696 = vpop.permute.xlu0 %3695
    %3697 = vrot.lane.b32.xlu0 %v3631, 104
    %v3698 = vpop.permute.xlu0 %3697
    %v3701 = vpack.c.bf16 %v3628, %v3628
    %v3702 = vpack.c.bf16 %v3684, %v3684
    %v3703 = vpack.c.bf16 %v3690, %v3690
    %v3704 = vpack.c.bf16 %v3696, %v3696
    %v3705 = vpack.c.bf16 %v3631, %v3631
    %v3706 = vpack.c.bf16 %v3686, %v3686
    %v3707 = vpack.c.bf16 %v3692, %v3692
    %v3708 = vpack.c.bf16 %v3698, %v3698
    %3711 = vrot.lane.b32.xlu0 %v3675, 120
    %v3712 = vpop.permute.xlu0 %3711
    %3713 = vrot.lane.b32.xlu0 %v3678, 120
    %v3714 = vpop.permute.xlu0 %3713
    %3717 = vrot.lane.b32.xlu0 %v3675, 112
    %v3718 = vpop.permute.xlu0 %3717
    %3719 = vrot.lane.b32.xlu0 %v3678, 112
    %v3720 = vpop.permute.xlu0 %3719
    %3723 = vrot.lane.b32.xlu0 %v3675, 104
    %v3724 = vpop.permute.xlu0 %3723
    %3725 = vrot.lane.b32.xlu0 %v3678, 104
    %v3726 = vpop.permute.xlu0 %3725
    %v3729 = vpack.c.bf16 %v3675, %v3675
    %v3730 = vpack.c.bf16 %v3712, %v3712
    %v3731 = vpack.c.bf16 %v3718, %v3718
    %v3732 = vpack.c.bf16 %v3724, %v3724
    %v3733 = vpack.c.bf16 %v3678, %v3678
    %v3734 = vpack.c.bf16 %v3714, %v3714
    %v3735 = vpack.c.bf16 %v3720, %v3720
    %v3736 = vpack.c.bf16 %v3726, %v3726
    %v3738 = vsel %vm142, %v3701, 0
    %v3741 = vsel %vm142, %v3729, 0
    %3743 = vmatprep.subr.bf16.mxu0 0
    %3744 = vmatpush1.bf16.xpose.msra.mxu0 %v3741
    %3745 = vmatprep.subr.bf16.mxu0 0
    %3746 = vmatpush1.bf16.xpose.msra.mxu0 0
    %3747 = vmatprep.subr.bf16.mxu0 0
    %3748 = vmatpush1.bf16.xpose.msra.mxu0 0
    %3749 = vmatprep.subr.bf16.mxu0 0
    %3750 = vmatpush1.bf16.xpose.msra.mxu0 0
    %3751 = vmatprep.subr.bf16.mxu0 0
    %3752 = vmatpush1.bf16.xpose.msra.mxu0 0
    %3753 = vmatprep.subr.bf16.mxu0 0
    %3754 = vmatpush1.bf16.xpose.msra.mxu0 0
    %3755 = vmatprep.subr.bf16.mxu0 0
    %3756 = vmatpush1.bf16.xpose.msra.mxu0 0
    %3757 = vmatprep.subr.bf16.mxu0 0
    %3758 = vmatpush1.bf16.xpose.msra.mxu0 0
    %3759 = vmatprep.subr.bf16.mxu0 0
    %3760 = vmatpush1.bf16.xpose.msra.mxu0 0
    %3761 = vmatprep.subr.bf16.mxu0 0
    %3762 = vmatpush1.bf16.xpose.msra.mxu0 0
    %3763 = vmatprep.subr.bf16.mxu0 0
    %3764 = vmatpush1.bf16.xpose.msra.mxu0 0
    %3765 = vmatprep.subr.bf16.mxu0 0
    %3766 = vmatpush1.bf16.xpose.msra.mxu0 0
    %3767 = vmatprep.subr.bf16.mxu0 0
    %3768 = vmatpush1.bf16.xpose.msra.mxu0 0
    %3769 = vmatprep.subr.bf16.mxu0 0
    %3770 = vmatpush1.bf16.xpose.msra.mxu0 0
    %3771 = vmatprep.subr.bf16.mxu0 0
    %3772 = vmatpush1.bf16.xpose.msra.mxu0 0
    %3773 = vmatprep.subr.bf16.mxu0 0
    %3774 = vmatpush1.bf16.xpose.msra.mxu0 0
    %3775 = vmatprep.mubr.bf16.mxu0 0
    %3776 = vmatmul.mubr.bf16.gmra.mrb[0].mxu0 %v3738
    %v3777 = vpop.f32.mrb[0].mxu0
    %v3778 = vadd.f32 0.0, %v3777
    %v3779 = vpop.f32.mrb[0].mxu0
    %v3780 = vpop.f32.mrb[0].mxu0
    %v3781 = vpop.f32.mrb[0].mxu0
    %3782 = vdwg.mxu0
    %v3784 = vsel %vm142, %v3702, 0
    %v3787 = vsel %vm142, %v3730, 0
    %3789 = vmatprep.subr.bf16.mxu0 0
    %3790 = vmatpush1.bf16.xpose.msra.mxu0 %v3787
    %3791 = vmatprep.subr.bf16.mxu0 0
    %3792 = vmatpush1.bf16.xpose.msra.mxu0 0
    %3793 = vmatprep.subr.bf16.mxu0 0
    %3794 = vmatpush1.bf16.xpose.msra.mxu0 0
    %3795 = vmatprep.subr.bf16.mxu0 0
    %3796 = vmatpush1.bf16.xpose.msra.mxu0 0
    %3797 = vmatprep.subr.bf16.mxu0 0
    %3798 = vmatpush1.bf16.xpose.msra.mxu0 0
    %3799 = vmatprep.subr.bf16.mxu0 0
    %3800 = vmatpush1.bf16.xpose.msra.mxu0 0
    %3801 = vmatprep.subr.bf16.mxu0 0
    %3802 = vmatpush1.bf16.xpose.msra.mxu0 0
    %3803 = vmatprep.subr.bf16.mxu0 0
    %3804 = vmatpush1.bf16.xpose.msra.mxu0 0
    %3805 = vmatprep.subr.bf16.mxu0 0
    %3806 = vmatpush1.bf16.xpose.msra.mxu0 0
    %3807 = vmatprep.subr.bf16.mxu0 0
    %3808 = vmatpush1.bf16.xpose.msra.mxu0 0
    %3809 = vmatprep.subr.bf16.mxu0 0
    %3810 = vmatpush1.bf16.xpose.msra.mxu0 0
    %3811 = vmatprep.subr.bf16.mxu0 0
    %3812 = vmatpush1.bf16.xpose.msra.mxu0 0
    %3813 = vmatprep.subr.bf16.mxu0 0
    %3814 = vmatpush1.bf16.xpose.msra.mxu0 0
    %3815 = vmatprep.subr.bf16.mxu0 0
    %3816 = vmatpush1.bf16.xpose.msra.mxu0 0
    %3817 = vmatprep.subr.bf16.mxu0 0
    %3818 = vmatpush1.bf16.xpose.msra.mxu0 0
    %3819 = vmatprep.subr.bf16.mxu0 0
    %3820 = vmatpush1.bf16.xpose.msra.mxu0 0
    %3821 = vmatprep.mubr.bf16.mxu0 0
    %3822 = vmatmul.mubr.bf16.gmra.mrb[0].mxu0 %v3784
    %v3823 = vpop.f32.mrb[0].mxu0
    %v3824 = vadd.f32 0.0, %v3823
    %v3825 = vpop.f32.mrb[0].mxu0
    %v3826 = vpop.f32.mrb[0].mxu0
    %v3827 = vpop.f32.mrb[0].mxu0
    %3828 = vdwg.mxu0
    %v3830 = vsel %vm142, %v3703, 0
    %v3833 = vsel %vm142, %v3731, 0
    %3835 = vmatprep.subr.bf16.mxu0 0
    %3836 = vmatpush1.bf16.xpose.msra.mxu0 %v3833
    %3837 = vmatprep.subr.bf16.mxu0 0
    %3838 = vmatpush1.bf16.xpose.msra.mxu0 0
    %3839 = vmatprep.subr.bf16.mxu0 0
    %3840 = vmatpush1.bf16.xpose.msra.mxu0 0
    %3841 = vmatprep.subr.bf16.mxu0 0
    %3842 = vmatpush1.bf16.xpose.msra.mxu0 0
    %3843 = vmatprep.subr.bf16.mxu0 0
    %3844 = vmatpush1.bf16.xpose.msra.mxu0 0
    %3845 = vmatprep.subr.bf16.mxu0 0
    %3846 = vmatpush1.bf16.xpose.msra.mxu0 0
    %3847 = vmatprep.subr.bf16.mxu0 0
    %3848 = vmatpush1.bf16.xpose.msra.mxu0 0
    %3849 = vmatprep.subr.bf16.mxu0 0
    %3850 = vmatpush1.bf16.xpose.msra.mxu0 0
    %3851 = vmatprep.subr.bf16.mxu0 0
    %3852 = vmatpush1.bf16.xpose.msra.mxu0 0
    %3853 = vmatprep.subr.bf16.mxu0 0
    %3854 = vmatpush1.bf16.xpose.msra.mxu0 0
    %3855 = vmatprep.subr.bf16.mxu0 0
    %3856 = vmatpush1.bf16.xpose.msra.mxu0 0
    %3857 = vmatprep.subr.bf16.mxu0 0
    %3858 = vmatpush1.bf16.xpose.msra.mxu0 0
    %3859 = vmatprep.subr.bf16.mxu0 0
    %3860 = vmatpush1.bf16.xpose.msra.mxu0 0
    %3861 = vmatprep.subr.bf16.mxu0 0
    %3862 = vmatpush1.bf16.xpose.msra.mxu0 0
    %3863 = vmatprep.subr.bf16.mxu0 0
    %3864 = vmatpush1.bf16.xpose.msra.mxu0 0
    %3865 = vmatprep.subr.bf16.mxu0 0
    %3866 = vmatpush1.bf16.xpose.msra.mxu0 0
    %3867 = vmatprep.mubr.bf16.mxu0 0
    %3868 = vmatmul.mubr.bf16.gmra.mrb[0].mxu0 %v3830
    %v3869 = vpop.f32.mrb[0].mxu0
    %v3870 = vadd.f32 0.0, %v3869
    %v3871 = vpop.f32.mrb[0].mxu0
    %v3872 = vpop.f32.mrb[0].mxu0
    %v3873 = vpop.f32.mrb[0].mxu0
    %3874 = vdwg.mxu0
    %v3876 = vsel %vm142, %v3704, 0
    %v3879 = vsel %vm142, %v3732, 0
    %3881 = vmatprep.subr.bf16.mxu0 0
    %3882 = vmatpush1.bf16.xpose.msra.mxu0 %v3879
    %3883 = vmatprep.subr.bf16.mxu0 0
    %3884 = vmatpush1.bf16.xpose.msra.mxu0 0
    %3885 = vmatprep.subr.bf16.mxu0 0
    %3886 = vmatpush1.bf16.xpose.msra.mxu0 0
    %3887 = vmatprep.subr.bf16.mxu0 0
    %3888 = vmatpush1.bf16.xpose.msra.mxu0 0
    %3889 = vmatprep.subr.bf16.mxu0 0
    %3890 = vmatpush1.bf16.xpose.msra.mxu0 0
    %3891 = vmatprep.subr.bf16.mxu0 0
    %3892 = vmatpush1.bf16.xpose.msra.mxu0 0
    %3893 = vmatprep.subr.bf16.mxu0 0
    %3894 = vmatpush1.bf16.xpose.msra.mxu0 0
    %3895 = vmatprep.subr.bf16.mxu0 0
    %3896 = vmatpush1.bf16.xpose.msra.mxu0 0
    %3897 = vmatprep.subr.bf16.mxu0 0
    %3898 = vmatpush1.bf16.xpose.msra.mxu0 0
    %3899 = vmatprep.subr.bf16.mxu0 0
    %3900 = vmatpush1.bf16.xpose.msra.mxu0 0
    %3901 = vmatprep.subr.bf16.mxu0 0
    %3902 = vmatpush1.bf16.xpose.msra.mxu0 0
    %3903 = vmatprep.subr.bf16.mxu0 0
    %3904 = vmatpush1.bf16.xpose.msra.mxu0 0
    %3905 = vmatprep.subr.bf16.mxu0 0
    %3906 = vmatpush1.bf16.xpose.msra.mxu0 0
    %3907 = vmatprep.subr.bf16.mxu0 0
    %3908 = vmatpush1.bf16.xpose.msra.mxu0 0
    %3909 = vmatprep.subr.bf16.mxu0 0
    %3910 = vmatpush1.bf16.xpose.msra.mxu0 0
    %3911 = vmatprep.subr.bf16.mxu0 0
    %3912 = vmatpush1.bf16.xpose.msra.mxu0 0
    %3913 = vmatprep.mubr.bf16.mxu0 0
    %3914 = vmatmul.mubr.bf16.gmra.mrb[0].mxu0 %v3876
    %v3915 = vpop.f32.mrb[0].mxu0
    %v3916 = vadd.f32 0.0, %v3915
    %v3917 = vpop.f32.mrb[0].mxu0
    %v3918 = vpop.f32.mrb[0].mxu0
    %v3919 = vpop.f32.mrb[0].mxu0
    %3920 = vdwg.mxu0
    %v3922 = vsel %vm142, %v3705, 0
    %v3925 = vsel %vm142, %v3733, 0
    %3927 = vmatprep.subr.bf16.mxu0 0
    %3928 = vmatpush1.bf16.xpose.msra.mxu0 %v3925
    %3929 = vmatprep.subr.bf16.mxu0 0
    %3930 = vmatpush1.bf16.xpose.msra.mxu0 0
    %3931 = vmatprep.subr.bf16.mxu0 0
    %3932 = vmatpush1.bf16.xpose.msra.mxu0 0
    %3933 = vmatprep.subr.bf16.mxu0 0
    %3934 = vmatpush1.bf16.xpose.msra.mxu0 0
    %3935 = vmatprep.subr.bf16.mxu0 0
    %3936 = vmatpush1.bf16.xpose.msra.mxu0 0
    %3937 = vmatprep.subr.bf16.mxu0 0
    %3938 = vmatpush1.bf16.xpose.msra.mxu0 0
    %3939 = vmatprep.subr.bf16.mxu0 0
    %3940 = vmatpush1.bf16.xpose.msra.mxu0 0
    %3941 = vmatprep.subr.bf16.mxu0 0
    %3942 = vmatpush1.bf16.xpose.msra.mxu0 0
    %3943 = vmatprep.subr.bf16.mxu0 0
    %3944 = vmatpush1.bf16.xpose.msra.mxu0 0
    %3945 = vmatprep.subr.bf16.mxu0 0
    %3946 = vmatpush1.bf16.xpose.msra.mxu0 0
    %3947 = vmatprep.subr.bf16.mxu0 0
    %3948 = vmatpush1.bf16.xpose.msra.mxu0 0
    %3949 = vmatprep.subr.bf16.mxu0 0
    %3950 = vmatpush1.bf16.xpose.msra.mxu0 0
    %3951 = vmatprep.subr.bf16.mxu0 0
    %3952 = vmatpush1.bf16.xpose.msra.mxu0 0
    %3953 = vmatprep.subr.bf16.mxu0 0
    %3954 = vmatpush1.bf16.xpose.msra.mxu0 0
    %3955 = vmatprep.subr.bf16.mxu0 0
    %3956 = vmatpush1.bf16.xpose.msra.mxu0 0
    %3957 = vmatprep.subr.bf16.mxu0 0
    %3958 = vmatpush1.bf16.xpose.msra.mxu0 0
    %3959 = vmatprep.mubr.bf16.mxu0 0
    %3960 = vmatmul.mubr.bf16.gmra.mrb[0].mxu0 %v3922
    %v3961 = vpop.f32.mrb[0].mxu0
    %v3962 = vadd.f32 0.0, %v3961
    %v3963 = vpop.f32.mrb[0].mxu0
    %v3964 = vpop.f32.mrb[0].mxu0
    %v3965 = vpop.f32.mrb[0].mxu0
    %3966 = vdwg.mxu0
    %v3968 = vsel %vm142, %v3706, 0
    %v3971 = vsel %vm142, %v3734, 0
    %3973 = vmatprep.subr.bf16.mxu0 0
    %3974 = vmatpush1.bf16.xpose.msra.mxu0 %v3971
    %3975 = vmatprep.subr.bf16.mxu0 0
    %3976 = vmatpush1.bf16.xpose.msra.mxu0 0
    %3977 = vmatprep.subr.bf16.mxu0 0
    %3978 = vmatpush1.bf16.xpose.msra.mxu0 0
    %3979 = vmatprep.subr.bf16.mxu0 0
    %3980 = vmatpush1.bf16.xpose.msra.mxu0 0
    %3981 = vmatprep.subr.bf16.mxu0 0
    %3982 = vmatpush1.bf16.xpose.msra.mxu0 0
    %3983 = vmatprep.subr.bf16.mxu0 0
    %3984 = vmatpush1.bf16.xpose.msra.mxu0 0
    %3985 = vmatprep.subr.bf16.mxu0 0
    %3986 = vmatpush1.bf16.xpose.msra.mxu0 0
    %3987 = vmatprep.subr.bf16.mxu0 0
    %3988 = vmatpush1.bf16.xpose.msra.mxu0 0
    %3989 = vmatprep.subr.bf16.mxu0 0
    %3990 = vmatpush1.bf16.xpose.msra.mxu0 0
    %3991 = vmatprep.subr.bf16.mxu0 0
    %3992 = vmatpush1.bf16.xpose.msra.mxu0 0
    %3993 = vmatprep.subr.bf16.mxu0 0
    %3994 = vmatpush1.bf16.xpose.msra.mxu0 0
    %3995 = vmatprep.subr.bf16.mxu0 0
    %3996 = vmatpush1.bf16.xpose.msra.mxu0 0
    %3997 = vmatprep.subr.bf16.mxu0 0
    %3998 = vmatpush1.bf16.xpose.msra.mxu0 0
    %3999 = vmatprep.subr.bf16.mxu0 0
    %4000 = vmatpush1.bf16.xpose.msra.mxu0 0
    %4001 = vmatprep.subr.bf16.mxu0 0
    %4002 = vmatpush1.bf16.xpose.msra.mxu0 0
    %4003 = vmatprep.subr.bf16.mxu0 0
    %4004 = vmatpush1.bf16.xpose.msra.mxu0 0
    %4005 = vmatprep.mubr.bf16.mxu0 0
    %4006 = vmatmul.mubr.bf16.gmra.mrb[0].mxu0 %v3968
    %v4007 = vpop.f32.mrb[0].mxu0
    %v4008 = vadd.f32 0.0, %v4007
    %v4009 = vpop.f32.mrb[0].mxu0
    %v4010 = vpop.f32.mrb[0].mxu0
    %v4011 = vpop.f32.mrb[0].mxu0
    %4012 = vdwg.mxu0
    %v4014 = vsel %vm142, %v3707, 0
    %v4017 = vsel %vm142, %v3735, 0
    %4019 = vmatprep.subr.bf16.mxu0 0
    %4020 = vmatpush1.bf16.xpose.msra.mxu0 %v4017
    %4021 = vmatprep.subr.bf16.mxu0 0
    %4022 = vmatpush1.bf16.xpose.msra.mxu0 0
    %4023 = vmatprep.subr.bf16.mxu0 0
    %4024 = vmatpush1.bf16.xpose.msra.mxu0 0
    %4025 = vmatprep.subr.bf16.mxu0 0
    %4026 = vmatpush1.bf16.xpose.msra.mxu0 0
    %4027 = vmatprep.subr.bf16.mxu0 0
    %4028 = vmatpush1.bf16.xpose.msra.mxu0 0
    %4029 = vmatprep.subr.bf16.mxu0 0
    %4030 = vmatpush1.bf16.xpose.msra.mxu0 0
    %4031 = vmatprep.subr.bf16.mxu0 0
    %4032 = vmatpush1.bf16.xpose.msra.mxu0 0
    %4033 = vmatprep.subr.bf16.mxu0 0
    %4034 = vmatpush1.bf16.xpose.msra.mxu0 0
    %4035 = vmatprep.subr.bf16.mxu0 0
    %4036 = vmatpush1.bf16.xpose.msra.mxu0 0
    %4037 = vmatprep.subr.bf16.mxu0 0
    %4038 = vmatpush1.bf16.xpose.msra.mxu0 0
    %4039 = vmatprep.subr.bf16.mxu0 0
    %4040 = vmatpush1.bf16.xpose.msra.mxu0 0
    %4041 = vmatprep.subr.bf16.mxu0 0
    %4042 = vmatpush1.bf16.xpose.msra.mxu0 0
    %4043 = vmatprep.subr.bf16.mxu0 0
    %4044 = vmatpush1.bf16.xpose.msra.mxu0 0
    %4045 = vmatprep.subr.bf16.mxu0 0
    %4046 = vmatpush1.bf16.xpose.msra.mxu0 0
    %4047 = vmatprep.subr.bf16.mxu0 0
    %4048 = vmatpush1.bf16.xpose.msra.mxu0 0
    %4049 = vmatprep.subr.bf16.mxu0 0
    %4050 = vmatpush1.bf16.xpose.msra.mxu0 0
    %4051 = vmatprep.mubr.bf16.mxu0 0
    %4052 = vmatmul.mubr.bf16.gmra.mrb[0].mxu0 %v4014
    %v4053 = vpop.f32.mrb[0].mxu0
    %v4054 = vadd.f32 0.0, %v4053
    %v4055 = vpop.f32.mrb[0].mxu0
    %v4056 = vpop.f32.mrb[0].mxu0
    %v4057 = vpop.f32.mrb[0].mxu0
    %4058 = vdwg.mxu0
    %v4060 = vsel %vm142, %v3708, 0
    %v4063 = vsel %vm142, %v3736, 0
    %4065 = vmatprep.subr.bf16.mxu0 0
    %4066 = vmatpush1.bf16.xpose.msra.mxu0 %v4063
    %4067 = vmatprep.subr.bf16.mxu0 0
    %4068 = vmatpush1.bf16.xpose.msra.mxu0 0
    %4069 = vmatprep.subr.bf16.mxu0 0
    %4070 = vmatpush1.bf16.xpose.msra.mxu0 0
    %4071 = vmatprep.subr.bf16.mxu0 0
    %4072 = vmatpush1.bf16.xpose.msra.mxu0 0
    %4073 = vmatprep.subr.bf16.mxu0 0
    %4074 = vmatpush1.bf16.xpose.msra.mxu0 0
    %4075 = vmatprep.subr.bf16.mxu0 0
    %4076 = vmatpush1.bf16.xpose.msra.mxu0 0
    %4077 = vmatprep.subr.bf16.mxu0 0
    %4078 = vmatpush1.bf16.xpose.msra.mxu0 0
    %4079 = vmatprep.subr.bf16.mxu0 0
    %4080 = vmatpush1.bf16.xpose.msra.mxu0 0
    %4081 = vmatprep.subr.bf16.mxu0 0
    %4082 = vmatpush1.bf16.xpose.msra.mxu0 0
    %4083 = vmatprep.subr.bf16.mxu0 0
    %4084 = vmatpush1.bf16.xpose.msra.mxu0 0
    %4085 = vmatprep.subr.bf16.mxu0 0
    %4086 = vmatpush1.bf16.xpose.msra.mxu0 0
    %4087 = vmatprep.subr.bf16.mxu0 0
    %4088 = vmatpush1.bf16.xpose.msra.mxu0 0
    %4089 = vmatprep.subr.bf16.mxu0 0
    %4090 = vmatpush1.bf16.xpose.msra.mxu0 0
    %4091 = vmatprep.subr.bf16.mxu0 0
    %4092 = vmatpush1.bf16.xpose.msra.mxu0 0
    %4093 = vmatprep.subr.bf16.mxu0 0
    %4094 = vmatpush1.bf16.xpose.msra.mxu0 0
    %4095 = vmatprep.subr.bf16.mxu0 0
    %4096 = vmatpush1.bf16.xpose.msra.mxu0 0
    %4097 = vmatprep.mubr.bf16.mxu0 0
    %4098 = vmatmul.mubr.bf16.gmra.mrb[0].mxu0 %v4060
    %v4099 = vpop.f32.mrb[0].mxu0
    %v4100 = vadd.f32 0.0, %v4099
    %v4101 = vpop.f32.mrb[0].mxu0
    %v4102 = vpop.f32.mrb[0].mxu0
    %v4103 = vpop.f32.mrb[0].mxu0
    %4104 = vdwg.mxu0
    %v4105 = vsel %vm142, %v3778, -inf
    %4106 = vmax.xlane.f32.xlu0 %v4105
    %v4107 = vpop.xlane.xlu0 %4106
    %v4108 = vsel %vm142, %v3824, -inf
    %4109 = vmax.xlane.f32.xlu0 %v4108
    %v4110 = vpop.xlane.xlu0 %4109
    %v4111 = vsel %vm142, %v3870, -inf
    %4112 = vmax.xlane.f32.xlu0 %v4111
    %v4113 = vpop.xlane.xlu0 %4112
    %v4114 = vsel %vm142, %v3916, -inf
    %4115 = vmax.xlane.f32.xlu0 %v4114
    %v4116 = vpop.xlane.xlu0 %4115
    %v4117 = vsel %vm142, %v3962, -inf
    %4118 = vmax.xlane.f32.xlu0 %v4117
    %v4119 = vpop.xlane.xlu0 %4118
    %v4120 = vsel %vm142, %v4008, -inf
    %4121 = vmax.xlane.f32.xlu0 %v4120
    %v4122 = vpop.xlane.xlu0 %4121
    %v4123 = vsel %vm142, %v4054, -inf
    %4124 = vmax.xlane.f32.xlu0 %v4123
    %v4125 = vpop.xlane.xlu0 %4124
    %v4126 = vsel %vm142, %v4100, -inf
    %4127 = vmax.xlane.f32.xlu0 %v4126
    %v4128 = vpop.xlane.xlu0 %4127
    %v4129 = vsub.f32 %v3778, %v4107
    %v4130 = vsub.f32 %v3824, %v4110
    %v4131 = vsub.f32 %v3870, %v4113
    %v4132 = vsub.f32 %v3916, %v4116
    %v4133 = vsub.f32 %v3962, %v4119
    %v4134 = vsub.f32 %v4008, %v4122
    %v4135 = vsub.f32 %v4054, %v4125
    %v4136 = vsub.f32 %v4100, %v4128
    %v4137 = vmul.f32 %v4129, 1.442695
    %v4138 = vpow.pop %v4137
    %v4139 = vmul.f32 %v4130, 1.442695
    %v4140 = vpow.pop %v4139
    %v4141 = vmul.f32 %v4131, 1.442695
    %v4142 = vpow.pop %v4141
    %v4143 = vmul.f32 %v4132, 1.442695
    %v4144 = vpow.pop %v4143
    %v4145 = vmul.f32 %v4133, 1.442695
    %v4146 = vpow.pop %v4145
    %v4147 = vmul.f32 %v4134, 1.442695
    %v4148 = vpow.pop %v4147
    %v4149 = vmul.f32 %v4135, 1.442695
    %v4150 = vpow.pop %v4149
    %v4151 = vmul.f32 %v4136, 1.442695
    %v4152 = vpow.pop %v4151
    %v4153 = vsel %vm142, %v4138, 0.0
    %4154 = vadd.xlane.f32.xlu0 %v4153
    %v4155 = vpop.xlane.xlu0 %4154
    %v4156 = vsel %vm142, %v4140, 0.0
    %4157 = vadd.xlane.f32.xlu0 %v4156
    %v4158 = vpop.xlane.xlu0 %4157
    %v4159 = vsel %vm142, %v4142, 0.0
    %4160 = vadd.xlane.f32.xlu0 %v4159
    %v4161 = vpop.xlane.xlu0 %4160
    %v4162 = vsel %vm142, %v4144, 0.0
    %4163 = vadd.xlane.f32.xlu0 %v4162
    %v4164 = vpop.xlane.xlu0 %4163
    %v4165 = vsel %vm142, %v4146, 0.0
    %4166 = vadd.xlane.f32.xlu0 %v4165
    %v4167 = vpop.xlane.xlu0 %4166
    %v4168 = vsel %vm142, %v4148, 0.0
    %4169 = vadd.xlane.f32.xlu0 %v4168
    %v4170 = vpop.xlane.xlu0 %4169
    %v4171 = vsel %vm142, %v4150, 0.0
    %4172 = vadd.xlane.f32.xlu0 %v4171
    %v4173 = vpop.xlane.xlu0 %4172
    %v4174 = vsel %vm142, %v4152, 0.0
    %4175 = vadd.xlane.f32.xlu0 %v4174
    %v4176 = vpop.xlane.xlu0 %4175
    %v4177 = vrcp.pop %v4155
    %v4178 = vrcp.pop %v4158
    %v4179 = vrcp.pop %v4161
    %v4180 = vrcp.pop %v4164
    %v4181 = vrcp.pop %v4167
    %v4182 = vrcp.pop %v4170
    %v4183 = vrcp.pop %v4173
    %v4184 = vrcp.pop %v4176
    %v4185 = vmul.f32 %v4138, %v4177
    %v4186 = vmul.f32 %v4140, %v4178
    %v4187 = vmul.f32 %v4142, %v4179
    %v4188 = vmul.f32 %v4144, %v4180
    %v4189 = vmul.f32 %v4146, %v4181
    %v4190 = vmul.f32 %v4148, %v4182
    %v4191 = vmul.f32 %v4150, %v4183
    %v4192 = vmul.f32 %v4152, %v4184
    %v4193 = vpack.c.bf16 %v4185, %v4185
    %v4194 = vpack.c.bf16 %v4186, %v4186
    %v4195 = vpack.c.bf16 %v4187, %v4187
    %v4196 = vpack.c.bf16 %v4188, %v4188
    %v4197 = vpack.c.bf16 %v4189, %v4189
    %v4198 = vpack.c.bf16 %v4190, %v4190
    %v4199 = vpack.c.bf16 %v4191, %v4191
    %v4200 = vpack.c.bf16 %v4192, %v4192
    %4202 = vrot.lane.b32.xlu0 %v3729, 96
    %v4203 = vpop.permute.xlu0 %4202
    %v4205 = vsel %vm142, %v4193, 0
    %v4208 = vsel %vm633, %v4203, 0
    %4210 = vmatprep.subr.bf16.mxu0 0
    %4211 = vmatpush1.bf16.msra.mxu0 %v4208
    %4212 = vmatprep.subr.bf16.mxu0 0
    %4213 = vmatpush1.bf16.msra.mxu0 0
    %4214 = vmatprep.subr.bf16.mxu0 0
    %4215 = vmatpush1.bf16.msra.mxu0 0
    %4216 = vmatprep.subr.bf16.mxu0 0
    %4217 = vmatpush1.bf16.msra.mxu0 0
    %4218 = vmatprep.subr.bf16.mxu0 0
    %4219 = vmatpush1.bf16.msra.mxu0 0
    %4220 = vmatprep.subr.bf16.mxu0 0
    %4221 = vmatpush1.bf16.msra.mxu0 0
    %4222 = vmatprep.subr.bf16.mxu0 0
    %4223 = vmatpush1.bf16.msra.mxu0 0
    %4224 = vmatprep.subr.bf16.mxu0 0
    %4225 = vmatpush1.bf16.msra.mxu0 0
    %4226 = vmatprep.subr.bf16.mxu0 0
    %4227 = vmatpush1.bf16.msra.mxu0 0
    %4228 = vmatprep.subr.bf16.mxu0 0
    %4229 = vmatpush1.bf16.msra.mxu0 0
    %4230 = vmatprep.subr.bf16.mxu0 0
    %4231 = vmatpush1.bf16.msra.mxu0 0
    %4232 = vmatprep.subr.bf16.mxu0 0
    %4233 = vmatpush1.bf16.msra.mxu0 0
    %4234 = vmatprep.subr.bf16.mxu0 0
    %4235 = vmatpush1.bf16.msra.mxu0 0
    %4236 = vmatprep.subr.bf16.mxu0 0
    %4237 = vmatpush1.bf16.msra.mxu0 0
    %4238 = vmatprep.subr.bf16.mxu0 0
    %4239 = vmatpush1.bf16.msra.mxu0 0
    %4240 = vmatprep.subr.bf16.mxu0 0
    %4241 = vmatpush1.bf16.msra.mxu0 0
    %4242 = vmatprep.mubr.bf16.mxu0 0
    %4243 = vmatmul.mubr.bf16.gmra.mrb[0].mxu0 %v4205
    %v4244 = vpop.f32.mrb[0].mxu0
    %v4245 = vadd.f32 0.0, %v4244
    %v4246 = vpop.f32.mrb[0].mxu0
    %v4247 = vpop.f32.mrb[0].mxu0
    %v4248 = vpop.f32.mrb[0].mxu0
    %4249 = vdwg.mxu0
    %4251 = vrot.lane.b32.xlu0 %v3730, 96
    %v4252 = vpop.permute.xlu0 %4251
    %v4254 = vsel %vm142, %v4194, 0
    %v4257 = vsel %vm633, %v4252, 0
    %4259 = vmatprep.subr.bf16.mxu0 0
    %4260 = vmatpush1.bf16.msra.mxu0 %v4257
    %4261 = vmatprep.subr.bf16.mxu0 0
    %4262 = vmatpush1.bf16.msra.mxu0 0
    %4263 = vmatprep.subr.bf16.mxu0 0
    %4264 = vmatpush1.bf16.msra.mxu0 0
    %4265 = vmatprep.subr.bf16.mxu0 0
    %4266 = vmatpush1.bf16.msra.mxu0 0
    %4267 = vmatprep.subr.bf16.mxu0 0
    %4268 = vmatpush1.bf16.msra.mxu0 0
    %4269 = vmatprep.subr.bf16.mxu0 0
    %4270 = vmatpush1.bf16.msra.mxu0 0
    %4271 = vmatprep.subr.bf16.mxu0 0
    %4272 = vmatpush1.bf16.msra.mxu0 0
    %4273 = vmatprep.subr.bf16.mxu0 0
    %4274 = vmatpush1.bf16.msra.mxu0 0
    %4275 = vmatprep.subr.bf16.mxu0 0
    %4276 = vmatpush1.bf16.msra.mxu0 0
    %4277 = vmatprep.subr.bf16.mxu0 0
    %4278 = vmatpush1.bf16.msra.mxu0 0
    %4279 = vmatprep.subr.bf16.mxu0 0
    %4280 = vmatpush1.bf16.msra.mxu0 0
    %4281 = vmatprep.subr.bf16.mxu0 0
    %4282 = vmatpush1.bf16.msra.mxu0 0
    %4283 = vmatprep.subr.bf16.mxu0 0
    %4284 = vmatpush1.bf16.msra.mxu0 0
    %4285 = vmatprep.subr.bf16.mxu0 0
    %4286 = vmatpush1.bf16.msra.mxu0 0
    %4287 = vmatprep.subr.bf16.mxu0 0
    %4288 = vmatpush1.bf16.msra.mxu0 0
    %4289 = vmatprep.subr.bf16.mxu0 0
    %4290 = vmatpush1.bf16.msra.mxu0 0
    %4291 = vmatprep.mubr.bf16.mxu0 0
    %4292 = vmatmul.mubr.bf16.gmra.mrb[0].mxu0 %v4254
    %v4293 = vpop.f32.mrb[0].mxu0
    %v4294 = vadd.f32 0.0, %v4293
    %v4295 = vpop.f32.mrb[0].mxu0
    %v4296 = vpop.f32.mrb[0].mxu0
    %v4297 = vpop.f32.mrb[0].mxu0
    %4298 = vdwg.mxu0
    %4300 = vrot.lane.b32.xlu0 %v3731, 96
    %v4301 = vpop.permute.xlu0 %4300
    %v4303 = vsel %vm142, %v4195, 0
    %v4306 = vsel %vm633, %v4301, 0
    %4308 = vmatprep.subr.bf16.mxu0 0
    %4309 = vmatpush1.bf16.msra.mxu0 %v4306
    %4310 = vmatprep.subr.bf16.mxu0 0
    %4311 = vmatpush1.bf16.msra.mxu0 0
    %4312 = vmatprep.subr.bf16.mxu0 0
    %4313 = vmatpush1.bf16.msra.mxu0 0
    %4314 = vmatprep.subr.bf16.mxu0 0
    %4315 = vmatpush1.bf16.msra.mxu0 0
    %4316 = vmatprep.subr.bf16.mxu0 0
    %4317 = vmatpush1.bf16.msra.mxu0 0
    %4318 = vmatprep.subr.bf16.mxu0 0
    %4319 = vmatpush1.bf16.msra.mxu0 0
    %4320 = vmatprep.subr.bf16.mxu0 0
    %4321 = vmatpush1.bf16.msra.mxu0 0
    %4322 = vmatprep.subr.bf16.mxu0 0
    %4323 = vmatpush1.bf16.msra.mxu0 0
    %4324 = vmatprep.subr.bf16.mxu0 0
    %4325 = vmatpush1.bf16.msra.mxu0 0
    %4326 = vmatprep.subr.bf16.mxu0 0
    %4327 = vmatpush1.bf16.msra.mxu0 0
    %4328 = vmatprep.subr.bf16.mxu0 0
    %4329 = vmatpush1.bf16.msra.mxu0 0
    %4330 = vmatprep.subr.bf16.mxu0 0
    %4331 = vmatpush1.bf16.msra.mxu0 0
    %4332 = vmatprep.subr.bf16.mxu0 0
    %4333 = vmatpush1.bf16.msra.mxu0 0
    %4334 = vmatprep.subr.bf16.mxu0 0
    %4335 = vmatpush1.bf16.msra.mxu0 0
    %4336 = vmatprep.subr.bf16.mxu0 0
    %4337 = vmatpush1.bf16.msra.mxu0 0
    %4338 = vmatprep.subr.bf16.mxu0 0
    %4339 = vmatpush1.bf16.msra.mxu0 0
    %4340 = vmatprep.mubr.bf16.mxu0 0
    %4341 = vmatmul.mubr.bf16.gmra.mrb[0].mxu0 %v4303
    %v4342 = vpop.f32.mrb[0].mxu0
    %v4343 = vadd.f32 0.0, %v4342
    %v4344 = vpop.f32.mrb[0].mxu0
    %v4345 = vpop.f32.mrb[0].mxu0
    %v4346 = vpop.f32.mrb[0].mxu0
    %4347 = vdwg.mxu0
    %4349 = vrot.lane.b32.xlu0 %v3732, 96
    %v4350 = vpop.permute.xlu0 %4349
    %v4352 = vsel %vm142, %v4196, 0
    %v4355 = vsel %vm633, %v4350, 0
    %4357 = vmatprep.subr.bf16.mxu0 0
    %4358 = vmatpush1.bf16.msra.mxu0 %v4355
    %4359 = vmatprep.subr.bf16.mxu0 0
    %4360 = vmatpush1.bf16.msra.mxu0 0
    %4361 = vmatprep.subr.bf16.mxu0 0
    %4362 = vmatpush1.bf16.msra.mxu0 0
    %4363 = vmatprep.subr.bf16.mxu0 0
    %4364 = vmatpush1.bf16.msra.mxu0 0
    %4365 = vmatprep.subr.bf16.mxu0 0
    %4366 = vmatpush1.bf16.msra.mxu0 0
    %4367 = vmatprep.subr.bf16.mxu0 0
    %4368 = vmatpush1.bf16.msra.mxu0 0
    %4369 = vmatprep.subr.bf16.mxu0 0
    %4370 = vmatpush1.bf16.msra.mxu0 0
    %4371 = vmatprep.subr.bf16.mxu0 0
    %4372 = vmatpush1.bf16.msra.mxu0 0
    %4373 = vmatprep.subr.bf16.mxu0 0
    %4374 = vmatpush1.bf16.msra.mxu0 0
    %4375 = vmatprep.subr.bf16.mxu0 0
    %4376 = vmatpush1.bf16.msra.mxu0 0
    %4377 = vmatprep.subr.bf16.mxu0 0
    %4378 = vmatpush1.bf16.msra.mxu0 0
    %4379 = vmatprep.subr.bf16.mxu0 0
    %4380 = vmatpush1.bf16.msra.mxu0 0
    %4381 = vmatprep.subr.bf16.mxu0 0
    %4382 = vmatpush1.bf16.msra.mxu0 0
    %4383 = vmatprep.subr.bf16.mxu0 0
    %4384 = vmatpush1.bf16.msra.mxu0 0
    %4385 = vmatprep.subr.bf16.mxu0 0
    %4386 = vmatpush1.bf16.msra.mxu0 0
    %4387 = vmatprep.subr.bf16.mxu0 0
    %4388 = vmatpush1.bf16.msra.mxu0 0
    %4389 = vmatprep.mubr.bf16.mxu0 0
    %4390 = vmatmul.mubr.bf16.gmra.mrb[0].mxu0 %v4352
    %v4391 = vpop.f32.mrb[0].mxu0
    %v4392 = vadd.f32 0.0, %v4391
    %v4393 = vpop.f32.mrb[0].mxu0
    %v4394 = vpop.f32.mrb[0].mxu0
    %v4395 = vpop.f32.mrb[0].mxu0
    %4396 = vdwg.mxu0
    %4398 = vrot.lane.b32.xlu0 %v3733, 96
    %v4399 = vpop.permute.xlu0 %4398
    %v4401 = vsel %vm142, %v4197, 0
    %v4404 = vsel %vm633, %v4399, 0
    %4406 = vmatprep.subr.bf16.mxu0 0
    %4407 = vmatpush1.bf16.msra.mxu0 %v4404
    %4408 = vmatprep.subr.bf16.mxu0 0
    %4409 = vmatpush1.bf16.msra.mxu0 0
    %4410 = vmatprep.subr.bf16.mxu0 0
    %4411 = vmatpush1.bf16.msra.mxu0 0
    %4412 = vmatprep.subr.bf16.mxu0 0
    %4413 = vmatpush1.bf16.msra.mxu0 0
    %4414 = vmatprep.subr.bf16.mxu0 0
    %4415 = vmatpush1.bf16.msra.mxu0 0
    %4416 = vmatprep.subr.bf16.mxu0 0
    %4417 = vmatpush1.bf16.msra.mxu0 0
    %4418 = vmatprep.subr.bf16.mxu0 0
    %4419 = vmatpush1.bf16.msra.mxu0 0
    %4420 = vmatprep.subr.bf16.mxu0 0
    %4421 = vmatpush1.bf16.msra.mxu0 0
    %4422 = vmatprep.subr.bf16.mxu0 0
    %4423 = vmatpush1.bf16.msra.mxu0 0
    %4424 = vmatprep.subr.bf16.mxu0 0
    %4425 = vmatpush1.bf16.msra.mxu0 0
    %4426 = vmatprep.subr.bf16.mxu0 0
    %4427 = vmatpush1.bf16.msra.mxu0 0
    %4428 = vmatprep.subr.bf16.mxu0 0
    %4429 = vmatpush1.bf16.msra.mxu0 0
    %4430 = vmatprep.subr.bf16.mxu0 0
    %4431 = vmatpush1.bf16.msra.mxu0 0
    %4432 = vmatprep.subr.bf16.mxu0 0
    %4433 = vmatpush1.bf16.msra.mxu0 0
    %4434 = vmatprep.subr.bf16.mxu0 0
    %4435 = vmatpush1.bf16.msra.mxu0 0
    %4436 = vmatprep.subr.bf16.mxu0 0
    %4437 = vmatpush1.bf16.msra.mxu0 0
    %4438 = vmatprep.mubr.bf16.mxu0 0
    %4439 = vmatmul.mubr.bf16.gmra.mrb[0].mxu0 %v4401
    %v4440 = vpop.f32.mrb[0].mxu0
    %v4441 = vadd.f32 0.0, %v4440
    %v4442 = vpop.f32.mrb[0].mxu0
    %v4443 = vpop.f32.mrb[0].mxu0
    %v4444 = vpop.f32.mrb[0].mxu0
    %4445 = vdwg.mxu0
    %4447 = vrot.lane.b32.xlu0 %v3734, 96
    %v4448 = vpop.permute.xlu0 %4447
    %v4450 = vsel %vm142, %v4198, 0
    %v4453 = vsel %vm633, %v4448, 0
    %4455 = vmatprep.subr.bf16.mxu0 0
    %4456 = vmatpush1.bf16.msra.mxu0 %v4453
    %4457 = vmatprep.subr.bf16.mxu0 0
    %4458 = vmatpush1.bf16.msra.mxu0 0
    %4459 = vmatprep.subr.bf16.mxu0 0
    %4460 = vmatpush1.bf16.msra.mxu0 0
    %4461 = vmatprep.subr.bf16.mxu0 0
    %4462 = vmatpush1.bf16.msra.mxu0 0
    %4463 = vmatprep.subr.bf16.mxu0 0
    %4464 = vmatpush1.bf16.msra.mxu0 0
    %4465 = vmatprep.subr.bf16.mxu0 0
    %4466 = vmatpush1.bf16.msra.mxu0 0
    %4467 = vmatprep.subr.bf16.mxu0 0
    %4468 = vmatpush1.bf16.msra.mxu0 0
    %4469 = vmatprep.subr.bf16.mxu0 0
    %4470 = vmatpush1.bf16.msra.mxu0 0
    %4471 = vmatprep.subr.bf16.mxu0 0
    %4472 = vmatpush1.bf16.msra.mxu0 0
    %4473 = vmatprep.subr.bf16.mxu0 0
    %4474 = vmatpush1.bf16.msra.mxu0 0
    %4475 = vmatprep.subr.bf16.mxu0 0
    %4476 = vmatpush1.bf16.msra.mxu0 0
    %4477 = vmatprep.subr.bf16.mxu0 0
    %4478 = vmatpush1.bf16.msra.mxu0 0
    %4479 = vmatprep.subr.bf16.mxu0 0
    %4480 = vmatpush1.bf16.msra.mxu0 0
    %4481 = vmatprep.subr.bf16.mxu0 0
    %4482 = vmatpush1.bf16.msra.mxu0 0
    %4483 = vmatprep.subr.bf16.mxu0 0
    %4484 = vmatpush1.bf16.msra.mxu0 0
    %4485 = vmatprep.subr.bf16.mxu0 0
    %4486 = vmatpush1.bf16.msra.mxu0 0
    %4487 = vmatprep.mubr.bf16.mxu0 0
    %4488 = vmatmul.mubr.bf16.gmra.mrb[0].mxu0 %v4450
    %v4489 = vpop.f32.mrb[0].mxu0
    %v4490 = vadd.f32 0.0, %v4489
    %v4491 = vpop.f32.mrb[0].mxu0
    %v4492 = vpop.f32.mrb[0].mxu0
    %v4493 = vpop.f32.mrb[0].mxu0
    %4494 = vdwg.mxu0
    %4496 = vrot.lane.b32.xlu0 %v3735, 96
    %v4497 = vpop.permute.xlu0 %4496
    %v4499 = vsel %vm142, %v4199, 0
    %v4502 = vsel %vm633, %v4497, 0
    %4504 = vmatprep.subr.bf16.mxu0 0
    %4505 = vmatpush1.bf16.msra.mxu0 %v4502
    %4506 = vmatprep.subr.bf16.mxu0 0
    %4507 = vmatpush1.bf16.msra.mxu0 0
    %4508 = vmatprep.subr.bf16.mxu0 0
    %4509 = vmatpush1.bf16.msra.mxu0 0
    %4510 = vmatprep.subr.bf16.mxu0 0
    %4511 = vmatpush1.bf16.msra.mxu0 0
    %4512 = vmatprep.subr.bf16.mxu0 0
    %4513 = vmatpush1.bf16.msra.mxu0 0
    %4514 = vmatprep.subr.bf16.mxu0 0
    %4515 = vmatpush1.bf16.msra.mxu0 0
    %4516 = vmatprep.subr.bf16.mxu0 0
    %4517 = vmatpush1.bf16.msra.mxu0 0
    %4518 = vmatprep.subr.bf16.mxu0 0
    %4519 = vmatpush1.bf16.msra.mxu0 0
    %4520 = vmatprep.subr.bf16.mxu0 0
    %4521 = vmatpush1.bf16.msra.mxu0 0
    %4522 = vmatprep.subr.bf16.mxu0 0
    %4523 = vmatpush1.bf16.msra.mxu0 0
    %4524 = vmatprep.subr.bf16.mxu0 0
    %4525 = vmatpush1.bf16.msra.mxu0 0
    %4526 = vmatprep.subr.bf16.mxu0 0
    %4527 = vmatpush1.bf16.msra.mxu0 0
    %4528 = vmatprep.subr.bf16.mxu0 0
    %4529 = vmatpush1.bf16.msra.mxu0 0
    %4530 = vmatprep.subr.bf16.mxu0 0
    %4531 = vmatpush1.bf16.msra.mxu0 0
    %4532 = vmatprep.subr.bf16.mxu0 0
    %4533 = vmatpush1.bf16.msra.mxu0 0
    %4534 = vmatprep.subr.bf16.mxu0 0
    %4535 = vmatpush1.bf16.msra.mxu0 0
    %4536 = vmatprep.mubr.bf16.mxu0 0
    %4537 = vmatmul.mubr.bf16.gmra.mrb[0].mxu0 %v4499
    %v4538 = vpop.f32.mrb[0].mxu0
    %v4539 = vadd.f32 0.0, %v4538
    %v4540 = vpop.f32.mrb[0].mxu0
    %v4541 = vpop.f32.mrb[0].mxu0
    %v4542 = vpop.f32.mrb[0].mxu0
    %4543 = vdwg.mxu0
    %4545 = vrot.lane.b32.xlu0 %v3736, 96
    %v4546 = vpop.permute.xlu0 %4545
    %v4548 = vsel %vm142, %v4200, 0
    %v4551 = vsel %vm633, %v4546, 0
    %4553 = vmatprep.subr.bf16.mxu0 0
    %4554 = vmatpush1.bf16.msra.mxu0 %v4551
    %4555 = vmatprep.subr.bf16.mxu0 0
    %4556 = vmatpush1.bf16.msra.mxu0 0
    %4557 = vmatprep.subr.bf16.mxu0 0
    %4558 = vmatpush1.bf16.msra.mxu0 0
    %4559 = vmatprep.subr.bf16.mxu0 0
    %4560 = vmatpush1.bf16.msra.mxu0 0
    %4561 = vmatprep.subr.bf16.mxu0 0
    %4562 = vmatpush1.bf16.msra.mxu0 0
    %4563 = vmatprep.subr.bf16.mxu0 0
    %4564 = vmatpush1.bf16.msra.mxu0 0
    %4565 = vmatprep.subr.bf16.mxu0 0
    %4566 = vmatpush1.bf16.msra.mxu0 0
    %4567 = vmatprep.subr.bf16.mxu0 0
    %4568 = vmatpush1.bf16.msra.mxu0 0
    %4569 = vmatprep.subr.bf16.mxu0 0
    %4570 = vmatpush1.bf16.msra.mxu0 0
    %4571 = vmatprep.subr.bf16.mxu0 0
    %4572 = vmatpush1.bf16.msra.mxu0 0
    %4573 = vmatprep.subr.bf16.mxu0 0
    %4574 = vmatpush1.bf16.msra.mxu0 0
    %4575 = vmatprep.subr.bf16.mxu0 0
    %4576 = vmatpush1.bf16.msra.mxu0 0
    %4577 = vmatprep.subr.bf16.mxu0 0
    %4578 = vmatpush1.bf16.msra.mxu0 0
    %4579 = vmatprep.subr.bf16.mxu0 0
    %4580 = vmatpush1.bf16.msra.mxu0 0
    %4581 = vmatprep.subr.bf16.mxu0 0
    %4582 = vmatpush1.bf16.msra.mxu0 0
    %4583 = vmatprep.subr.bf16.mxu0 0
    %4584 = vmatpush1.bf16.msra.mxu0 0
    %4585 = vmatprep.mubr.bf16.mxu0 0
    %4586 = vmatmul.mubr.bf16.gmra.mrb[0].mxu0 %v4548
    %v4587 = vpop.f32.mrb[0].mxu0
    %v4588 = vadd.f32 0.0, %v4587
    %v4589 = vpop.f32.mrb[0].mxu0
    %v4590 = vpop.f32.mrb[0].mxu0
    %v4591 = vpop.f32.mrb[0].mxu0
    %4592 = vdwg.mxu0
    %4595 = vrot.lane.b32.xlu0 %v4294, 8
    %v4596 = vpop.permute.xlu0 %4595
    %4597 = vrot.lane.b32.xlu0 %v4490, 8
    %v4598 = vpop.permute.xlu0 %4597
    %4603 = vrot.lane.b32.xlu0 %v4343, 16
    %v4604 = vpop.permute.xlu0 %4603
    %4605 = vrot.lane.b32.xlu0 %v4539, 16
    %v4606 = vpop.permute.xlu0 %4605
    %4611 = vrot.lane.b32.xlu0 %v4392, 24
    %v4612 = vpop.permute.xlu0 %4611
    %4613 = vrot.lane.b32.xlu0 %v4588, 24
    %v4614 = vpop.permute.xlu0 %4613
    %v4617 = vsel %vm142, %v4245, %v4596
    %v4618 = vsel %vm142, %v4441, %v4598
    %v4619 = vsel %vm1039, %v4617, %v4604
    %v4620 = vsel %vm1039, %v4618, %v4606
    %v4621 = vsel %vm1042, %v4619, %v4612
    %v4622 = vsel %vm1042, %v4620, %v4614
    %v4623 = vpack.c.bf16 %v4622, %v4621
    %v4624 = vlaneseq
    %v4625 = vshrl.u32 %v4624, 7
    %v4626 = vsub.s32 4, %v4625
    %v4627 = vrot.slane %v2485, %v4626
    %4628 = vrot.lane.b32.xlu0 %v3487, 32
    %v4629 = vpop.permute.xlu0 %4628
    %4630 = vrot.lane.b32.xlu0 %v3488, 32
    %v4631 = vpop.permute.xlu0 %4630
    %v4635 = vsel %vm66, %v4623, 0
    %4637 = vmatprep.subr.bf16.mxu0 0
    %4638 = vmatpush1.bf16.msra.mxu0 %v4629
    %4639 = vmatprep.subr.bf16.mxu0 0
    %4640 = vmatpush1.bf16.msra.mxu0 %v4631
    %4641 = vmatprep.subr.bf16.mxu0 0
    %4642 = vmatpush1.bf16.msra.mxu0 0
    %4643 = vmatprep.subr.bf16.mxu0 0
    %4644 = vmatpush1.bf16.msra.mxu0 0
    %4645 = vmatprep.subr.bf16.mxu0 0
    %4646 = vmatpush1.bf16.msra.mxu0 0
    %4647 = vmatprep.subr.bf16.mxu0 0
    %4648 = vmatpush1.bf16.msra.mxu0 0
    %4649 = vmatprep.subr.bf16.mxu0 0
    %4650 = vmatpush1.bf16.msra.mxu0 0
    %4651 = vmatprep.subr.bf16.mxu0 0
    %4652 = vmatpush1.bf16.msra.mxu0 0
    %4653 = vmatprep.subr.bf16.mxu0 0
    %4654 = vmatpush1.bf16.msra.mxu0 0
    %4655 = vmatprep.subr.bf16.mxu0 0
    %4656 = vmatpush1.bf16.msra.mxu0 0
    %4657 = vmatprep.subr.bf16.mxu0 0
    %4658 = vmatpush1.bf16.msra.mxu0 0
    %4659 = vmatprep.subr.bf16.mxu0 0
    %4660 = vmatpush1.bf16.msra.mxu0 0
    %4661 = vmatprep.subr.bf16.mxu0 0
    %4662 = vmatpush1.bf16.msra.mxu0 0
    %4663 = vmatprep.subr.bf16.mxu0 0
    %4664 = vmatpush1.bf16.msra.mxu0 0
    %4665 = vmatprep.subr.bf16.mxu0 0
    %4666 = vmatpush1.bf16.msra.mxu0 0
    %4667 = vmatprep.subr.bf16.mxu0 0
    %4668 = vmatpush1.bf16.msra.mxu0 0
    %4669 = vmatprep.mubr.bf16.mxu0 0
    %4670 = vmatmul.mubr.bf16.gmra.mrb[0].mxu0 %v4635
    %v4671 = vpop.f32.mrb[0].mxu0
    %v4672 = vadd.f32 %v4627, %v4671
    %v4673 = vpop.f32.mrb[0].mxu0
    %v4674 = vpop.f32.mrb[0].mxu0
    %v4675 = vadd.f32 %v4627, %v4674
    %v4676 = vpop.f32.mrb[0].mxu0
    %4677 = vdwg.mxu0
    %v4678 = vadd.f32 %v3577, %v4672
    %v4679 = vadd.f32 %v3578, %v4675
    %v4680 = vsel %vm66, %v4678, 0.0
    %4681 = vadd.xlane.f32.xlu0 %v4680
    %v4682 = vpop.xlane.xlu0 %4681
    %v4683 = vsel %vm66, %v4679, 0.0
    %4684 = vadd.xlane.f32.xlu0 %v4683
    %v4685 = vpop.xlane.xlu0 %4684
    %v4686 = vmul.f32 %v4682, %v1114
    %v4687 = vmul.f32 %v4685, %v1114
    %v4688 = vsub.f32 %v4678, %v4686
    %v4689 = vsub.f32 %v4679, %v4687
    %v4690 = vmul.f32 %v4688, %v4688
    %v4691 = vmul.f32 %v4689, %v4689
    %v4692 = vsel %vm66, %v4690, 0.0
    %4693 = vadd.xlane.f32.xlu0 %v4692
    %v4694 = vpop.xlane.xlu0 %4693
    %v4695 = vsel %vm66, %v4691, 0.0
    %4696 = vadd.xlane.f32.xlu0 %v4695
    %v4697 = vpop.xlane.xlu0 %4696
    %v4698 = vmul.f32 %v4694, %v1114
    %v4699 = vmul.f32 %v4697, %v1114
    %v4700 = vadd.f32 %v4698, 1e-05
    %v4701 = vadd.f32 %v4699, 1e-05
    %v4702 = vrsqrt.pop %v4700
    %v4703 = vrsqrt.pop %v4701
    %v4704 = vmul.f32 %v4688, %v4702
    %v4705 = vmul.f32 %v4689, %v4703
    %v4706 = vlaneseq
    %v4707 = vshrl.u32 %v4706, 7
    %v4708 = vsub.s32 1, %v4707
    %v4709 = vrot.slane %v2486, %v4708
    %v4710 = vmul.f32 %v4704, %v4709
    %v4711 = vmul.f32 %v4705, %v4709
    %v4712 = vlaneseq
    %v4713 = vshrl.u32 %v4712, 7
    %v4714 = vsub.s32 2, %v4713
    %v4715 = vrot.slane %v2486, %v4714
    %v4716 = vadd.f32 %v4710, %v4715
    %v4717 = vadd.f32 %v4711, %v4715
    %v4718 = vpack.c.bf16 %v4717, %v4716
    %v4719 = vlaneseq
    %v4720 = vshrl.u32 %v4719, 7
    %v4721 = vsub.s32 5, %v4720
    %v4722 = vrot.slane %v2485, %v4721
    %v4727 = vunpack.c.l.b16 %v2468
    %v4728 = vunpack.c.l.b16 %v2470
    %v4729 = vunpack.c.l.b16 %v2472
    %v4730 = vunpack.c.l.b16 %v2474
    %v4731 = vpack.c.b16 %v4728, %v4727
    %v4732 = vpack.c.b16 %v4730, %v4729
    %v4736 = vsel %vm66, %v4718, 0
    %4738 = vmatprep.subr.bf16.mxu0 0
    %4739 = vmatpush1.bf16.msra.mxu0 %v4731
    %4740 = vmatprep.subr.bf16.mxu0 0
    %4741 = vmatpush1.bf16.msra.mxu0 %v4732
    %4742 = vmatprep.subr.bf16.mxu0 0
    %4743 = vmatpush1.bf16.msra.mxu0 0
    %4744 = vmatprep.subr.bf16.mxu0 0
    %4745 = vmatpush1.bf16.msra.mxu0 0
    %4746 = vmatprep.subr.bf16.mxu0 0
    %4747 = vmatpush1.bf16.msra.mxu0 0
    %4748 = vmatprep.subr.bf16.mxu0 0
    %4749 = vmatpush1.bf16.msra.mxu0 0
    %4750 = vmatprep.subr.bf16.mxu0 0
    %4751 = vmatpush1.bf16.msra.mxu0 0
    %4752 = vmatprep.subr.bf16.mxu0 0
    %4753 = vmatpush1.bf16.msra.mxu0 0
    %4754 = vmatprep.subr.bf16.mxu0 0
    %4755 = vmatpush1.bf16.msra.mxu0 0
    %4756 = vmatprep.subr.bf16.mxu0 0
    %4757 = vmatpush1.bf16.msra.mxu0 0
    %4758 = vmatprep.subr.bf16.mxu0 0
    %4759 = vmatpush1.bf16.msra.mxu0 0
    %4760 = vmatprep.subr.bf16.mxu0 0
    %4761 = vmatpush1.bf16.msra.mxu0 0
    %4762 = vmatprep.subr.bf16.mxu0 0
    %4763 = vmatpush1.bf16.msra.mxu0 0
    %4764 = vmatprep.subr.bf16.mxu0 0
    %4765 = vmatpush1.bf16.msra.mxu0 0
    %4766 = vmatprep.subr.bf16.mxu0 0
    %4767 = vmatpush1.bf16.msra.mxu0 0
    %4768 = vmatprep.subr.bf16.mxu0 0
    %4769 = vmatpush1.bf16.msra.mxu0 0
    %4770 = vmatprep.mubr.bf16.mxu0 0
    %4771 = vmatmul.mubr.bf16.gmra.mrb[0].mxu0 %v4736
    %v4772 = vpop.f32.mrb[0].mxu0
    %v4773 = vadd.f32 %v4722, %v4772
    %v4774 = vpop.f32.mrb[0].mxu0
    %v4775 = vpop.f32.mrb[0].mxu0
    %v4776 = vadd.f32 %v4722, %v4775
    %v4777 = vpop.f32.mrb[0].mxu0
    %4778 = vdwg.mxu0
    %v4779 = vmax.f32 %v4773, 0.0
    %v4780 = vmax.f32 %v4776, 0.0
    %v4781 = vpack.c.bf16 %v4780, %v4779
    %v4782 = vlaneseq
    %v4783 = vshrl.u32 %v4782, 7
    %v4784 = vsub.s32 6, %v4783
    %v4785 = vrot.slane %v2485, %v4784
    %v4794 = vunpack.c.l.b16 %v2476
    %v4795 = vunpack.c.l.b16 %v2477
    %v4796 = vunpack.c.l.b16 %v2478
    %v4797 = vunpack.c.l.b16 %v2479
    %v4798 = vunpack.c.l.b16 %v2480
    %v4799 = vunpack.c.l.b16 %v2481
    %v4800 = vunpack.c.l.b16 %v2482
    %v4801 = vunpack.c.l.b16 %v2483
    %v4802 = vpack.c.b16 %v4795, %v4794
    %v4803 = vpack.c.b16 %v4797, %v4796
    %v4804 = vpack.c.b16 %v4799, %v4798
    %v4805 = vpack.c.b16 %v4801, %v4800
    %v4811 = vsel %vm2381, %v4781, 0
    %4813 = vmatprep.subr.bf16.mxu0 0
    %4814 = vmatpush1.bf16.msra.mxu0 %v4802
    %4815 = vmatprep.subr.bf16.mxu0 0
    %4816 = vmatpush1.bf16.msra.mxu0 %v4803
    %4817 = vmatprep.subr.bf16.mxu0 0
    %4818 = vmatpush1.bf16.msra.mxu0 %v4804
    %4819 = vmatprep.subr.bf16.mxu0 0
    %4820 = vmatpush1.bf16.msra.mxu0 %v4805
    %4821 = vmatprep.subr.bf16.mxu0 0
    %4822 = vmatpush1.bf16.msra.mxu0 0
    %4823 = vmatprep.subr.bf16.mxu0 0
    %4824 = vmatpush1.bf16.msra.mxu0 0
    %4825 = vmatprep.subr.bf16.mxu0 0
    %4826 = vmatpush1.bf16.msra.mxu0 0
    %4827 = vmatprep.subr.bf16.mxu0 0
    %4828 = vmatpush1.bf16.msra.mxu0 0
    %4829 = vmatprep.subr.bf16.mxu0 0
    %4830 = vmatpush1.bf16.msra.mxu0 0
    %4831 = vmatprep.subr.bf16.mxu0 0
    %4832 = vmatpush1.bf16.msra.mxu0 0
    %4833 = vmatprep.subr.bf16.mxu0 0
    %4834 = vmatpush1.bf16.msra.mxu0 0
    %4835 = vmatprep.subr.bf16.mxu0 0
    %4836 = vmatpush1.bf16.msra.mxu0 0
    %4837 = vmatprep.subr.bf16.mxu0 0
    %4838 = vmatpush1.bf16.msra.mxu0 0
    %4839 = vmatprep.subr.bf16.mxu0 0
    %4840 = vmatpush1.bf16.msra.mxu0 0
    %4841 = vmatprep.subr.bf16.mxu0 0
    %4842 = vmatpush1.bf16.msra.mxu0 0
    %4843 = vmatprep.subr.bf16.mxu0 0
    %4844 = vmatpush1.bf16.msra.mxu0 0
    %4845 = vmatprep.mubr.bf16.mxu0 0
    %4846 = vmatmul.mubr.bf16.gmra.mrb[0].mxu0 %v4811
    %v4847 = vpop.f32.mrb[0].mxu0
    %v4848 = vadd.f32 %v4785, %v4847
    %v4849 = vpop.f32.mrb[0].mxu0
    %v4850 = vpop.f32.mrb[0].mxu0
    %v4851 = vadd.f32 %v4785, %v4850
    %v4852 = vpop.f32.mrb[0].mxu0
    %4853 = vdwg.mxu0
    %v4854 = vadd.f32 %v4716, %v4848
    %v4855 = vadd.f32 %v4717, %v4851
    %v4856 = vsel %vm66, %v4854, 0.0
    %4857 = vadd.xlane.f32.xlu0 %v4856
    %v4858 = vpop.xlane.xlu0 %4857
    %v4859 = vsel %vm66, %v4855, 0.0
    %4860 = vadd.xlane.f32.xlu0 %v4859
    %v4861 = vpop.xlane.xlu0 %4860
    %v4862 = vmul.f32 %v4858, %v1114
    %v4863 = vmul.f32 %v4861, %v1114
    %v4864 = vsub.f32 %v4854, %v4862
    %v4865 = vsub.f32 %v4855, %v4863
    %v4866 = vmul.f32 %v4864, %v4864
    %v4867 = vmul.f32 %v4865, %v4865
    %v4868 = vsel %vm66, %v4866, 0.0
    %4869 = vadd.xlane.f32.xlu0 %v4868
    %v4870 = vpop.xlane.xlu0 %4869
    %v4871 = vsel %vm66, %v4867, 0.0
    %4872 = vadd.xlane.f32.xlu0 %v4871
    %v4873 = vpop.xlane.xlu0 %4872
    %v4874 = vmul.f32 %v4870, %v1114
    %v4875 = vmul.f32 %v4873, %v1114
    %v4876 = vadd.f32 %v4874, 1e-05
    %v4877 = vadd.f32 %v4875, 1e-05
    %v4878 = vrsqrt.pop %v4876
    %v4879 = vrsqrt.pop %v4877
    %v4880 = vmul.f32 %v4864, %v4878
    %v4881 = vmul.f32 %v4865, %v4879
    %v4882 = vlaneseq
    %v4883 = vshrl.u32 %v4882, 7
    %v4884 = vsub.s32 3, %v4883
    %v4885 = vrot.slane %v2486, %v4884
    %v4886 = vmul.f32 %v4880, %v4885
    %v4887 = vmul.f32 %v4881, %v4885
    %v4888 = vlaneseq
    %v4889 = vshrl.u32 %v4888, 7
    %v4890 = vsub.s32 4, %v4889
    %v4891 = vrot.slane %v2486, %v4890
    %v4892 = vadd.f32 %v4886, %v4891
    %v4893 = vadd.f32 %v4887, %v4891
    %4894 = vst.msk [vmem:[#allocation2] sm:$0xff] %vm66, %v4892
    %4895 = vst.msk [vmem:[#allocation2 + $0x8] sm:$0xff] %vm66, %v4893
    // Predicated region
    $region26: #{tpu_custom_call.1} parent=1 // pred_check
      _
    $region27: #{tpu_custom_call.1} parent=1 // pred_check_branch
      %4897 = sbr.rel (0) target = $region29
    $region28: #{tpu_custom_call.1} parent=1 // pred_region
      %s4899 = ssub.s32 256, 256
      %4900 = vsyncadd [#allocation3], %s4899
      %s4901 = sshll.u32 [#allocation2], 4
      %s4902 = int_to_ptr.vmem [resolvable:$true] %s4901
      %4907 = dma.vmem_to_hbm [thread:$0]  %s4902, 256, %s6, [#allocation3], 128, 128, 8
    $region29: #{tpu_custom_call.1} parent=1 // pred_fallthru
      _
    // Predicated region
    $region30: #{tpu_custom_call.1} parent=1 // pred_check
      _
    $region31: #{tpu_custom_call.1} parent=1 // pred_check_branch
      %4909 = sbr.rel (0) target = $region33
    $region32: #{tpu_custom_call.1} parent=1 // pred_region
      %4910 = dma.done [#allocation3], 256
    $region33: #{tpu_custom_call.1} parent=1 // pred_fallthru
      _
    %4911 = vsyncpa [#allocation3], 1

</llo_original>
